<compile_context>
chip_gen: v6e
topology: v6e:2x2x1
jax: 0.10.0
libtpu: 0.0.40
codegen_flags: <defaults>
</compile_context>

<pallas_src>
import functools

import jax
import jax.numpy as jnp
from jax.experimental import pallas as pl
from jax.experimental.pallas import tpu as pltpu


# ----------------------------------------------------------------------------
# Kernel
# ----------------------------------------------------------------------------
def _rnn_kernel(xdec_ref, h0_ref, w1_ref, ws_ref, b_ref, o_ref, h3acc_ref, *,
                seq_len, batch, hidden, in_size, num_class):
    T, B, H, V, C = seq_len, batch, hidden, in_size, num_class

    # ---- one-time unpack of the packed inputs (off the serial chain) -------
    w1x = w1_ref[0:V, :]                       # (V, 3H) layer-1 input weights
    w1h = w1_ref[V:V + H, :]                   # (H, 3H) layer-1 hidden weights
    w2i = ws_ref[0][:, :4 * H]                 # fused cols [r|z|xn|hn]
    w2h = ws_ref[1][:, :4 * H]
    w3i = ws_ref[2][:, :4 * H]
    w3h = ws_ref[3][:, :4 * H]
    wo = ws_ref[4][:, :C]                      # (H, C) output head

    b1x = b_ref[0][:, :3 * H]                  # (B, 3H) pre-broadcast biases
    b1h = b_ref[1][:, :3 * H]
    b2c = b_ref[2][:, :4 * H]
    b3c = b_ref[3][:, :4 * H]
    bo = b_ref[4][0:1, :C]                     # (1, C)

    h1 = h0_ref[0]                             # (B, H)
    h2 = h0_ref[1]
    h3 = h0_ref[2]

    # ---- hoisted per-step inputs (independent of the recurrent state) ------
    # leading-dim [t] indexing is sublane-aligned -> no per-step rolls in the
    # serial loop below; all matmuls/EUP work here pipeline ahead of it.
    gx1 = []
    gamma = [None]
    for t in range(T):
        slab = xdec_ref[t]                     # (B, V+H): [x_t | d_t*wd + bd]
        gx1.append(jnp.dot(slab[:, :V], w1x,
                           preferred_element_type=jnp.float32) + b1x)
        if t > 0:
            gamma.append(jnp.exp(-jnp.maximum(slab[:, V:], 0.0)))

    def fused_gru(h_in, h, w_in, w_h, bc):
        # Split-row fused matmul (no lane concat): columns [r_pre|z_pre|xn|hn]
        g = (jnp.dot(h_in, w_in, preferred_element_type=jnp.float32)
             + jnp.dot(h, w_h, preferred_element_type=jnp.float32) + bc)
        r = jax.nn.sigmoid(g[:, :H])
        z = jax.nn.sigmoid(g[:, H:2 * H])
        n = jnp.tanh(g[:, 2 * H:3 * H] + r * g[:, 3 * H:])
        return (1.0 - z) * n + z * h

    # ---- serial recurrence, fully unrolled (T static) ----------------------
    for t in range(T):
        if t > 0:   # no decay at t == 0 — resolved statically, no select
            gm = gamma[t]
            h1 = h1 * gm
            h2 = h2 * gm
            h3 = h3 * gm

        # GRU cell 1: input projection precomputed; one serialized matmul
        gx = gx1[t]
        gh = jnp.dot(h1, w1h, preferred_element_type=jnp.float32) + b1h
        r = jax.nn.sigmoid(gx[:, :H] + gh[:, :H])
        z = jax.nn.sigmoid(gx[:, H:2 * H] + gh[:, H:2 * H])
        n = jnp.tanh(gx[:, 2 * H:] + r * gh[:, 2 * H:])
        h1 = (1.0 - z) * n + z * h1

        # GRU cells 2 & 3: split-row fused matmuls (2 serialized pushes/step)
        h2 = fused_gru(h1, h2, w2i, w2h, b2c)
        h3 = fused_gru(h2, h3, w3i, w3h, b3c)

        # stash h3 for the deferred head (VMEM scratch; off the h chain)
        h3acc_ref[t * B:(t + 1) * B, :] = h3

    # ---- deferred output head + softmax: one matmul, one pass, one store ---
    h3_all = h3acc_ref[...]                                       # (T*B, H)
    logits = jnp.dot(h3_all, wo, preferred_element_type=jnp.float32) + bo
    m = jnp.max(logits, axis=-1, keepdims=True)
    e = jnp.exp(logits - m)
    s = jnp.sum(e, axis=-1, keepdims=True)
    inv = pl.reciprocal(s, approx=True)
    inv = inv * (2.0 - s * inv)          # one Newton step -> f32-accurate
    o_ref[...] = e * inv


# ----------------------------------------------------------------------------
# Wrapper: layout plumbing + one-time packing / fused-weight construction
# ----------------------------------------------------------------------------
def _fuse_cell_weights_split(wih_t, whh_t, bih, bhh, H):
    """Fused column layout [r_pre | z_pre | xn | hn], split into row blocks.

    w_in (rows = h_in dims): [Wih_r | Wih_z | Wih_n | 0   ]
    w_h  (rows = h dims)   : [Whh_r | Whh_z | 0     | Whh_n]
    bias                   : [b_ir+b_hr | b_iz+b_hz | b_in | b_hn]
    """
    z = jnp.zeros((H, H), jnp.float32)
    w_in = jnp.concatenate([wih_t[:, :2 * H], wih_t[:, 2 * H:], z], axis=1)
    w_h = jnp.concatenate([whh_t[:, :2 * H], z, whh_t[:, 2 * H:]], axis=1)
    bc = jnp.concatenate([bih[:, :2 * H] + bhh[:, :2 * H],
                          bih[:, 2 * H:], bhh[:, 2 * H:]], axis=1)
    return w_in, w_h, bc


def _pad_cols(a, width):
    return jnp.pad(a, ((0, 0), (0, width - a.shape[-1])))


@jax.jit
def model0_forward(x, d, params):
    """x: (B, T, V) float32, d: (B, T, 1) float32 -> (B, T, C) float32."""
    B, T, V = x.shape
    H = params["whh1_t"].shape[0]
    C = params["wo_t"].shape[1]
    wpad = max(4 * H, C)

    # -- pack the kernel inputs into 5 arrays (fewer, larger HBM->VMEM DMAs) -
    x_tm = jnp.transpose(x, (1, 0, 2)).astype(jnp.float32)            # (T,B,V)
    d_tm = jnp.transpose(d, (1, 0, 2)).astype(jnp.float32)            # (T,B,1)
    dec = d_tm * params["wd"] + params["bd"]       # decay pre-act (wd/bd folded)
    xdec = jnp.concatenate([x_tm, dec], axis=-1)                      # (T,B,V+H)

    h0 = jnp.stack([params["h0_1"], params["h0_2"], params["h0_3"]])  # (3,B,H)

    w1 = jnp.concatenate([params["wih1_t"], params["whh1_t"]], axis=0)  # (V+H,3H)

    w2i, w2h, b2c = _fuse_cell_weights_split(params["wih2_t"], params["whh2_t"],
                                             params["bih2"], params["bhh2"], H)
    w3i, w3h, b3c = _fuse_cell_weights_split(params["wih3_t"], params["whh3_t"],
                                             params["bih3"], params["bhh3"], H)
    wstack = jnp.stack([_pad_cols(w2i, wpad), _pad_cols(w2h, wpad),
                        _pad_cols(w3i, wpad), _pad_cols(w3h, wpad),
                        _pad_cols(params["wo_t"], wpad)])             # (5,H,wpad)

    biases = jnp.stack([
        _pad_cols(jnp.broadcast_to(params["bih1"], (B, 3 * H)), wpad),
        _pad_cols(jnp.broadcast_to(params["bhh1"], (B, 3 * H)), wpad),
        _pad_cols(jnp.broadcast_to(b2c, (B, 4 * H)), wpad),
        _pad_cols(jnp.broadcast_to(b3c, (B, 4 * H)), wpad),
        _pad_cols(jnp.broadcast_to(params["bo"], (B, C)), wpad),
    ])                                                                # (5,B,wpad)

    vmem = pl.BlockSpec(memory_space=pltpu.MemorySpace.VMEM)
    out_flat = pl.pallas_call(
        functools.partial(_rnn_kernel, seq_len=T, batch=B, hidden=H,
                          in_size=V, num_class=C),
        out_shape=jax.ShapeDtypeStruct((T * B, C), jnp.float32),
        in_specs=[vmem] * 5,
        out_specs=vmem,
        scratch_shapes=[pltpu.VMEM((T * B, H), jnp.float32)],
    )(xdec, h0, w1, wstack, biases)
    # TODO(synk): if B/T grow, add a batch grid axis with
    # dimension_semantics=("parallel",) so v7x's two TensorCores split B, and
    # stream T-chunks sized for v7x's 32 MiB scoped VMEM; pointless at toy sizes.
    return jnp.transpose(out_flat.reshape(T, B, C), (1, 0, 2))        # (B,T,C)


# ----------------------------------------------------------------------------
# Pure-JAX reference (PyTorch semantics) for verification
# ----------------------------------------------------------------------------
def _gru_cell(x_t, h, w_ih_t, w_hh_t, b_ih, b_hh, hidden):
    """PyTorch nn.GRUCell semantics (gate order r, z, n)."""
    gx = jnp.dot(x_t, w_ih_t) + b_ih
    gh = jnp.dot(h, w_hh_t) + b_hh
    xr, xz, xn = gx[:, :hidden], gx[:, hidden:2 * hidden], gx[:, 2 * hidden:]
    hr, hz, hn = gh[:, :hidden], gh[:, hidden:2 * hidden], gh[:, 2 * hidden:]
    r = jax.nn.sigmoid(xr + hr)
    z = jax.nn.sigmoid(xz + hz)
    n = jnp.tanh(xn + r * hn)
    return (1.0 - z) * n + z * h


def _ref_forward(x, d, p):
    B, T, V = x.shape
    H = p["whh1_t"].shape[0]
    h1, h2, h3 = p["h0_1"], p["h0_2"], p["h0_3"]
    ys = []
    for t in range(T):
        if t > 0:
            gamma = jnp.exp(-jax.nn.relu(d[:, t, :] * p["wd"] + p["bd"]))
            h1, h2, h3 = h1 * gamma, h2 * gamma, h3 * gamma
        h1 = _gru_cell(x[:, t, :], h1, p["wih1_t"], p["whh1_t"], p["bih1"], p["bhh1"], H)
        h2 = _gru_cell(h1, h2, p["wih2_t"], p["whh2_t"], p["bih2"], p["bhh2"], H)
        h3 = _gru_cell(h2, h3, p["wih3_t"], p["whh3_t"], p["bih3"], p["bhh3"], H)
        logits = jnp.dot(h3, p["wo_t"]) + p["bo"]
        ys.append(jax.nn.softmax(logits, axis=1))
    return jnp.stack(ys, axis=1)


def make_params(key, B, V, H, C):
    ks = jax.random.split(key, 32)
    i = iter(range(32))
    nrm = lambda shape, scale=0.1: (scale * jax.random.normal(ks[next(i)], shape)).astype(jnp.float32)
    return {
        # GRU cell 1 (V -> H), weights stored pre-transposed (in, 3H), order r,z,n
        "wih1_t": nrm((V, 3 * H)), "whh1_t": nrm((H, 3 * H)),
        "bih1": nrm((1, 3 * H)), "bhh1": nrm((1, 3 * H)),
        # GRU cell 2 (H -> H)
        "wih2_t": nrm((H, 3 * H)), "whh2_t": nrm((H, 3 * H)),
        "bih2": nrm((1, 3 * H)), "bhh2": nrm((1, 3 * H)),
        # GRU cell 3 (H -> H)
        "wih3_t": nrm((H, 3 * H)), "whh3_t": nrm((H, 3 * H)),
        "bih3": nrm((1, 3 * H)), "bhh3": nrm((1, 3 * H)),
        # output head Linear(H -> C)
        "wo_t": nrm((H, C)), "bo": nrm((1, C)),
        # decay Linear(1 -> H)
        "wd": nrm((1, H)), "bd": nrm((1, H)),
        # initial hidden states ~ N(0, 0.1) (the PyTorch forward samples these)
        "h0_1": nrm((B, H)), "h0_2": nrm((B, H)), "h0_3": nrm((B, H)),
    }


if __name__ == "__main__":
    B, T, V, H, C = 2, 8, 4, 32, 4  # batch, time, input_size, hidden_size, num_class

    key = jax.random.PRNGKey(0)
    kx, kd, kp = jax.random.split(key, 3)
    x = jax.random.normal(kx, (B, T, V), dtype=jnp.float32)
    d = jnp.abs(jax.random.normal(kd, (B, T, 1), dtype=jnp.float32))  # elapsed-time gaps
    params = make_params(kp, B, V, H, C)

    out = jax.block_until_ready(model0_forward(x, d, params))
    assert out.shape == (B, T, C), out.shape

    ref = jax.block_until_ready(_ref_forward(x, d, params))
    assert jnp.allclose(out, ref, atol=1e-5, rtol=1e-5), "mismatch vs reference"
    assert jnp.allclose(jnp.sum(out, axis=-1), 1.0, atol=1e-5)  # softmax rows sum to 1

    print("KERNEL_OK")
</pallas_src>

<mosaic_0001>
module attributes {stable_mosaic.version = 11 : i64} {
  func.func @_rnn_kernel(%arg0: memref<8x2x36xf32, #tpu.memory_space<vmem>>, %arg1: memref<3x2x32xf32, #tpu.memory_space<vmem>>, %arg2: memref<36x96xf32, #tpu.memory_space<vmem>>, %arg3: memref<5x32x128xf32, #tpu.memory_space<vmem>>, %arg4: memref<5x2x128xf32, #tpu.memory_space<vmem>>, %arg5: memref<16x4xf32, #tpu.memory_space<vmem>>, %arg6: memref<16x32xf32, #tpu.memory_space<vmem>>) attributes {dimension_semantics = [], scalar_prefetch = 0 : i64, scratch_operands = 1 : i64, tpu.core_type = #tpu.core_type<tc>} {
    %c0 = arith.constant 0 : index
    %c0_0 = arith.constant 0 : index
    %0 = vector.load %arg2[%c0, %c0_0] : memref<36x96xf32, #tpu.memory_space<vmem>>, vector<4x96xf32>
    %c4 = arith.constant 4 : index
    %c0_1 = arith.constant 0 : index
    %1 = vector.load %arg2[%c4, %c0_1] : memref<36x96xf32, #tpu.memory_space<vmem>>, vector<32x96xf32>
    %c0_2 = arith.constant 0 : index
    %c0_3 = arith.constant 0 : index
    %c0_4 = arith.constant 0 : index
    %2 = vector.load %arg3[%c0_2, %c0_3, %c0_4] : memref<5x32x128xf32, #tpu.memory_space<vmem>>, vector<1x32x128xf32>
    %3 = vector.shape_cast %2 : vector<1x32x128xf32> to vector<32x128xf32>
    %c1 = arith.constant 1 : index
    %c0_5 = arith.constant 0 : index
    %c0_6 = arith.constant 0 : index
    %4 = vector.load %arg3[%c1, %c0_5, %c0_6] : memref<5x32x128xf32, #tpu.memory_space<vmem>>, vector<1x32x128xf32>
    %5 = vector.shape_cast %4 : vector<1x32x128xf32> to vector<32x128xf32>
    %c2 = arith.constant 2 : index
    %c0_7 = arith.constant 0 : index
    %c0_8 = arith.constant 0 : index
    %6 = vector.load %arg3[%c2, %c0_7, %c0_8] : memref<5x32x128xf32, #tpu.memory_space<vmem>>, vector<1x32x128xf32>
    %7 = vector.shape_cast %6 : vector<1x32x128xf32> to vector<32x128xf32>
    %c3 = arith.constant 3 : index
    %c0_9 = arith.constant 0 : index
    %c0_10 = arith.constant 0 : index
    %8 = vector.load %arg3[%c3, %c0_9, %c0_10] : memref<5x32x128xf32, #tpu.memory_space<vmem>>, vector<1x32x128xf32>
    %9 = vector.shape_cast %8 : vector<1x32x128xf32> to vector<32x128xf32>
    %c4_11 = arith.constant 4 : index
    %c0_12 = arith.constant 0 : index
    %c0_13 = arith.constant 0 : index
    %10 = vector.load %arg3[%c4_11, %c0_12, %c0_13] : memref<5x32x128xf32, #tpu.memory_space<vmem>>, vector<1x32x128xf32>
    %11 = vector.shape_cast %10 : vector<1x32x128xf32> to vector<32x128xf32>
    %12 = vector.extract_strided_slice %11 {offsets = [0, 0], sizes = [32, 4], strides = [1, 1]} : vector<32x128xf32> to vector<32x4xf32>
    %c0_14 = arith.constant 0 : index
    %c0_15 = arith.constant 0 : index
    %c0_16 = arith.constant 0 : index
    %13 = vector.load %arg4[%c0_14, %c0_15, %c0_16] : memref<5x2x128xf32, #tpu.memory_space<vmem>>, vector<1x2x128xf32>
    %14 = vector.shape_cast %13 : vector<1x2x128xf32> to vector<2x128xf32>
    %15 = vector.extract_strided_slice %14 {offsets = [0, 0], sizes = [2, 96], strides = [1, 1]} : vector<2x128xf32> to vector<2x96xf32>
    %c1_17 = arith.constant 1 : index
    %c0_18 = arith.constant 0 : index
    %c0_19 = arith.constant 0 : index
    %16 = vector.load %arg4[%c1_17, %c0_18, %c0_19] : memref<5x2x128xf32, #tpu.memory_space<vmem>>, vector<1x2x128xf32>
    %17 = vector.shape_cast %16 : vector<1x2x128xf32> to vector<2x128xf32>
    %18 = vector.extract_strided_slice %17 {offsets = [0, 0], sizes = [2, 96], strides = [1, 1]} : vector<2x128xf32> to vector<2x96xf32>
    %c2_20 = arith.constant 2 : index
    %c0_21 = arith.constant 0 : index
    %c0_22 = arith.constant 0 : index
    %19 = vector.load %arg4[%c2_20, %c0_21, %c0_22] : memref<5x2x128xf32, #tpu.memory_space<vmem>>, vector<1x2x128xf32>
    %20 = vector.shape_cast %19 : vector<1x2x128xf32> to vector<2x128xf32>
    %c3_23 = arith.constant 3 : index
    %c0_24 = arith.constant 0 : index
    %c0_25 = arith.constant 0 : index
    %21 = vector.load %arg4[%c3_23, %c0_24, %c0_25] : memref<5x2x128xf32, #tpu.memory_space<vmem>>, vector<1x2x128xf32>
    %22 = vector.shape_cast %21 : vector<1x2x128xf32> to vector<2x128xf32>
    %c4_26 = arith.constant 4 : index
    %c0_27 = arith.constant 0 : index
    %c0_28 = arith.constant 0 : index
    %23 = vector.load %arg4[%c4_26, %c0_27, %c0_28] : memref<5x2x128xf32, #tpu.memory_space<vmem>>, vector<1x2x128xf32>
    %24 = vector.shape_cast %23 : vector<1x2x128xf32> to vector<2x128xf32>
    %25 = vector.extract_strided_slice %24 {offsets = [0, 0], sizes = [1, 4], strides = [1, 1]} : vector<2x128xf32> to vector<1x4xf32>
    %c0_29 = arith.constant 0 : index
    %c0_30 = arith.constant 0 : index
    %c0_31 = arith.constant 0 : index
    %26 = vector.load %arg1[%c0_29, %c0_30, %c0_31] : memref<3x2x32xf32, #tpu.memory_space<vmem>>, vector<1x2x32xf32>
    %27 = vector.shape_cast %26 : vector<1x2x32xf32> to vector<2x32xf32>
    %c1_32 = arith.constant 1 : index
    %c0_33 = arith.constant 0 : index
    %c0_34 = arith.constant 0 : index
    %28 = vector.load %arg1[%c1_32, %c0_33, %c0_34] : memref<3x2x32xf32, #tpu.memory_space<vmem>>, vector<1x2x32xf32>
    %29 = vector.shape_cast %28 : vector<1x2x32xf32> to vector<2x32xf32>
    %c2_35 = arith.constant 2 : index
    %c0_36 = arith.constant 0 : index
    %c0_37 = arith.constant 0 : index
    %30 = vector.load %arg1[%c2_35, %c0_36, %c0_37] : memref<3x2x32xf32, #tpu.memory_space<vmem>>, vector<1x2x32xf32>
    %31 = vector.shape_cast %30 : vector<1x2x32xf32> to vector<2x32xf32>
    %c0_38 = arith.constant 0 : index
    %c0_39 = arith.constant 0 : index
    %c0_40 = arith.constant 0 : index
    %32 = vector.load %arg0[%c0_38, %c0_39, %c0_40] : memref<8x2x36xf32, #tpu.memory_space<vmem>>, vector<1x2x36xf32>
    %33 = vector.shape_cast %32 : vector<1x2x36xf32> to vector<2x36xf32>
    %34 = vector.extract_strided_slice %33 {offsets = [0, 0], sizes = [2, 4], strides = [1, 1]} : vector<2x36xf32> to vector<2x4xf32>
    %cst = arith.constant dense<0.000000e+00> : vector<2x96xf32>
    %35 = tpu.matmul %34, %0, %cst {dimension_numbers = #tpu.dot_dimension_numbers<[1], [0], [0], [1], [0, 0, 1, 1], [], []>} : vector<2x4xf32>, vector<4x96xf32>, vector<2x96xf32> -> vector<2x96xf32>
    %36 = arith.addf %35, %15 : vector<2x96xf32>
    %c1_41 = arith.constant 1 : index
    %c0_42 = arith.constant 0 : index
    %c0_43 = arith.constant 0 : index
    %37 = vector.load %arg0[%c1_41, %c0_42, %c0_43] : memref<8x2x36xf32, #tpu.memory_space<vmem>>, vector<1x2x36xf32>
    %38 = vector.shape_cast %37 : vector<1x2x36xf32> to vector<2x36xf32>
    %39 = vector.extract_strided_slice %38 {offsets = [0, 0], sizes = [2, 4], strides = [1, 1]} : vector<2x36xf32> to vector<2x4xf32>
    %cst_44 = arith.constant dense<0.000000e+00> : vector<2x96xf32>
    %40 = tpu.matmul %39, %0, %cst_44 {dimension_numbers = #tpu.dot_dimension_numbers<[1], [0], [0], [1], [0, 0, 1, 1], [], []>} : vector<2x4xf32>, vector<4x96xf32>, vector<2x96xf32> -> vector<2x96xf32>
    %41 = arith.addf %40, %15 : vector<2x96xf32>
    %42 = vector.extract_strided_slice %38 {offsets = [0, 4], sizes = [2, 32], strides = [1, 1]} : vector<2x36xf32> to vector<2x32xf32>
    %cst_45 = arith.constant 0.000000e+00 : f32
    %43 = vector.broadcast %cst_45 : f32 to vector<2x32xf32>
    %44 = arith.maximumf %42, %43 : vector<2x32xf32>
    %cst_46 = arith.constant 0.000000e+00 : f32
    %45 = vector.broadcast %cst_46 : f32 to vector<2x32xf32>
    %46 = arith.subf %45, %44 : vector<2x32xf32>
    %47 = math.exp %46 : vector<2x32xf32>
    %c2_47 = arith.constant 2 : index
    %c0_48 = arith.constant 0 : index
    %c0_49 = arith.constant 0 : index
    %48 = vector.load %arg0[%c2_47, %c0_48, %c0_49] : memref<8x2x36xf32, #tpu.memory_space<vmem>>, vector<1x2x36xf32>
    %49 = vector.shape_cast %48 : vector<1x2x36xf32> to vector<2x36xf32>
    %50 = vector.extract_strided_slice %49 {offsets = [0, 0], sizes = [2, 4], strides = [1, 1]} : vector<2x36xf32> to vector<2x4xf32>
    %cst_50 = arith.constant dense<0.000000e+00> : vector<2x96xf32>
    %51 = tpu.matmul %50, %0, %cst_50 {dimension_numbers = #tpu.dot_dimension_numbers<[1], [0], [0], [1], [0, 0, 1, 1], [], []>} : vector<2x4xf32>, vector<4x96xf32>, vector<2x96xf32> -> vector<2x96xf32>
    %52 = arith.addf %51, %15 : vector<2x96xf32>
    %53 = vector.extract_strided_slice %49 {offsets = [0, 4], sizes = [2, 32], strides = [1, 1]} : vector<2x36xf32> to vector<2x32xf32>
    %cst_51 = arith.constant 0.000000e+00 : f32
    %54 = vector.broadcast %cst_51 : f32 to vector<2x32xf32>
    %55 = arith.maximumf %53, %54 : vector<2x32xf32>
    %cst_52 = arith.constant 0.000000e+00 : f32
    %56 = vector.broadcast %cst_52 : f32 to vector<2x32xf32>
    %57 = arith.subf %56, %55 : vector<2x32xf32>
    %58 = math.exp %57 : vector<2x32xf32>
    %c3_53 = arith.constant 3 : index
    %c0_54 = arith.constant 0 : index
    %c0_55 = arith.constant 0 : index
    %59 = vector.load %arg0[%c3_53, %c0_54, %c0_55] : memref<8x2x36xf32, #tpu.memory_space<vmem>>, vector<1x2x36xf32>
    %60 = vector.shape_cast %59 : vector<1x2x36xf32> to vector<2x36xf32>
    %61 = vector.extract_strided_slice %60 {offsets = [0, 0], sizes = [2, 4], strides = [1, 1]} : vector<2x36xf32> to vector<2x4xf32>
    %cst_56 = arith.constant dense<0.000000e+00> : vector<2x96xf32>
    %62 = tpu.matmul %61, %0, %cst_56 {dimension_numbers = #tpu.dot_dimension_numbers<[1], [0], [0], [1], [0, 0, 1, 1], [], []>} : vector<2x4xf32>, vector<4x96xf32>, vector<2x96xf32> -> vector<2x96xf32>
    %63 = arith.addf %62, %15 : vector<2x96xf32>
    %64 = vector.extract_strided_slice %60 {offsets = [0, 4], sizes = [2, 32], strides = [1, 1]} : vector<2x36xf32> to vector<2x32xf32>
    %cst_57 = arith.constant 0.000000e+00 : f32
    %65 = vector.broadcast %cst_57 : f32 to vector<2x32xf32>
    %66 = arith.maximumf %64, %65 : vector<2x32xf32>
    %cst_58 = arith.constant 0.000000e+00 : f32
    %67 = vector.broadcast %cst_58 : f32 to vector<2x32xf32>
    %68 = arith.subf %67, %66 : vector<2x32xf32>
    %69 = math.exp %68 : vector<2x32xf32>
    %c4_59 = arith.constant 4 : index
    %c0_60 = arith.constant 0 : index
    %c0_61 = arith.constant 0 : index
    %70 = vector.load %arg0[%c4_59, %c0_60, %c0_61] : memref<8x2x36xf32, #tpu.memory_space<vmem>>, vector<1x2x36xf32>
    %71 = vector.shape_cast %70 : vector<1x2x36xf32> to vector<2x36xf32>
    %72 = vector.extract_strided_slice %71 {offsets = [0, 0], sizes = [2, 4], strides = [1, 1]} : vector<2x36xf32> to vector<2x4xf32>
    %cst_62 = arith.constant dense<0.000000e+00> : vector<2x96xf32>
    %73 = tpu.matmul %72, %0, %cst_62 {dimension_numbers = #tpu.dot_dimension_numbers<[1], [0], [0], [1], [0, 0, 1, 1], [], []>} : vector<2x4xf32>, vector<4x96xf32>, vector<2x96xf32> -> vector<2x96xf32>
    %74 = arith.addf %73, %15 : vector<2x96xf32>
    %75 = vector.extract_strided_slice %71 {offsets = [0, 4], sizes = [2, 32], strides = [1, 1]} : vector<2x36xf32> to vector<2x32xf32>
    %cst_63 = arith.constant 0.000000e+00 : f32
    %76 = vector.broadcast %cst_63 : f32 to vector<2x32xf32>
    %77 = arith.maximumf %75, %76 : vector<2x32xf32>
    %cst_64 = arith.constant 0.000000e+00 : f32
    %78 = vector.broadcast %cst_64 : f32 to vector<2x32xf32>
    %79 = arith.subf %78, %77 : vector<2x32xf32>
    %80 = math.exp %79 : vector<2x32xf32>
    %c5 = arith.constant 5 : index
    %c0_65 = arith.constant 0 : index
    %c0_66 = arith.constant 0 : index
    %81 = vector.load %arg0[%c5, %c0_65, %c0_66] : memref<8x2x36xf32, #tpu.memory_space<vmem>>, vector<1x2x36xf32>
    %82 = vector.shape_cast %81 : vector<1x2x36xf32> to vector<2x36xf32>
    %83 = vector.extract_strided_slice %82 {offsets = [0, 0], sizes = [2, 4], strides = [1, 1]} : vector<2x36xf32> to vector<2x4xf32>
    %cst_67 = arith.constant dense<0.000000e+00> : vector<2x96xf32>
    %84 = tpu.matmul %83, %0, %cst_67 {dimension_numbers = #tpu.dot_dimension_numbers<[1], [0], [0], [1], [0, 0, 1, 1], [], []>} : vector<2x4xf32>, vector<4x96xf32>, vector<2x96xf32> -> vector<2x96xf32>
    %85 = arith.addf %84, %15 : vector<2x96xf32>
    %86 = vector.extract_strided_slice %82 {offsets = [0, 4], sizes = [2, 32], strides = [1, 1]} : vector<2x36xf32> to vector<2x32xf32>
    %cst_68 = arith.constant 0.000000e+00 : f32
    %87 = vector.broadcast %cst_68 : f32 to vector<2x32xf32>
    %88 = arith.maximumf %86, %87 : vector<2x32xf32>
    %cst_69 = arith.constant 0.000000e+00 : f32
    %89 = vector.broadcast %cst_69 : f32 to vector<2x32xf32>
    %90 = arith.subf %89, %88 : vector<2x32xf32>
    %91 = math.exp %90 : vector<2x32xf32>
    %c6 = arith.constant 6 : index
    %c0_70 = arith.constant 0 : index
    %c0_71 = arith.constant 0 : index
    %92 = vector.load %arg0[%c6, %c0_70, %c0_71] : memref<8x2x36xf32, #tpu.memory_space<vmem>>, vector<1x2x36xf32>
    %93 = vector.shape_cast %92 : vector<1x2x36xf32> to vector<2x36xf32>
    %94 = vector.extract_strided_slice %93 {offsets = [0, 0], sizes = [2, 4], strides = [1, 1]} : vector<2x36xf32> to vector<2x4xf32>
    %cst_72 = arith.constant dense<0.000000e+00> : vector<2x96xf32>
    %95 = tpu.matmul %94, %0, %cst_72 {dimension_numbers = #tpu.dot_dimension_numbers<[1], [0], [0], [1], [0, 0, 1, 1], [], []>} : vector<2x4xf32>, vector<4x96xf32>, vector<2x96xf32> -> vector<2x96xf32>
    %96 = arith.addf %95, %15 : vector<2x96xf32>
    %97 = vector.extract_strided_slice %93 {offsets = [0, 4], sizes = [2, 32], strides = [1, 1]} : vector<2x36xf32> to vector<2x32xf32>
    %cst_73 = arith.constant 0.000000e+00 : f32
    %98 = vector.broadcast %cst_73 : f32 to vector<2x32xf32>
    %99 = arith.maximumf %97, %98 : vector<2x32xf32>
    %cst_74 = arith.constant 0.000000e+00 : f32
    %100 = vector.broadcast %cst_74 : f32 to vector<2x32xf32>
    %101 = arith.subf %100, %99 : vector<2x32xf32>
    %102 = math.exp %101 : vector<2x32xf32>
    %c7 = arith.constant 7 : index
    %c0_75 = arith.constant 0 : index
    %c0_76 = arith.constant 0 : index
    %103 = vector.load %arg0[%c7, %c0_75, %c0_76] : memref<8x2x36xf32, #tpu.memory_space<vmem>>, vector<1x2x36xf32>
    %104 = vector.shape_cast %103 : vector<1x2x36xf32> to vector<2x36xf32>
    %105 = vector.extract_strided_slice %104 {offsets = [0, 0], sizes = [2, 4], strides = [1, 1]} : vector<2x36xf32> to vector<2x4xf32>
    %cst_77 = arith.constant dense<0.000000e+00> : vector<2x96xf32>
    %106 = tpu.matmul %105, %0, %cst_77 {dimension_numbers = #tpu.dot_dimension_numbers<[1], [0], [0], [1], [0, 0, 1, 1], [], []>} : vector<2x4xf32>, vector<4x96xf32>, vector<2x96xf32> -> vector<2x96xf32>
    %107 = arith.addf %106, %15 : vector<2x96xf32>
    %108 = vector.extract_strided_slice %104 {offsets = [0, 4], sizes = [2, 32], strides = [1, 1]} : vector<2x36xf32> to vector<2x32xf32>
    %cst_78 = arith.constant 0.000000e+00 : f32
    %109 = vector.broadcast %cst_78 : f32 to vector<2x32xf32>
    %110 = arith.maximumf %108, %109 : vector<2x32xf32>
    %cst_79 = arith.constant 0.000000e+00 : f32
    %111 = vector.broadcast %cst_79 : f32 to vector<2x32xf32>
    %112 = arith.subf %111, %110 : vector<2x32xf32>
    %113 = math.exp %112 : vector<2x32xf32>
    %cst_80 = arith.constant dense<0.000000e+00> : vector<2x96xf32>
    %114 = tpu.matmul %27, %1, %cst_80 {dimension_numbers = #tpu.dot_dimension_numbers<[1], [0], [0], [1], [0, 0, 1, 1], [], []>} : vector<2x32xf32>, vector<32x96xf32>, vector<2x96xf32> -> vector<2x96xf32>
    %115 = arith.addf %114, %18 : vector<2x96xf32>
    %116 = vector.extract_strided_slice %36 {offsets = [0, 0], sizes = [2, 32], strides = [1, 1]} : vector<2x96xf32> to vector<2x32xf32>
    %117 = vector.extract_strided_slice %115 {offsets = [0, 0], sizes = [2, 32], strides = [1, 1]} : vector<2x96xf32> to vector<2x32xf32>
    %118 = arith.addf %116, %117 : vector<2x32xf32>
    %119 = arith.negf %118 : vector<2x32xf32>
    %120 = math.exp %119 : vector<2x32xf32>
    %cst_81 = arith.constant 1.000000e+00 : f32
    %121 = vector.broadcast %cst_81 : f32 to vector<2x32xf32>
    %122 = arith.addf %121, %120 : vector<2x32xf32>
    %123 = arith.divf %121, %122 : vector<2x32xf32>
    %124 = vector.extract_strided_slice %36 {offsets = [0, 32], sizes = [2, 32], strides = [1, 1]} : vector<2x96xf32> to vector<2x32xf32>
    %125 = vector.extract_strided_slice %115 {offsets = [0, 32], sizes = [2, 32], strides = [1, 1]} : vector<2x96xf32> to vector<2x32xf32>
    %126 = arith.addf %124, %125 : vector<2x32xf32>
    %127 = arith.negf %126 : vector<2x32xf32>
    %128 = math.exp %127 : vector<2x32xf32>
    %cst_82 = arith.constant 1.000000e+00 : f32
    %129 = vector.broadcast %cst_82 : f32 to vector<2x32xf32>
    %130 = arith.addf %129, %128 : vector<2x32xf32>
    %131 = arith.divf %129, %130 : vector<2x32xf32>
    %132 = vector.extract_strided_slice %36 {offsets = [0, 64], sizes = [2, 32], strides = [1, 1]} : vector<2x96xf32> to vector<2x32xf32>
    %133 = vector.extract_strided_slice %115 {offsets = [0, 64], sizes = [2, 32], strides = [1, 1]} : vector<2x96xf32> to vector<2x32xf32>
    %134 = arith.mulf %123, %133 : vector<2x32xf32>
    %135 = arith.addf %132, %134 : vector<2x32xf32>
    %136 = math.tanh %135 : vector<2x32xf32>
    %cst_83 = arith.constant 1.000000e+00 : f32
    %137 = vector.broadcast %cst_83 : f32 to vector<2x32xf32>
    %138 = arith.subf %137, %131 : vector<2x32xf32>
    %139 = arith.mulf %138, %136 : vector<2x32xf32>
    %140 = arith.mulf %131, %27 : vector<2x32xf32>
    %141 = arith.addf %139, %140 : vector<2x32xf32>
    %cst_84 = arith.constant dense<0.000000e+00> : vector<2x128xf32>
    %142 = tpu.matmul %141, %3, %cst_84 {dimension_numbers = #tpu.dot_dimension_numbers<[1], [0], [0], [1], [0, 0, 1, 1], [], []>} : vector<2x32xf32>, vector<32x128xf32>, vector<2x128xf32> -> vector<2x128xf32>
    %cst_85 = arith.constant dense<0.000000e+00> : vector<2x128xf32>
    %143 = tpu.matmul %29, %5, %cst_85 {dimension_numbers = #tpu.dot_dimension_numbers<[1], [0], [0], [1], [0, 0, 1, 1], [], []>} : vector<2x32xf32>, vector<32x128xf32>, vector<2x128xf32> -> vector<2x128xf32>
    %144 = arith.addf %142, %143 : vector<2x128xf32>
    %145 = arith.addf %144, %20 : vector<2x128xf32>
    %146 = vector.extract_strided_slice %145 {offsets = [0, 0], sizes = [2, 32], strides = [1, 1]} : vector<2x128xf32> to vector<2x32xf32>
    %147 = arith.negf %146 : vector<2x32xf32>
    %148 = math.exp %147 : vector<2x32xf32>
    %cst_86 = arith.constant 1.000000e+00 : f32
    %149 = vector.broadcast %cst_86 : f32 to vector<2x32xf32>
    %150 = arith.addf %149, %148 : vector<2x32xf32>
    %151 = arith.divf %149, %150 : vector<2x32xf32>
    %152 = vector.extract_strided_slice %145 {offsets = [0, 32], sizes = [2, 32], strides = [1, 1]} : vector<2x128xf32> to vector<2x32xf32>
    %153 = arith.negf %152 : vector<2x32xf32>
    %154 = math.exp %153 : vector<2x32xf32>
    %cst_87 = arith.constant 1.000000e+00 : f32
    %155 = vector.broadcast %cst_87 : f32 to vector<2x32xf32>
    %156 = arith.addf %155, %154 : vector<2x32xf32>
    %157 = arith.divf %155, %156 : vector<2x32xf32>
    %158 = vector.extract_strided_slice %145 {offsets = [0, 64], sizes = [2, 32], strides = [1, 1]} : vector<2x128xf32> to vector<2x32xf32>
    %159 = vector.extract_strided_slice %145 {offsets = [0, 96], sizes = [2, 32], strides = [1, 1]} : vector<2x128xf32> to vector<2x32xf32>
    %160 = arith.mulf %151, %159 : vector<2x32xf32>
    %161 = arith.addf %158, %160 : vector<2x32xf32>
    %162 = math.tanh %161 : vector<2x32xf32>
    %cst_88 = arith.constant 1.000000e+00 : f32
    %163 = vector.broadcast %cst_88 : f32 to vector<2x32xf32>
    %164 = arith.subf %163, %157 : vector<2x32xf32>
    %165 = arith.mulf %164, %162 : vector<2x32xf32>
    %166 = arith.mulf %157, %29 : vector<2x32xf32>
    %167 = arith.addf %165, %166 : vector<2x32xf32>
    %cst_89 = arith.constant dense<0.000000e+00> : vector<2x128xf32>
    %168 = tpu.matmul %167, %7, %cst_89 {dimension_numbers = #tpu.dot_dimension_numbers<[1], [0], [0], [1], [0, 0, 1, 1], [], []>} : vector<2x32xf32>, vector<32x128xf32>, vector<2x128xf32> -> vector<2x128xf32>
    %cst_90 = arith.constant dense<0.000000e+00> : vector<2x128xf32>
    %169 = tpu.matmul %31, %9, %cst_90 {dimension_numbers = #tpu.dot_dimension_numbers<[1], [0], [0], [1], [0, 0, 1, 1], [], []>} : vector<2x32xf32>, vector<32x128xf32>, vector<2x128xf32> -> vector<2x128xf32>
    %170 = arith.addf %168, %169 : vector<2x128xf32>
    %171 = arith.addf %170, %22 : vector<2x128xf32>
    %172 = vector.extract_strided_slice %171 {offsets = [0, 0], sizes = [2, 32], strides = [1, 1]} : vector<2x128xf32> to vector<2x32xf32>
    %173 = arith.negf %172 : vector<2x32xf32>
    %174 = math.exp %173 : vector<2x32xf32>
    %cst_91 = arith.constant 1.000000e+00 : f32
    %175 = vector.broadcast %cst_91 : f32 to vector<2x32xf32>
    %176 = arith.addf %175, %174 : vector<2x32xf32>
    %177 = arith.divf %175, %176 : vector<2x32xf32>
    %178 = vector.extract_strided_slice %171 {offsets = [0, 32], sizes = [2, 32], strides = [1, 1]} : vector<2x128xf32> to vector<2x32xf32>
    %179 = arith.negf %178 : vector<2x32xf32>
    %180 = math.exp %179 : vector<2x32xf32>
    %cst_92 = arith.constant 1.000000e+00 : f32
    %181 = vector.broadcast %cst_92 : f32 to vector<2x32xf32>
    %182 = arith.addf %181, %180 : vector<2x32xf32>
    %183 = arith.divf %181, %182 : vector<2x32xf32>
    %184 = vector.extract_strided_slice %171 {offsets = [0, 64], sizes = [2, 32], strides = [1, 1]} : vector<2x128xf32> to vector<2x32xf32>
    %185 = vector.extract_strided_slice %171 {offsets = [0, 96], sizes = [2, 32], strides = [1, 1]} : vector<2x128xf32> to vector<2x32xf32>
    %186 = arith.mulf %177, %185 : vector<2x32xf32>
    %187 = arith.addf %184, %186 : vector<2x32xf32>
    %188 = math.tanh %187 : vector<2x32xf32>
    %cst_93 = arith.constant 1.000000e+00 : f32
    %189 = vector.broadcast %cst_93 : f32 to vector<2x32xf32>
    %190 = arith.subf %189, %183 : vector<2x32xf32>
    %191 = arith.mulf %190, %188 : vector<2x32xf32>
    %192 = arith.mulf %183, %31 : vector<2x32xf32>
    %193 = arith.addf %191, %192 : vector<2x32xf32>
    %c0_94 = arith.constant 0 : index
    %c0_95 = arith.constant 0 : index
    %194 = vector.load %arg6[%c0_94, %c0_95] : memref<16x32xf32, #tpu.memory_space<vmem>>, vector<2x32xf32>
    tpu.vector_store %arg6[%c0_94, %c0_95], %193 {strides = array<i32>} : memref<16x32xf32, #tpu.memory_space<vmem>>, vector<2x32xf32>,
    %195 = arith.mulf %141, %47 : vector<2x32xf32>
    %196 = arith.mulf %167, %47 : vector<2x32xf32>
    %197 = arith.mulf %193, %47 : vector<2x32xf32>
    %cst_96 = arith.constant dense<0.000000e+00> : vector<2x96xf32>
    %198 = tpu.matmul %195, %1, %cst_96 {dimension_numbers = #tpu.dot_dimension_numbers<[1], [0], [0], [1], [0, 0, 1, 1], [], []>} : vector<2x32xf32>, vector<32x96xf32>, vector<2x96xf32> -> vector<2x96xf32>
    %199 = arith.addf %198, %18 : vector<2x96xf32>
    %200 = vector.extract_strided_slice %41 {offsets = [0, 0], sizes = [2, 32], strides = [1, 1]} : vector<2x96xf32> to vector<2x32xf32>
    %201 = vector.extract_strided_slice %199 {offsets = [0, 0], sizes = [2, 32], strides = [1, 1]} : vector<2x96xf32> to vector<2x32xf32>
    %202 = arith.addf %200, %201 : vector<2x32xf32>
    %203 = arith.negf %202 : vector<2x32xf32>
    %204 = math.exp %203 : vector<2x32xf32>
    %cst_97 = arith.constant 1.000000e+00 : f32
    %205 = vector.broadcast %cst_97 : f32 to vector<2x32xf32>
    %206 = arith.addf %205, %204 : vector<2x32xf32>
    %207 = arith.divf %205, %206 : vector<2x32xf32>
    %208 = vector.extract_strided_slice %41 {offsets = [0, 32], sizes = [2, 32], strides = [1, 1]} : vector<2x96xf32> to vector<2x32xf32>
    %209 = vector.extract_strided_slice %199 {offsets = [0, 32], sizes = [2, 32], strides = [1, 1]} : vector<2x96xf32> to vector<2x32xf32>
    %210 = arith.addf %208, %209 : vector<2x32xf32>
    %211 = arith.negf %210 : vector<2x32xf32>
    %212 = math.exp %211 : vector<2x32xf32>
    %cst_98 = arith.constant 1.000000e+00 : f32
    %213 = vector.broadcast %cst_98 : f32 to vector<2x32xf32>
    %214 = arith.addf %213, %212 : vector<2x32xf32>
    %215 = arith.divf %213, %214 : vector<2x32xf32>
    %216 = vector.extract_strided_slice %41 {offsets = [0, 64], sizes = [2, 32], strides = [1, 1]} : vector<2x96xf32> to vector<2x32xf32>
    %217 = vector.extract_strided_slice %199 {offsets = [0, 64], sizes = [2, 32], strides = [1, 1]} : vector<2x96xf32> to vector<2x32xf32>
    %218 = arith.mulf %207, %217 : vector<2x32xf32>
    %219 = arith.addf %216, %218 : vector<2x32xf32>
    %220 = math.tanh %219 : vector<2x32xf32>
    %cst_99 = arith.constant 1.000000e+00 : f32
    %221 = vector.broadcast %cst_99 : f32 to vector<2x32xf32>
    %222 = arith.subf %221, %215 : vector<2x32xf32>
    %223 = arith.mulf %222, %220 : vector<2x32xf32>
    %224 = arith.mulf %215, %195 : vector<2x32xf32>
    %225 = arith.addf %223, %224 : vector<2x32xf32>
    %cst_100 = arith.constant dense<0.000000e+00> : vector<2x128xf32>
    %226 = tpu.matmul %225, %3, %cst_100 {dimension_numbers = #tpu.dot_dimension_numbers<[1], [0], [0], [1], [0, 0, 1, 1], [], []>} : vector<2x32xf32>, vector<32x128xf32>, vector<2x128xf32> -> vector<2x128xf32>
    %cst_101 = arith.constant dense<0.000000e+00> : vector<2x128xf32>
    %227 = tpu.matmul %196, %5, %cst_101 {dimension_numbers = #tpu.dot_dimension_numbers<[1], [0], [0], [1], [0, 0, 1, 1], [], []>} : vector<2x32xf32>, vector<32x128xf32>, vector<2x128xf32> -> vector<2x128xf32>
    %228 = arith.addf %226, %227 : vector<2x128xf32>
    %229 = arith.addf %228, %20 : vector<2x128xf32>
    %230 = vector.extract_strided_slice %229 {offsets = [0, 0], sizes = [2, 32], strides = [1, 1]} : vector<2x128xf32> to vector<2x32xf32>
    %231 = arith.negf %230 : vector<2x32xf32>
    %232 = math.exp %231 : vector<2x32xf32>
    %cst_102 = arith.constant 1.000000e+00 : f32
    %233 = vector.broadcast %cst_102 : f32 to vector<2x32xf32>
    %234 = arith.addf %233, %232 : vector<2x32xf32>
    %235 = arith.divf %233, %234 : vector<2x32xf32>
    %236 = vector.extract_strided_slice %229 {offsets = [0, 32], sizes = [2, 32], strides = [1, 1]} : vector<2x128xf32> to vector<2x32xf32>
    %237 = arith.negf %236 : vector<2x32xf32>
    %238 = math.exp %237 : vector<2x32xf32>
    %cst_103 = arith.constant 1.000000e+00 : f32
    %239 = vector.broadcast %cst_103 : f32 to vector<2x32xf32>
    %240 = arith.addf %239, %238 : vector<2x32xf32>
    %241 = arith.divf %239, %240 : vector<2x32xf32>
    %242 = vector.extract_strided_slice %229 {offsets = [0, 64], sizes = [2, 32], strides = [1, 1]} : vector<2x128xf32> to vector<2x32xf32>
    %243 = vector.extract_strided_slice %229 {offsets = [0, 96], sizes = [2, 32], strides = [1, 1]} : vector<2x128xf32> to vector<2x32xf32>
    %244 = arith.mulf %235, %243 : vector<2x32xf32>
    %245 = arith.addf %242, %244 : vector<2x32xf32>
    %246 = math.tanh %245 : vector<2x32xf32>
    %cst_104 = arith.constant 1.000000e+00 : f32
    %247 = vector.broadcast %cst_104 : f32 to vector<2x32xf32>
    %248 = arith.subf %247, %241 : vector<2x32xf32>
    %249 = arith.mulf %248, %246 : vector<2x32xf32>
    %250 = arith.mulf %241, %196 : vector<2x32xf32>
    %251 = arith.addf %249, %250 : vector<2x32xf32>
    %cst_105 = arith.constant dense<0.000000e+00> : vector<2x128xf32>
    %252 = tpu.matmul %251, %7, %cst_105 {dimension_numbers = #tpu.dot_dimension_numbers<[1], [0], [0], [1], [0, 0, 1, 1], [], []>} : vector<2x32xf32>, vector<32x128xf32>, vector<2x128xf32> -> vector<2x128xf32>
    %cst_106 = arith.constant dense<0.000000e+00> : vector<2x128xf32>
    %253 = tpu.matmul %197, %9, %cst_106 {dimension_numbers = #tpu.dot_dimension_numbers<[1], [0], [0], [1], [0, 0, 1, 1], [], []>} : vector<2x32xf32>, vector<32x128xf32>, vector<2x128xf32> -> vector<2x128xf32>
    %254 = arith.addf %252, %253 : vector<2x128xf32>
    %255 = arith.addf %254, %22 : vector<2x128xf32>
    %256 = vector.extract_strided_slice %255 {offsets = [0, 0], sizes = [2, 32], strides = [1, 1]} : vector<2x128xf32> to vector<2x32xf32>
    %257 = arith.negf %256 : vector<2x32xf32>
    %258 = math.exp %257 : vector<2x32xf32>
    %cst_107 = arith.constant 1.000000e+00 : f32
    %259 = vector.broadcast %cst_107 : f32 to vector<2x32xf32>
    %260 = arith.addf %259, %258 : vector<2x32xf32>
    %261 = arith.divf %259, %260 : vector<2x32xf32>
    %262 = vector.extract_strided_slice %255 {offsets = [0, 32], sizes = [2, 32], strides = [1, 1]} : vector<2x128xf32> to vector<2x32xf32>
    %263 = arith.negf %262 : vector<2x32xf32>
    %264 = math.exp %263 : vector<2x32xf32>
    %cst_108 = arith.constant 1.000000e+00 : f32
    %265 = vector.broadcast %cst_108 : f32 to vector<2x32xf32>
    %266 = arith.addf %265, %264 : vector<2x32xf32>
    %267 = arith.divf %265, %266 : vector<2x32xf32>
    %268 = vector.extract_strided_slice %255 {offsets = [0, 64], sizes = [2, 32], strides = [1, 1]} : vector<2x128xf32> to vector<2x32xf32>
    %269 = vector.extract_strided_slice %255 {offsets = [0, 96], sizes = [2, 32], strides = [1, 1]} : vector<2x128xf32> to vector<2x32xf32>
    %270 = arith.mulf %261, %269 : vector<2x32xf32>
    %271 = arith.addf %268, %270 : vector<2x32xf32>
    %272 = math.tanh %271 : vector<2x32xf32>
    %cst_109 = arith.constant 1.000000e+00 : f32
    %273 = vector.broadcast %cst_109 : f32 to vector<2x32xf32>
    %274 = arith.subf %273, %267 : vector<2x32xf32>
    %275 = arith.mulf %274, %272 : vector<2x32xf32>
    %276 = arith.mulf %267, %197 : vector<2x32xf32>
    %277 = arith.addf %275, %276 : vector<2x32xf32>
    %c2_110 = arith.constant 2 : index
    %c0_111 = arith.constant 0 : index
    %278 = vector.load %arg6[%c2_110, %c0_111] : memref<16x32xf32, #tpu.memory_space<vmem>>, vector<2x32xf32>
    tpu.vector_store %arg6[%c2_110, %c0_111], %277 {strides = array<i32>} : memref<16x32xf32, #tpu.memory_space<vmem>>, vector<2x32xf32>,
    %279 = arith.mulf %225, %58 : vector<2x32xf32>
    %280 = arith.mulf %251, %58 : vector<2x32xf32>
    %281 = arith.mulf %277, %58 : vector<2x32xf32>
    %cst_112 = arith.constant dense<0.000000e+00> : vector<2x96xf32>
    %282 = tpu.matmul %279, %1, %cst_112 {dimension_numbers = #tpu.dot_dimension_numbers<[1], [0], [0], [1], [0, 0, 1, 1], [], []>} : vector<2x32xf32>, vector<32x96xf32>, vector<2x96xf32> -> vector<2x96xf32>
    %283 = arith.addf %282, %18 : vector<2x96xf32>
    %284 = vector.extract_strided_slice %52 {offsets = [0, 0], sizes = [2, 32], strides = [1, 1]} : vector<2x96xf32> to vector<2x32xf32>
    %285 = vector.extract_strided_slice %283 {offsets = [0, 0], sizes = [2, 32], strides = [1, 1]} : vector<2x96xf32> to vector<2x32xf32>
    %286 = arith.addf %284, %285 : vector<2x32xf32>
    %287 = arith.negf %286 : vector<2x32xf32>
    %288 = math.exp %287 : vector<2x32xf32>
    %cst_113 = arith.constant 1.000000e+00 : f32
    %289 = vector.broadcast %cst_113 : f32 to vector<2x32xf32>
    %290 = arith.addf %289, %288 : vector<2x32xf32>
    %291 = arith.divf %289, %290 : vector<2x32xf32>
    %292 = vector.extract_strided_slice %52 {offsets = [0, 32], sizes = [2, 32], strides = [1, 1]} : vector<2x96xf32> to vector<2x32xf32>
    %293 = vector.extract_strided_slice %283 {offsets = [0, 32], sizes = [2, 32], strides = [1, 1]} : vector<2x96xf32> to vector<2x32xf32>
    %294 = arith.addf %292, %293 : vector<2x32xf32>
    %295 = arith.negf %294 : vector<2x32xf32>
    %296 = math.exp %295 : vector<2x32xf32>
    %cst_114 = arith.constant 1.000000e+00 : f32
    %297 = vector.broadcast %cst_114 : f32 to vector<2x32xf32>
    %298 = arith.addf %297, %296 : vector<2x32xf32>
    %299 = arith.divf %297, %298 : vector<2x32xf32>
    %300 = vector.extract_strided_slice %52 {offsets = [0, 64], sizes = [2, 32], strides = [1, 1]} : vector<2x96xf32> to vector<2x32xf32>
    %301 = vector.extract_strided_slice %283 {offsets = [0, 64], sizes = [2, 32], strides = [1, 1]} : vector<2x96xf32> to vector<2x32xf32>
    %302 = arith.mulf %291, %301 : vector<2x32xf32>
    %303 = arith.addf %300, %302 : vector<2x32xf32>
    %304 = math.tanh %303 : vector<2x32xf32>
    %cst_115 = arith.constant 1.000000e+00 : f32
    %305 = vector.broadcast %cst_115 : f32 to vector<2x32xf32>
    %306 = arith.subf %305, %299 : vector<2x32xf32>
    %307 = arith.mulf %306, %304 : vector<2x32xf32>
    %308 = arith.mulf %299, %279 : vector<2x32xf32>
    %309 = arith.addf %307, %308 : vector<2x32xf32>
    %cst_116 = arith.constant dense<0.000000e+00> : vector<2x128xf32>
    %310 = tpu.matmul %309, %3, %cst_116 {dimension_numbers = #tpu.dot_dimension_numbers<[1], [0], [0], [1], [0, 0, 1, 1], [], []>} : vector<2x32xf32>, vector<32x128xf32>, vector<2x128xf32> -> vector<2x128xf32>
    %cst_117 = arith.constant dense<0.000000e+00> : vector<2x128xf32>
    %311 = tpu.matmul %280, %5, %cst_117 {dimension_numbers = #tpu.dot_dimension_numbers<[1], [0], [0], [1], [0, 0, 1, 1], [], []>} : vector<2x32xf32>, vector<32x128xf32>, vector<2x128xf32> -> vector<2x128xf32>
    %312 = arith.addf %310, %311 : vector<2x128xf32>
    %313 = arith.addf %312, %20 : vector<2x128xf32>
    %314 = vector.extract_strided_slice %313 {offsets = [0, 0], sizes = [2, 32], strides = [1, 1]} : vector<2x128xf32> to vector<2x32xf32>
    %315 = arith.negf %314 : vector<2x32xf32>
    %316 = math.exp %315 : vector<2x32xf32>
    %cst_118 = arith.constant 1.000000e+00 : f32
    %317 = vector.broadcast %cst_118 : f32 to vector<2x32xf32>
    %318 = arith.addf %317, %316 : vector<2x32xf32>
    %319 = arith.divf %317, %318 : vector<2x32xf32>
    %320 = vector.extract_strided_slice %313 {offsets = [0, 32], sizes = [2, 32], strides = [1, 1]} : vector<2x128xf32> to vector<2x32xf32>
    %321 = arith.negf %320 : vector<2x32xf32>
    %322 = math.exp %321 : vector<2x32xf32>
    %cst_119 = arith.constant 1.000000e+00 : f32
    %323 = vector.broadcast %cst_119 : f32 to vector<2x32xf32>
    %324 = arith.addf %323, %322 : vector<2x32xf32>
    %325 = arith.divf %323, %324 : vector<2x32xf32>
    %326 = vector.extract_strided_slice %313 {offsets = [0, 64], sizes = [2, 32], strides = [1, 1]} : vector<2x128xf32> to vector<2x32xf32>
    %327 = vector.extract_strided_slice %313 {offsets = [0, 96], sizes = [2, 32], strides = [1, 1]} : vector<2x128xf32> to vector<2x32xf32>
    %328 = arith.mulf %319, %327 : vector<2x32xf32>
    %329 = arith.addf %326, %328 : vector<2x32xf32>
    %330 = math.tanh %329 : vector<2x32xf32>
    %cst_120 = arith.constant 1.000000e+00 : f32
    %331 = vector.broadcast %cst_120 : f32 to vector<2x32xf32>
    %332 = arith.subf %331, %325 : vector<2x32xf32>
    %333 = arith.mulf %332, %330 : vector<2x32xf32>
    %334 = arith.mulf %325, %280 : vector<2x32xf32>
    %335 = arith.addf %333, %334 : vector<2x32xf32>
    %cst_121 = arith.constant dense<0.000000e+00> : vector<2x128xf32>
    %336 = tpu.matmul %335, %7, %cst_121 {dimension_numbers = #tpu.dot_dimension_numbers<[1], [0], [0], [1], [0, 0, 1, 1], [], []>} : vector<2x32xf32>, vector<32x128xf32>, vector<2x128xf32> -> vector<2x128xf32>
    %cst_122 = arith.constant dense<0.000000e+00> : vector<2x128xf32>
    %337 = tpu.matmul %281, %9, %cst_122 {dimension_numbers = #tpu.dot_dimension_numbers<[1], [0], [0], [1], [0, 0, 1, 1], [], []>} : vector<2x32xf32>, vector<32x128xf32>, vector<2x128xf32> -> vector<2x128xf32>
    %338 = arith.addf %336, %337 : vector<2x128xf32>
    %339 = arith.addf %338, %22 : vector<2x128xf32>
    %340 = vector.extract_strided_slice %339 {offsets = [0, 0], sizes = [2, 32], strides = [1, 1]} : vector<2x128xf32> to vector<2x32xf32>
    %341 = arith.negf %340 : vector<2x32xf32>
    %342 = math.exp %341 : vector<2x32xf32>
    %cst_123 = arith.constant 1.000000e+00 : f32
    %343 = vector.broadcast %cst_123 : f32 to vector<2x32xf32>
    %344 = arith.addf %343, %342 : vector<2x32xf32>
    %345 = arith.divf %343, %344 : vector<2x32xf32>
    %346 = vector.extract_strided_slice %339 {offsets = [0, 32], sizes = [2, 32], strides = [1, 1]} : vector<2x128xf32> to vector<2x32xf32>
    %347 = arith.negf %346 : vector<2x32xf32>
    %348 = math.exp %347 : vector<2x32xf32>
    %cst_124 = arith.constant 1.000000e+00 : f32
    %349 = vector.broadcast %cst_124 : f32 to vector<2x32xf32>
    %350 = arith.addf %349, %348 : vector<2x32xf32>
    %351 = arith.divf %349, %350 : vector<2x32xf32>
    %352 = vector.extract_strided_slice %339 {offsets = [0, 64], sizes = [2, 32], strides = [1, 1]} : vector<2x128xf32> to vector<2x32xf32>
    %353 = vector.extract_strided_slice %339 {offsets = [0, 96], sizes = [2, 32], strides = [1, 1]} : vector<2x128xf32> to vector<2x32xf32>
    %354 = arith.mulf %345, %353 : vector<2x32xf32>
    %355 = arith.addf %352, %354 : vector<2x32xf32>
    %356 = math.tanh %355 : vector<2x32xf32>
    %cst_125 = arith.constant 1.000000e+00 : f32
    %357 = vector.broadcast %cst_125 : f32 to vector<2x32xf32>
    %358 = arith.subf %357, %351 : vector<2x32xf32>
    %359 = arith.mulf %358, %356 : vector<2x32xf32>
    %360 = arith.mulf %351, %281 : vector<2x32xf32>
    %361 = arith.addf %359, %360 : vector<2x32xf32>
    %c4_126 = arith.constant 4 : index
    %c0_127 = arith.constant 0 : index
    %362 = vector.load %arg6[%c4_126, %c0_127] : memref<16x32xf32, #tpu.memory_space<vmem>>, vector<2x32xf32>
    tpu.vector_store %arg6[%c4_126, %c0_127], %361 {strides = array<i32>} : memref<16x32xf32, #tpu.memory_space<vmem>>, vector<2x32xf32>,
    %363 = arith.mulf %309, %69 : vector<2x32xf32>
    %364 = arith.mulf %335, %69 : vector<2x32xf32>
    %365 = arith.mulf %361, %69 : vector<2x32xf32>
    %cst_128 = arith.constant dense<0.000000e+00> : vector<2x96xf32>
    %366 = tpu.matmul %363, %1, %cst_128 {dimension_numbers = #tpu.dot_dimension_numbers<[1], [0], [0], [1], [0, 0, 1, 1], [], []>} : vector<2x32xf32>, vector<32x96xf32>, vector<2x96xf32> -> vector<2x96xf32>
    %367 = arith.addf %366, %18 : vector<2x96xf32>
    %368 = vector.extract_strided_slice %63 {offsets = [0, 0], sizes = [2, 32], strides = [1, 1]} : vector<2x96xf32> to vector<2x32xf32>
    %369 = vector.extract_strided_slice %367 {offsets = [0, 0], sizes = [2, 32], strides = [1, 1]} : vector<2x96xf32> to vector<2x32xf32>
    %370 = arith.addf %368, %369 : vector<2x32xf32>
    %371 = arith.negf %370 : vector<2x32xf32>
    %372 = math.exp %371 : vector<2x32xf32>
    %cst_129 = arith.constant 1.000000e+00 : f32
    %373 = vector.broadcast %cst_129 : f32 to vector<2x32xf32>
    %374 = arith.addf %373, %372 : vector<2x32xf32>
    %375 = arith.divf %373, %374 : vector<2x32xf32>
    %376 = vector.extract_strided_slice %63 {offsets = [0, 32], sizes = [2, 32], strides = [1, 1]} : vector<2x96xf32> to vector<2x32xf32>
    %377 = vector.extract_strided_slice %367 {offsets = [0, 32], sizes = [2, 32], strides = [1, 1]} : vector<2x96xf32> to vector<2x32xf32>
    %378 = arith.addf %376, %377 : vector<2x32xf32>
    %379 = arith.negf %378 : vector<2x32xf32>
    %380 = math.exp %379 : vector<2x32xf32>
    %cst_130 = arith.constant 1.000000e+00 : f32
    %381 = vector.broadcast %cst_130 : f32 to vector<2x32xf32>
    %382 = arith.addf %381, %380 : vector<2x32xf32>
    %383 = arith.divf %381, %382 : vector<2x32xf32>
    %384 = vector.extract_strided_slice %63 {offsets = [0, 64], sizes = [2, 32], strides = [1, 1]} : vector<2x96xf32> to vector<2x32xf32>
    %385 = vector.extract_strided_slice %367 {offsets = [0, 64], sizes = [2, 32], strides = [1, 1]} : vector<2x96xf32> to vector<2x32xf32>
    %386 = arith.mulf %375, %385 : vector<2x32xf32>
    %387 = arith.addf %384, %386 : vector<2x32xf32>
    %388 = math.tanh %387 : vector<2x32xf32>
    %cst_131 = arith.constant 1.000000e+00 : f32
    %389 = vector.broadcast %cst_131 : f32 to vector<2x32xf32>
    %390 = arith.subf %389, %383 : vector<2x32xf32>
    %391 = arith.mulf %390, %388 : vector<2x32xf32>
    %392 = arith.mulf %383, %363 : vector<2x32xf32>
    %393 = arith.addf %391, %392 : vector<2x32xf32>
    %cst_132 = arith.constant dense<0.000000e+00> : vector<2x128xf32>
    %394 = tpu.matmul %393, %3, %cst_132 {dimension_numbers = #tpu.dot_dimension_numbers<[1], [0], [0], [1], [0, 0, 1, 1], [], []>} : vector<2x32xf32>, vector<32x128xf32>, vector<2x128xf32> -> vector<2x128xf32>
    %cst_133 = arith.constant dense<0.000000e+00> : vector<2x128xf32>
    %395 = tpu.matmul %364, %5, %cst_133 {dimension_numbers = #tpu.dot_dimension_numbers<[1], [0], [0], [1], [0, 0, 1, 1], [], []>} : vector<2x32xf32>, vector<32x128xf32>, vector<2x128xf32> -> vector<2x128xf32>
    %396 = arith.addf %394, %395 : vector<2x128xf32>
    %397 = arith.addf %396, %20 : vector<2x128xf32>
    %398 = vector.extract_strided_slice %397 {offsets = [0, 0], sizes = [2, 32], strides = [1, 1]} : vector<2x128xf32> to vector<2x32xf32>
    %399 = arith.negf %398 : vector<2x32xf32>
    %400 = math.exp %399 : vector<2x32xf32>
    %cst_134 = arith.constant 1.000000e+00 : f32
    %401 = vector.broadcast %cst_134 : f32 to vector<2x32xf32>
    %402 = arith.addf %401, %400 : vector<2x32xf32>
    %403 = arith.divf %401, %402 : vector<2x32xf32>
    %404 = vector.extract_strided_slice %397 {offsets = [0, 32], sizes = [2, 32], strides = [1, 1]} : vector<2x128xf32> to vector<2x32xf32>
    %405 = arith.negf %404 : vector<2x32xf32>
    %406 = math.exp %405 : vector<2x32xf32>
    %cst_135 = arith.constant 1.000000e+00 : f32
    %407 = vector.broadcast %cst_135 : f32 to vector<2x32xf32>
    %408 = arith.addf %407, %406 : vector<2x32xf32>
    %409 = arith.divf %407, %408 : vector<2x32xf32>
    %410 = vector.extract_strided_slice %397 {offsets = [0, 64], sizes = [2, 32], strides = [1, 1]} : vector<2x128xf32> to vector<2x32xf32>
    %411 = vector.extract_strided_slice %397 {offsets = [0, 96], sizes = [2, 32], strides = [1, 1]} : vector<2x128xf32> to vector<2x32xf32>
    %412 = arith.mulf %403, %411 : vector<2x32xf32>
    %413 = arith.addf %410, %412 : vector<2x32xf32>
    %414 = math.tanh %413 : vector<2x32xf32>
    %cst_136 = arith.constant 1.000000e+00 : f32
    %415 = vector.broadcast %cst_136 : f32 to vector<2x32xf32>
    %416 = arith.subf %415, %409 : vector<2x32xf32>
    %417 = arith.mulf %416, %414 : vector<2x32xf32>
    %418 = arith.mulf %409, %364 : vector<2x32xf32>
    %419 = arith.addf %417, %418 : vector<2x32xf32>
    %cst_137 = arith.constant dense<0.000000e+00> : vector<2x128xf32>
    %420 = tpu.matmul %419, %7, %cst_137 {dimension_numbers = #tpu.dot_dimension_numbers<[1], [0], [0], [1], [0, 0, 1, 1], [], []>} : vector<2x32xf32>, vector<32x128xf32>, vector<2x128xf32> -> vector<2x128xf32>
    %cst_138 = arith.constant dense<0.000000e+00> : vector<2x128xf32>
    %421 = tpu.matmul %365, %9, %cst_138 {dimension_numbers = #tpu.dot_dimension_numbers<[1], [0], [0], [1], [0, 0, 1, 1], [], []>} : vector<2x32xf32>, vector<32x128xf32>, vector<2x128xf32> -> vector<2x128xf32>
    %422 = arith.addf %420, %421 : vector<2x128xf32>
    %423 = arith.addf %422, %22 : vector<2x128xf32>
    %424 = vector.extract_strided_slice %423 {offsets = [0, 0], sizes = [2, 32], strides = [1, 1]} : vector<2x128xf32> to vector<2x32xf32>
    %425 = arith.negf %424 : vector<2x32xf32>
    %426 = math.exp %425 : vector<2x32xf32>
    %cst_139 = arith.constant 1.000000e+00 : f32
    %427 = vector.broadcast %cst_139 : f32 to vector<2x32xf32>
    %428 = arith.addf %427, %426 : vector<2x32xf32>
    %429 = arith.divf %427, %428 : vector<2x32xf32>
    %430 = vector.extract_strided_slice %423 {offsets = [0, 32], sizes = [2, 32], strides = [1, 1]} : vector<2x128xf32> to vector<2x32xf32>
    %431 = arith.negf %430 : vector<2x32xf32>
    %432 = math.exp %431 : vector<2x32xf32>
    %cst_140 = arith.constant 1.000000e+00 : f32
    %433 = vector.broadcast %cst_140 : f32 to vector<2x32xf32>
    %434 = arith.addf %433, %432 : vector<2x32xf32>
    %435 = arith.divf %433, %434 : vector<2x32xf32>
    %436 = vector.extract_strided_slice %423 {offsets = [0, 64], sizes = [2, 32], strides = [1, 1]} : vector<2x128xf32> to vector<2x32xf32>
    %437 = vector.extract_strided_slice %423 {offsets = [0, 96], sizes = [2, 32], strides = [1, 1]} : vector<2x128xf32> to vector<2x32xf32>
    %438 = arith.mulf %429, %437 : vector<2x32xf32>
    %439 = arith.addf %436, %438 : vector<2x32xf32>
    %440 = math.tanh %439 : vector<2x32xf32>
    %cst_141 = arith.constant 1.000000e+00 : f32
    %441 = vector.broadcast %cst_141 : f32 to vector<2x32xf32>
    %442 = arith.subf %441, %435 : vector<2x32xf32>
    %443 = arith.mulf %442, %440 : vector<2x32xf32>
    %444 = arith.mulf %435, %365 : vector<2x32xf32>
    %445 = arith.addf %443, %444 : vector<2x32xf32>
    %c6_142 = arith.constant 6 : index
    %c0_143 = arith.constant 0 : index
    %446 = vector.load %arg6[%c6_142, %c0_143] : memref<16x32xf32, #tpu.memory_space<vmem>>, vector<2x32xf32>
    tpu.vector_store %arg6[%c6_142, %c0_143], %445 {strides = array<i32>} : memref<16x32xf32, #tpu.memory_space<vmem>>, vector<2x32xf32>,
    %447 = arith.mulf %393, %80 : vector<2x32xf32>
    %448 = arith.mulf %419, %80 : vector<2x32xf32>
    %449 = arith.mulf %445, %80 : vector<2x32xf32>
    %cst_144 = arith.constant dense<0.000000e+00> : vector<2x96xf32>
    %450 = tpu.matmul %447, %1, %cst_144 {dimension_numbers = #tpu.dot_dimension_numbers<[1], [0], [0], [1], [0, 0, 1, 1], [], []>} : vector<2x32xf32>, vector<32x96xf32>, vector<2x96xf32> -> vector<2x96xf32>
    %451 = arith.addf %450, %18 : vector<2x96xf32>
    %452 = vector.extract_strided_slice %74 {offsets = [0, 0], sizes = [2, 32], strides = [1, 1]} : vector<2x96xf32> to vector<2x32xf32>
    %453 = vector.extract_strided_slice %451 {offsets = [0, 0], sizes = [2, 32], strides = [1, 1]} : vector<2x96xf32> to vector<2x32xf32>
    %454 = arith.addf %452, %453 : vector<2x32xf32>
    %455 = arith.negf %454 : vector<2x32xf32>
    %456 = math.exp %455 : vector<2x32xf32>
    %cst_145 = arith.constant 1.000000e+00 : f32
    %457 = vector.broadcast %cst_145 : f32 to vector<2x32xf32>
    %458 = arith.addf %457, %456 : vector<2x32xf32>
    %459 = arith.divf %457, %458 : vector<2x32xf32>
    %460 = vector.extract_strided_slice %74 {offsets = [0, 32], sizes = [2, 32], strides = [1, 1]} : vector<2x96xf32> to vector<2x32xf32>
    %461 = vector.extract_strided_slice %451 {offsets = [0, 32], sizes = [2, 32], strides = [1, 1]} : vector<2x96xf32> to vector<2x32xf32>
    %462 = arith.addf %460, %461 : vector<2x32xf32>
    %463 = arith.negf %462 : vector<2x32xf32>
    %464 = math.exp %463 : vector<2x32xf32>
    %cst_146 = arith.constant 1.000000e+00 : f32
    %465 = vector.broadcast %cst_146 : f32 to vector<2x32xf32>
    %466 = arith.addf %465, %464 : vector<2x32xf32>
    %467 = arith.divf %465, %466 : vector<2x32xf32>
    %468 = vector.extract_strided_slice %74 {offsets = [0, 64], sizes = [2, 32], strides = [1, 1]} : vector<2x96xf32> to vector<2x32xf32>
    %469 = vector.extract_strided_slice %451 {offsets = [0, 64], sizes = [2, 32], strides = [1, 1]} : vector<2x96xf32> to vector<2x32xf32>
    %470 = arith.mulf %459, %469 : vector<2x32xf32>
    %471 = arith.addf %468, %470 : vector<2x32xf32>
    %472 = math.tanh %471 : vector<2x32xf32>
    %cst_147 = arith.constant 1.000000e+00 : f32
    %473 = vector.broadcast %cst_147 : f32 to vector<2x32xf32>
    %474 = arith.subf %473, %467 : vector<2x32xf32>
    %475 = arith.mulf %474, %472 : vector<2x32xf32>
    %476 = arith.mulf %467, %447 : vector<2x32xf32>
    %477 = arith.addf %475, %476 : vector<2x32xf32>
    %cst_148 = arith.constant dense<0.000000e+00> : vector<2x128xf32>
    %478 = tpu.matmul %477, %3, %cst_148 {dimension_numbers = #tpu.dot_dimension_numbers<[1], [0], [0], [1], [0, 0, 1, 1], [], []>} : vector<2x32xf32>, vector<32x128xf32>, vector<2x128xf32> -> vector<2x128xf32>
    %cst_149 = arith.constant dense<0.000000e+00> : vector<2x128xf32>
    %479 = tpu.matmul %448, %5, %cst_149 {dimension_numbers = #tpu.dot_dimension_numbers<[1], [0], [0], [1], [0, 0, 1, 1], [], []>} : vector<2x32xf32>, vector<32x128xf32>, vector<2x128xf32> -> vector<2x128xf32>
    %480 = arith.addf %478, %479 : vector<2x128xf32>
    %481 = arith.addf %480, %20 : vector<2x128xf32>
    %482 = vector.extract_strided_slice %481 {offsets = [0, 0], sizes = [2, 32], strides = [1, 1]} : vector<2x128xf32> to vector<2x32xf32>
    %483 = arith.negf %482 : vector<2x32xf32>
    %484 = math.exp %483 : vector<2x32xf32>
    %cst_150 = arith.constant 1.000000e+00 : f32
    %485 = vector.broadcast %cst_150 : f32 to vector<2x32xf32>
    %486 = arith.addf %485, %484 : vector<2x32xf32>
    %487 = arith.divf %485, %486 : vector<2x32xf32>
    %488 = vector.extract_strided_slice %481 {offsets = [0, 32], sizes = [2, 32], strides = [1, 1]} : vector<2x128xf32> to vector<2x32xf32>
    %489 = arith.negf %488 : vector<2x32xf32>
    %490 = math.exp %489 : vector<2x32xf32>
    %cst_151 = arith.constant 1.000000e+00 : f32
    %491 = vector.broadcast %cst_151 : f32 to vector<2x32xf32>
    %492 = arith.addf %491, %490 : vector<2x32xf32>
    %493 = arith.divf %491, %492 : vector<2x32xf32>
    %494 = vector.extract_strided_slice %481 {offsets = [0, 64], sizes = [2, 32], strides = [1, 1]} : vector<2x128xf32> to vector<2x32xf32>
    %495 = vector.extract_strided_slice %481 {offsets = [0, 96], sizes = [2, 32], strides = [1, 1]} : vector<2x128xf32> to vector<2x32xf32>
    %496 = arith.mulf %487, %495 : vector<2x32xf32>
    %497 = arith.addf %494, %496 : vector<2x32xf32>
    %498 = math.tanh %497 : vector<2x32xf32>
    %cst_152 = arith.constant 1.000000e+00 : f32
    %499 = vector.broadcast %cst_152 : f32 to vector<2x32xf32>
    %500 = arith.subf %499, %493 : vector<2x32xf32>
    %501 = arith.mulf %500, %498 : vector<2x32xf32>
    %502 = arith.mulf %493, %448 : vector<2x32xf32>
    %503 = arith.addf %501, %502 : vector<2x32xf32>
    %cst_153 = arith.constant dense<0.000000e+00> : vector<2x128xf32>
    %504 = tpu.matmul %503, %7, %cst_153 {dimension_numbers = #tpu.dot_dimension_numbers<[1], [0], [0], [1], [0, 0, 1, 1], [], []>} : vector<2x32xf32>, vector<32x128xf32>, vector<2x128xf32> -> vector<2x128xf32>
    %cst_154 = arith.constant dense<0.000000e+00> : vector<2x128xf32>
    %505 = tpu.matmul %449, %9, %cst_154 {dimension_numbers = #tpu.dot_dimension_numbers<[1], [0], [0], [1], [0, 0, 1, 1], [], []>} : vector<2x32xf32>, vector<32x128xf32>, vector<2x128xf32> -> vector<2x128xf32>
    %506 = arith.addf %504, %505 : vector<2x128xf32>
    %507 = arith.addf %506, %22 : vector<2x128xf32>
    %508 = vector.extract_strided_slice %507 {offsets = [0, 0], sizes = [2, 32], strides = [1, 1]} : vector<2x128xf32> to vector<2x32xf32>
    %509 = arith.negf %508 : vector<2x32xf32>
    %510 = math.exp %509 : vector<2x32xf32>
    %cst_155 = arith.constant 1.000000e+00 : f32
    %511 = vector.broadcast %cst_155 : f32 to vector<2x32xf32>
    %512 = arith.addf %511, %510 : vector<2x32xf32>
    %513 = arith.divf %511, %512 : vector<2x32xf32>
    %514 = vector.extract_strided_slice %507 {offsets = [0, 32], sizes = [2, 32], strides = [1, 1]} : vector<2x128xf32> to vector<2x32xf32>
    %515 = arith.negf %514 : vector<2x32xf32>
    %516 = math.exp %515 : vector<2x32xf32>
    %cst_156 = arith.constant 1.000000e+00 : f32
    %517 = vector.broadcast %cst_156 : f32 to vector<2x32xf32>
    %518 = arith.addf %517, %516 : vector<2x32xf32>
    %519 = arith.divf %517, %518 : vector<2x32xf32>
    %520 = vector.extract_strided_slice %507 {offsets = [0, 64], sizes = [2, 32], strides = [1, 1]} : vector<2x128xf32> to vector<2x32xf32>
    %521 = vector.extract_strided_slice %507 {offsets = [0, 96], sizes = [2, 32], strides = [1, 1]} : vector<2x128xf32> to vector<2x32xf32>
    %522 = arith.mulf %513, %521 : vector<2x32xf32>
    %523 = arith.addf %520, %522 : vector<2x32xf32>
    %524 = math.tanh %523 : vector<2x32xf32>
    %cst_157 = arith.constant 1.000000e+00 : f32
    %525 = vector.broadcast %cst_157 : f32 to vector<2x32xf32>
    %526 = arith.subf %525, %519 : vector<2x32xf32>
    %527 = arith.mulf %526, %524 : vector<2x32xf32>
    %528 = arith.mulf %519, %449 : vector<2x32xf32>
    %529 = arith.addf %527, %528 : vector<2x32xf32>
    %c8 = arith.constant 8 : index
    %c0_158 = arith.constant 0 : index
    %530 = vector.load %arg6[%c8, %c0_158] : memref<16x32xf32, #tpu.memory_space<vmem>>, vector<2x32xf32>
    tpu.vector_store %arg6[%c8, %c0_158], %529 {strides = array<i32>} : memref<16x32xf32, #tpu.memory_space<vmem>>, vector<2x32xf32>,
    %531 = arith.mulf %477, %91 : vector<2x32xf32>
    %532 = arith.mulf %503, %91 : vector<2x32xf32>
    %533 = arith.mulf %529, %91 : vector<2x32xf32>
    %cst_159 = arith.constant dense<0.000000e+00> : vector<2x96xf32>
    %534 = tpu.matmul %531, %1, %cst_159 {dimension_numbers = #tpu.dot_dimension_numbers<[1], [0], [0], [1], [0, 0, 1, 1], [], []>} : vector<2x32xf32>, vector<32x96xf32>, vector<2x96xf32> -> vector<2x96xf32>
    %535 = arith.addf %534, %18 : vector<2x96xf32>
    %536 = vector.extract_strided_slice %85 {offsets = [0, 0], sizes = [2, 32], strides = [1, 1]} : vector<2x96xf32> to vector<2x32xf32>
    %537 = vector.extract_strided_slice %535 {offsets = [0, 0], sizes = [2, 32], strides = [1, 1]} : vector<2x96xf32> to vector<2x32xf32>
    %538 = arith.addf %536, %537 : vector<2x32xf32>
    %539 = arith.negf %538 : vector<2x32xf32>
    %540 = math.exp %539 : vector<2x32xf32>
    %cst_160 = arith.constant 1.000000e+00 : f32
    %541 = vector.broadcast %cst_160 : f32 to vector<2x32xf32>
    %542 = arith.addf %541, %540 : vector<2x32xf32>
    %543 = arith.divf %541, %542 : vector<2x32xf32>
    %544 = vector.extract_strided_slice %85 {offsets = [0, 32], sizes = [2, 32], strides = [1, 1]} : vector<2x96xf32> to vector<2x32xf32>
    %545 = vector.extract_strided_slice %535 {offsets = [0, 32], sizes = [2, 32], strides = [1, 1]} : vector<2x96xf32> to vector<2x32xf32>
    %546 = arith.addf %544, %545 : vector<2x32xf32>
    %547 = arith.negf %546 : vector<2x32xf32>
    %548 = math.exp %547 : vector<2x32xf32>
    %cst_161 = arith.constant 1.000000e+00 : f32
    %549 = vector.broadcast %cst_161 : f32 to vector<2x32xf32>
    %550 = arith.addf %549, %548 : vector<2x32xf32>
    %551 = arith.divf %549, %550 : vector<2x32xf32>
    %552 = vector.extract_strided_slice %85 {offsets = [0, 64], sizes = [2, 32], strides = [1, 1]} : vector<2x96xf32> to vector<2x32xf32>
    %553 = vector.extract_strided_slice %535 {offsets = [0, 64], sizes = [2, 32], strides = [1, 1]} : vector<2x96xf32> to vector<2x32xf32>
    %554 = arith.mulf %543, %553 : vector<2x32xf32>
    %555 = arith.addf %552, %554 : vector<2x32xf32>
    %556 = math.tanh %555 : vector<2x32xf32>
    %cst_162 = arith.constant 1.000000e+00 : f32
    %557 = vector.broadcast %cst_162 : f32 to vector<2x32xf32>
    %558 = arith.subf %557, %551 : vector<2x32xf32>
    %559 = arith.mulf %558, %556 : vector<2x32xf32>
    %560 = arith.mulf %551, %531 : vector<2x32xf32>
    %561 = arith.addf %559, %560 : vector<2x32xf32>
    %cst_163 = arith.constant dense<0.000000e+00> : vector<2x128xf32>
    %562 = tpu.matmul %561, %3, %cst_163 {dimension_numbers = #tpu.dot_dimension_numbers<[1], [0], [0], [1], [0, 0, 1, 1], [], []>} : vector<2x32xf32>, vector<32x128xf32>, vector<2x128xf32> -> vector<2x128xf32>
    %cst_164 = arith.constant dense<0.000000e+00> : vector<2x128xf32>
    %563 = tpu.matmul %532, %5, %cst_164 {dimension_numbers = #tpu.dot_dimension_numbers<[1], [0], [0], [1], [0, 0, 1, 1], [], []>} : vector<2x32xf32>, vector<32x128xf32>, vector<2x128xf32> -> vector<2x128xf32>
    %564 = arith.addf %562, %563 : vector<2x128xf32>
    %565 = arith.addf %564, %20 : vector<2x128xf32>
    %566 = vector.extract_strided_slice %565 {offsets = [0, 0], sizes = [2, 32], strides = [1, 1]} : vector<2x128xf32> to vector<2x32xf32>
    %567 = arith.negf %566 : vector<2x32xf32>
    %568 = math.exp %567 : vector<2x32xf32>
    %cst_165 = arith.constant 1.000000e+00 : f32
    %569 = vector.broadcast %cst_165 : f32 to vector<2x32xf32>
    %570 = arith.addf %569, %568 : vector<2x32xf32>
    %571 = arith.divf %569, %570 : vector<2x32xf32>
    %572 = vector.extract_strided_slice %565 {offsets = [0, 32], sizes = [2, 32], strides = [1, 1]} : vector<2x128xf32> to vector<2x32xf32>
    %573 = arith.negf %572 : vector<2x32xf32>
    %574 = math.exp %573 : vector<2x32xf32>
    %cst_166 = arith.constant 1.000000e+00 : f32
    %575 = vector.broadcast %cst_166 : f32 to vector<2x32xf32>
    %576 = arith.addf %575, %574 : vector<2x32xf32>
    %577 = arith.divf %575, %576 : vector<2x32xf32>
    %578 = vector.extract_strided_slice %565 {offsets = [0, 64], sizes = [2, 32], strides = [1, 1]} : vector<2x128xf32> to vector<2x32xf32>
    %579 = vector.extract_strided_slice %565 {offsets = [0, 96], sizes = [2, 32], strides = [1, 1]} : vector<2x128xf32> to vector<2x32xf32>
    %580 = arith.mulf %571, %579 : vector<2x32xf32>
    %581 = arith.addf %578, %580 : vector<2x32xf32>
    %582 = math.tanh %581 : vector<2x32xf32>
    %cst_167 = arith.constant 1.000000e+00 : f32
    %583 = vector.broadcast %cst_167 : f32 to vector<2x32xf32>
    %584 = arith.subf %583, %577 : vector<2x32xf32>
    %585 = arith.mulf %584, %582 : vector<2x32xf32>
    %586 = arith.mulf %577, %532 : vector<2x32xf32>
    %587 = arith.addf %585, %586 : vector<2x32xf32>
    %cst_168 = arith.constant dense<0.000000e+00> : vector<2x128xf32>
    %588 = tpu.matmul %587, %7, %cst_168 {dimension_numbers = #tpu.dot_dimension_numbers<[1], [0], [0], [1], [0, 0, 1, 1], [], []>} : vector<2x32xf32>, vector<32x128xf32>, vector<2x128xf32> -> vector<2x128xf32>
    %cst_169 = arith.constant dense<0.000000e+00> : vector<2x128xf32>
    %589 = tpu.matmul %533, %9, %cst_169 {dimension_numbers = #tpu.dot_dimension_numbers<[1], [0], [0], [1], [0, 0, 1, 1], [], []>} : vector<2x32xf32>, vector<32x128xf32>, vector<2x128xf32> -> vector<2x128xf32>
    %590 = arith.addf %588, %589 : vector<2x128xf32>
    %591 = arith.addf %590, %22 : vector<2x128xf32>
    %592 = vector.extract_strided_slice %591 {offsets = [0, 0], sizes = [2, 32], strides = [1, 1]} : vector<2x128xf32> to vector<2x32xf32>
    %593 = arith.negf %592 : vector<2x32xf32>
    %594 = math.exp %593 : vector<2x32xf32>
    %cst_170 = arith.constant 1.000000e+00 : f32
    %595 = vector.broadcast %cst_170 : f32 to vector<2x32xf32>
    %596 = arith.addf %595, %594 : vector<2x32xf32>
    %597 = arith.divf %595, %596 : vector<2x32xf32>
    %598 = vector.extract_strided_slice %591 {offsets = [0, 32], sizes = [2, 32], strides = [1, 1]} : vector<2x128xf32> to vector<2x32xf32>
    %599 = arith.negf %598 : vector<2x32xf32>
    %600 = math.exp %599 : vector<2x32xf32>
    %cst_171 = arith.constant 1.000000e+00 : f32
    %601 = vector.broadcast %cst_171 : f32 to vector<2x32xf32>
    %602 = arith.addf %601, %600 : vector<2x32xf32>
    %603 = arith.divf %601, %602 : vector<2x32xf32>
    %604 = vector.extract_strided_slice %591 {offsets = [0, 64], sizes = [2, 32], strides = [1, 1]} : vector<2x128xf32> to vector<2x32xf32>
    %605 = vector.extract_strided_slice %591 {offsets = [0, 96], sizes = [2, 32], strides = [1, 1]} : vector<2x128xf32> to vector<2x32xf32>
    %606 = arith.mulf %597, %605 : vector<2x32xf32>
    %607 = arith.addf %604, %606 : vector<2x32xf32>
    %608 = math.tanh %607 : vector<2x32xf32>
    %cst_172 = arith.constant 1.000000e+00 : f32
    %609 = vector.broadcast %cst_172 : f32 to vector<2x32xf32>
    %610 = arith.subf %609, %603 : vector<2x32xf32>
    %611 = arith.mulf %610, %608 : vector<2x32xf32>
    %612 = arith.mulf %603, %533 : vector<2x32xf32>
    %613 = arith.addf %611, %612 : vector<2x32xf32>
    %c10 = arith.constant 10 : index
    %c0_173 = arith.constant 0 : index
    %614 = vector.load %arg6[%c10, %c0_173] : memref<16x32xf32, #tpu.memory_space<vmem>>, vector<2x32xf32>
    tpu.vector_store %arg6[%c10, %c0_173], %613 {strides = array<i32>} : memref<16x32xf32, #tpu.memory_space<vmem>>, vector<2x32xf32>,
    %615 = arith.mulf %561, %102 : vector<2x32xf32>
    %616 = arith.mulf %587, %102 : vector<2x32xf32>
    %617 = arith.mulf %613, %102 : vector<2x32xf32>
    %cst_174 = arith.constant dense<0.000000e+00> : vector<2x96xf32>
    %618 = tpu.matmul %615, %1, %cst_174 {dimension_numbers = #tpu.dot_dimension_numbers<[1], [0], [0], [1], [0, 0, 1, 1], [], []>} : vector<2x32xf32>, vector<32x96xf32>, vector<2x96xf32> -> vector<2x96xf32>
    %619 = arith.addf %618, %18 : vector<2x96xf32>
    %620 = vector.extract_strided_slice %96 {offsets = [0, 0], sizes = [2, 32], strides = [1, 1]} : vector<2x96xf32> to vector<2x32xf32>
    %621 = vector.extract_strided_slice %619 {offsets = [0, 0], sizes = [2, 32], strides = [1, 1]} : vector<2x96xf32> to vector<2x32xf32>
    %622 = arith.addf %620, %621 : vector<2x32xf32>
    %623 = arith.negf %622 : vector<2x32xf32>
    %624 = math.exp %623 : vector<2x32xf32>
    %cst_175 = arith.constant 1.000000e+00 : f32
    %625 = vector.broadcast %cst_175 : f32 to vector<2x32xf32>
    %626 = arith.addf %625, %624 : vector<2x32xf32>
    %627 = arith.divf %625, %626 : vector<2x32xf32>
    %628 = vector.extract_strided_slice %96 {offsets = [0, 32], sizes = [2, 32], strides = [1, 1]} : vector<2x96xf32> to vector<2x32xf32>
    %629 = vector.extract_strided_slice %619 {offsets = [0, 32], sizes = [2, 32], strides = [1, 1]} : vector<2x96xf32> to vector<2x32xf32>
    %630 = arith.addf %628, %629 : vector<2x32xf32>
    %631 = arith.negf %630 : vector<2x32xf32>
    %632 = math.exp %631 : vector<2x32xf32>
    %cst_176 = arith.constant 1.000000e+00 : f32
    %633 = vector.broadcast %cst_176 : f32 to vector<2x32xf32>
    %634 = arith.addf %633, %632 : vector<2x32xf32>
    %635 = arith.divf %633, %634 : vector<2x32xf32>
    %636 = vector.extract_strided_slice %96 {offsets = [0, 64], sizes = [2, 32], strides = [1, 1]} : vector<2x96xf32> to vector<2x32xf32>
    %637 = vector.extract_strided_slice %619 {offsets = [0, 64], sizes = [2, 32], strides = [1, 1]} : vector<2x96xf32> to vector<2x32xf32>
    %638 = arith.mulf %627, %637 : vector<2x32xf32>
    %639 = arith.addf %636, %638 : vector<2x32xf32>
    %640 = math.tanh %639 : vector<2x32xf32>
    %cst_177 = arith.constant 1.000000e+00 : f32
    %641 = vector.broadcast %cst_177 : f32 to vector<2x32xf32>
    %642 = arith.subf %641, %635 : vector<2x32xf32>
    %643 = arith.mulf %642, %640 : vector<2x32xf32>
    %644 = arith.mulf %635, %615 : vector<2x32xf32>
    %645 = arith.addf %643, %644 : vector<2x32xf32>
    %cst_178 = arith.constant dense<0.000000e+00> : vector<2x128xf32>
    %646 = tpu.matmul %645, %3, %cst_178 {dimension_numbers = #tpu.dot_dimension_numbers<[1], [0], [0], [1], [0, 0, 1, 1], [], []>} : vector<2x32xf32>, vector<32x128xf32>, vector<2x128xf32> -> vector<2x128xf32>
    %cst_179 = arith.constant dense<0.000000e+00> : vector<2x128xf32>
    %647 = tpu.matmul %616, %5, %cst_179 {dimension_numbers = #tpu.dot_dimension_numbers<[1], [0], [0], [1], [0, 0, 1, 1], [], []>} : vector<2x32xf32>, vector<32x128xf32>, vector<2x128xf32> -> vector<2x128xf32>
    %648 = arith.addf %646, %647 : vector<2x128xf32>
    %649 = arith.addf %648, %20 : vector<2x128xf32>
    %650 = vector.extract_strided_slice %649 {offsets = [0, 0], sizes = [2, 32], strides = [1, 1]} : vector<2x128xf32> to vector<2x32xf32>
    %651 = arith.negf %650 : vector<2x32xf32>
    %652 = math.exp %651 : vector<2x32xf32>
    %cst_180 = arith.constant 1.000000e+00 : f32
    %653 = vector.broadcast %cst_180 : f32 to vector<2x32xf32>
    %654 = arith.addf %653, %652 : vector<2x32xf32>
    %655 = arith.divf %653, %654 : vector<2x32xf32>
    %656 = vector.extract_strided_slice %649 {offsets = [0, 32], sizes = [2, 32], strides = [1, 1]} : vector<2x128xf32> to vector<2x32xf32>
    %657 = arith.negf %656 : vector<2x32xf32>
    %658 = math.exp %657 : vector<2x32xf32>
    %cst_181 = arith.constant 1.000000e+00 : f32
    %659 = vector.broadcast %cst_181 : f32 to vector<2x32xf32>
    %660 = arith.addf %659, %658 : vector<2x32xf32>
    %661 = arith.divf %659, %660 : vector<2x32xf32>
    %662 = vector.extract_strided_slice %649 {offsets = [0, 64], sizes = [2, 32], strides = [1, 1]} : vector<2x128xf32> to vector<2x32xf32>
    %663 = vector.extract_strided_slice %649 {offsets = [0, 96], sizes = [2, 32], strides = [1, 1]} : vector<2x128xf32> to vector<2x32xf32>
    %664 = arith.mulf %655, %663 : vector<2x32xf32>
    %665 = arith.addf %662, %664 : vector<2x32xf32>
    %666 = math.tanh %665 : vector<2x32xf32>
    %cst_182 = arith.constant 1.000000e+00 : f32
    %667 = vector.broadcast %cst_182 : f32 to vector<2x32xf32>
    %668 = arith.subf %667, %661 : vector<2x32xf32>
    %669 = arith.mulf %668, %666 : vector<2x32xf32>
    %670 = arith.mulf %661, %616 : vector<2x32xf32>
    %671 = arith.addf %669, %670 : vector<2x32xf32>
    %cst_183 = arith.constant dense<0.000000e+00> : vector<2x128xf32>
    %672 = tpu.matmul %671, %7, %cst_183 {dimension_numbers = #tpu.dot_dimension_numbers<[1], [0], [0], [1], [0, 0, 1, 1], [], []>} : vector<2x32xf32>, vector<32x128xf32>, vector<2x128xf32> -> vector<2x128xf32>
    %cst_184 = arith.constant dense<0.000000e+00> : vector<2x128xf32>
    %673 = tpu.matmul %617, %9, %cst_184 {dimension_numbers = #tpu.dot_dimension_numbers<[1], [0], [0], [1], [0, 0, 1, 1], [], []>} : vector<2x32xf32>, vector<32x128xf32>, vector<2x128xf32> -> vector<2x128xf32>
    %674 = arith.addf %672, %673 : vector<2x128xf32>
    %675 = arith.addf %674, %22 : vector<2x128xf32>
    %676 = vector.extract_strided_slice %675 {offsets = [0, 0], sizes = [2, 32], strides = [1, 1]} : vector<2x128xf32> to vector<2x32xf32>
    %677 = arith.negf %676 : vector<2x32xf32>
    %678 = math.exp %677 : vector<2x32xf32>
    %cst_185 = arith.constant 1.000000e+00 : f32
    %679 = vector.broadcast %cst_185 : f32 to vector<2x32xf32>
    %680 = arith.addf %679, %678 : vector<2x32xf32>
    %681 = arith.divf %679, %680 : vector<2x32xf32>
    %682 = vector.extract_strided_slice %675 {offsets = [0, 32], sizes = [2, 32], strides = [1, 1]} : vector<2x128xf32> to vector<2x32xf32>
    %683 = arith.negf %682 : vector<2x32xf32>
    %684 = math.exp %683 : vector<2x32xf32>
    %cst_186 = arith.constant 1.000000e+00 : f32
    %685 = vector.broadcast %cst_186 : f32 to vector<2x32xf32>
    %686 = arith.addf %685, %684 : vector<2x32xf32>
    %687 = arith.divf %685, %686 : vector<2x32xf32>
    %688 = vector.extract_strided_slice %675 {offsets = [0, 64], sizes = [2, 32], strides = [1, 1]} : vector<2x128xf32> to vector<2x32xf32>
    %689 = vector.extract_strided_slice %675 {offsets = [0, 96], sizes = [2, 32], strides = [1, 1]} : vector<2x128xf32> to vector<2x32xf32>
    %690 = arith.mulf %681, %689 : vector<2x32xf32>
    %691 = arith.addf %688, %690 : vector<2x32xf32>
    %692 = math.tanh %691 : vector<2x32xf32>
    %cst_187 = arith.constant 1.000000e+00 : f32
    %693 = vector.broadcast %cst_187 : f32 to vector<2x32xf32>
    %694 = arith.subf %693, %687 : vector<2x32xf32>
    %695 = arith.mulf %694, %692 : vector<2x32xf32>
    %696 = arith.mulf %687, %617 : vector<2x32xf32>
    %697 = arith.addf %695, %696 : vector<2x32xf32>
    %c12 = arith.constant 12 : index
    %c0_188 = arith.constant 0 : index
    %698 = vector.load %arg6[%c12, %c0_188] : memref<16x32xf32, #tpu.memory_space<vmem>>, vector<2x32xf32>
    tpu.vector_store %arg6[%c12, %c0_188], %697 {strides = array<i32>} : memref<16x32xf32, #tpu.memory_space<vmem>>, vector<2x32xf32>,
    %699 = arith.mulf %645, %113 : vector<2x32xf32>
    %700 = arith.mulf %671, %113 : vector<2x32xf32>
    %701 = arith.mulf %697, %113 : vector<2x32xf32>
    %cst_189 = arith.constant dense<0.000000e+00> : vector<2x96xf32>
    %702 = tpu.matmul %699, %1, %cst_189 {dimension_numbers = #tpu.dot_dimension_numbers<[1], [0], [0], [1], [0, 0, 1, 1], [], []>} : vector<2x32xf32>, vector<32x96xf32>, vector<2x96xf32> -> vector<2x96xf32>
    %703 = arith.addf %702, %18 : vector<2x96xf32>
    %704 = vector.extract_strided_slice %107 {offsets = [0, 0], sizes = [2, 32], strides = [1, 1]} : vector<2x96xf32> to vector<2x32xf32>
    %705 = vector.extract_strided_slice %703 {offsets = [0, 0], sizes = [2, 32], strides = [1, 1]} : vector<2x96xf32> to vector<2x32xf32>
    %706 = arith.addf %704, %705 : vector<2x32xf32>
    %707 = arith.negf %706 : vector<2x32xf32>
    %708 = math.exp %707 : vector<2x32xf32>
    %cst_190 = arith.constant 1.000000e+00 : f32
    %709 = vector.broadcast %cst_190 : f32 to vector<2x32xf32>
    %710 = arith.addf %709, %708 : vector<2x32xf32>
    %711 = arith.divf %709, %710 : vector<2x32xf32>
    %712 = vector.extract_strided_slice %107 {offsets = [0, 32], sizes = [2, 32], strides = [1, 1]} : vector<2x96xf32> to vector<2x32xf32>
    %713 = vector.extract_strided_slice %703 {offsets = [0, 32], sizes = [2, 32], strides = [1, 1]} : vector<2x96xf32> to vector<2x32xf32>
    %714 = arith.addf %712, %713 : vector<2x32xf32>
    %715 = arith.negf %714 : vector<2x32xf32>
    %716 = math.exp %715 : vector<2x32xf32>
    %cst_191 = arith.constant 1.000000e+00 : f32
    %717 = vector.broadcast %cst_191 : f32 to vector<2x32xf32>
    %718 = arith.addf %717, %716 : vector<2x32xf32>
    %719 = arith.divf %717, %718 : vector<2x32xf32>
    %720 = vector.extract_strided_slice %107 {offsets = [0, 64], sizes = [2, 32], strides = [1, 1]} : vector<2x96xf32> to vector<2x32xf32>
    %721 = vector.extract_strided_slice %703 {offsets = [0, 64], sizes = [2, 32], strides = [1, 1]} : vector<2x96xf32> to vector<2x32xf32>
    %722 = arith.mulf %711, %721 : vector<2x32xf32>
    %723 = arith.addf %720, %722 : vector<2x32xf32>
    %724 = math.tanh %723 : vector<2x32xf32>
    %cst_192 = arith.constant 1.000000e+00 : f32
    %725 = vector.broadcast %cst_192 : f32 to vector<2x32xf32>
    %726 = arith.subf %725, %719 : vector<2x32xf32>
    %727 = arith.mulf %726, %724 : vector<2x32xf32>
    %728 = arith.mulf %719, %699 : vector<2x32xf32>
    %729 = arith.addf %727, %728 : vector<2x32xf32>
    %cst_193 = arith.constant dense<0.000000e+00> : vector<2x128xf32>
    %730 = tpu.matmul %729, %3, %cst_193 {dimension_numbers = #tpu.dot_dimension_numbers<[1], [0], [0], [1], [0, 0, 1, 1], [], []>} : vector<2x32xf32>, vector<32x128xf32>, vector<2x128xf32> -> vector<2x128xf32>
    %cst_194 = arith.constant dense<0.000000e+00> : vector<2x128xf32>
    %731 = tpu.matmul %700, %5, %cst_194 {dimension_numbers = #tpu.dot_dimension_numbers<[1], [0], [0], [1], [0, 0, 1, 1], [], []>} : vector<2x32xf32>, vector<32x128xf32>, vector<2x128xf32> -> vector<2x128xf32>
    %732 = arith.addf %730, %731 : vector<2x128xf32>
    %733 = arith.addf %732, %20 : vector<2x128xf32>
    %734 = vector.extract_strided_slice %733 {offsets = [0, 0], sizes = [2, 32], strides = [1, 1]} : vector<2x128xf32> to vector<2x32xf32>
    %735 = arith.negf %734 : vector<2x32xf32>
    %736 = math.exp %735 : vector<2x32xf32>
    %cst_195 = arith.constant 1.000000e+00 : f32
    %737 = vector.broadcast %cst_195 : f32 to vector<2x32xf32>
    %738 = arith.addf %737, %736 : vector<2x32xf32>
    %739 = arith.divf %737, %738 : vector<2x32xf32>
    %740 = vector.extract_strided_slice %733 {offsets = [0, 32], sizes = [2, 32], strides = [1, 1]} : vector<2x128xf32> to vector<2x32xf32>
    %741 = arith.negf %740 : vector<2x32xf32>
    %742 = math.exp %741 : vector<2x32xf32>
    %cst_196 = arith.constant 1.000000e+00 : f32
    %743 = vector.broadcast %cst_196 : f32 to vector<2x32xf32>
    %744 = arith.addf %743, %742 : vector<2x32xf32>
    %745 = arith.divf %743, %744 : vector<2x32xf32>
    %746 = vector.extract_strided_slice %733 {offsets = [0, 64], sizes = [2, 32], strides = [1, 1]} : vector<2x128xf32> to vector<2x32xf32>
    %747 = vector.extract_strided_slice %733 {offsets = [0, 96], sizes = [2, 32], strides = [1, 1]} : vector<2x128xf32> to vector<2x32xf32>
    %748 = arith.mulf %739, %747 : vector<2x32xf32>
    %749 = arith.addf %746, %748 : vector<2x32xf32>
    %750 = math.tanh %749 : vector<2x32xf32>
    %cst_197 = arith.constant 1.000000e+00 : f32
    %751 = vector.broadcast %cst_197 : f32 to vector<2x32xf32>
    %752 = arith.subf %751, %745 : vector<2x32xf32>
    %753 = arith.mulf %752, %750 : vector<2x32xf32>
    %754 = arith.mulf %745, %700 : vector<2x32xf32>
    %755 = arith.addf %753, %754 : vector<2x32xf32>
    %cst_198 = arith.constant dense<0.000000e+00> : vector<2x128xf32>
    %756 = tpu.matmul %755, %7, %cst_198 {dimension_numbers = #tpu.dot_dimension_numbers<[1], [0], [0], [1], [0, 0, 1, 1], [], []>} : vector<2x32xf32>, vector<32x128xf32>, vector<2x128xf32> -> vector<2x128xf32>
    %cst_199 = arith.constant dense<0.000000e+00> : vector<2x128xf32>
    %757 = tpu.matmul %701, %9, %cst_199 {dimension_numbers = #tpu.dot_dimension_numbers<[1], [0], [0], [1], [0, 0, 1, 1], [], []>} : vector<2x32xf32>, vector<32x128xf32>, vector<2x128xf32> -> vector<2x128xf32>
    %758 = arith.addf %756, %757 : vector<2x128xf32>
    %759 = arith.addf %758, %22 : vector<2x128xf32>
    %760 = vector.extract_strided_slice %759 {offsets = [0, 0], sizes = [2, 32], strides = [1, 1]} : vector<2x128xf32> to vector<2x32xf32>
    %761 = arith.negf %760 : vector<2x32xf32>
    %762 = math.exp %761 : vector<2x32xf32>
    %cst_200 = arith.constant 1.000000e+00 : f32
    %763 = vector.broadcast %cst_200 : f32 to vector<2x32xf32>
    %764 = arith.addf %763, %762 : vector<2x32xf32>
    %765 = arith.divf %763, %764 : vector<2x32xf32>
    %766 = vector.extract_strided_slice %759 {offsets = [0, 32], sizes = [2, 32], strides = [1, 1]} : vector<2x128xf32> to vector<2x32xf32>
    %767 = arith.negf %766 : vector<2x32xf32>
    %768 = math.exp %767 : vector<2x32xf32>
    %cst_201 = arith.constant 1.000000e+00 : f32
    %769 = vector.broadcast %cst_201 : f32 to vector<2x32xf32>
    %770 = arith.addf %769, %768 : vector<2x32xf32>
    %771 = arith.divf %769, %770 : vector<2x32xf32>
    %772 = vector.extract_strided_slice %759 {offsets = [0, 64], sizes = [2, 32], strides = [1, 1]} : vector<2x128xf32> to vector<2x32xf32>
    %773 = vector.extract_strided_slice %759 {offsets = [0, 96], sizes = [2, 32], strides = [1, 1]} : vector<2x128xf32> to vector<2x32xf32>
    %774 = arith.mulf %765, %773 : vector<2x32xf32>
    %775 = arith.addf %772, %774 : vector<2x32xf32>
    %776 = math.tanh %775 : vector<2x32xf32>
    %cst_202 = arith.constant 1.000000e+00 : f32
    %777 = vector.broadcast %cst_202 : f32 to vector<2x32xf32>
    %778 = arith.subf %777, %771 : vector<2x32xf32>
    %779 = arith.mulf %778, %776 : vector<2x32xf32>
    %780 = arith.mulf %771, %701 : vector<2x32xf32>
    %781 = arith.addf %779, %780 : vector<2x32xf32>
    %c14 = arith.constant 14 : index
    %c0_203 = arith.constant 0 : index
    %782 = vector.load %arg6[%c14, %c0_203] : memref<16x32xf32, #tpu.memory_space<vmem>>, vector<2x32xf32>
    tpu.vector_store %arg6[%c14, %c0_203], %781 {strides = array<i32>} : memref<16x32xf32, #tpu.memory_space<vmem>>, vector<2x32xf32>,
    %c0_204 = arith.constant 0 : index
    %c0_205 = arith.constant 0 : index
    %783 = vector.load %arg6[%c0_204, %c0_205] : memref<16x32xf32, #tpu.memory_space<vmem>>, vector<16x32xf32>
    %cst_206 = arith.constant dense<0.000000e+00> : vector<16x4xf32>
    %784 = tpu.matmul %783, %12, %cst_206 {dimension_numbers = #tpu.dot_dimension_numbers<[1], [0], [0], [1], [0, 0, 1, 1], [], []>} : vector<16x32xf32>, vector<32x4xf32>, vector<16x4xf32> -> vector<16x4xf32>
    %785 = vector.broadcast %25 : vector<1x4xf32> to vector<16x4xf32>
    %786 = arith.addf %784, %785 : vector<16x4xf32>
    %cst_207 = arith.constant dense<0xFF800000> : vector<16xf32>
    %787 = vector.multi_reduction <maximumf>, %786, %cst_207 [1] : vector<16x4xf32> to vector<16xf32>
    %788 = vector.shape_cast %787 : vector<16xf32> to vector<16x1xf32>
    %789 = vector.broadcast %788 : vector<16x1xf32> to vector<16x4xf32>
    %790 = arith.subf %786, %789 : vector<16x4xf32>
    %791 = math.exp %790 : vector<16x4xf32>
    %cst_208 = arith.constant dense<0.000000e+00> : vector<16xf32>
    %792 = vector.multi_reduction <add>, %791, %cst_208 [1] : vector<16x4xf32> to vector<16xf32>
    %793 = vector.shape_cast %792 : vector<16xf32> to vector<16x1xf32>
    %794 = tpu.reciprocal %793 {approx = true} : vector<16x1xf32> -> vector<16x1xf32>
    %795 = arith.mulf %793, %794 : vector<16x1xf32>
    %cst_209 = arith.constant 2.000000e+00 : f32
    %796 = vector.broadcast %cst_209 : f32 to vector<16x1xf32>
    %797 = arith.subf %796, %795 : vector<16x1xf32>
    %798 = arith.mulf %794, %797 : vector<16x1xf32>
    %799 = vector.broadcast %798 : vector<16x1xf32> to vector<16x4xf32>
    %800 = arith.mulf %791, %799 : vector<16x4xf32>
    %c0_210 = arith.constant 0 : index
    %c0_211 = arith.constant 0 : index
    %801 = vector.load %arg5[%c0_210, %c0_211] : memref<16x4xf32, #tpu.memory_space<vmem>>, vector<16x4xf32>
    tpu.vector_store %arg5[%c0_210, %c0_211], %800 {strides = array<i32>} : memref<16x4xf32, #tpu.memory_space<vmem>>, vector<16x4xf32>,
    return
  }
}

</mosaic_0001>

<llo_original>
// kernel: model0_forward.1
$region0: #{model0_forward.1}
  #allocation0 [shape = 'u32[]', space=smem, size = 0x4, offset = 0x4, fixed_abs, tag = 'smem constant byte address 0x4 - core index']
  #allocation1 [shape = 'u32[144,128]{1,0:T(1,128)}', space=vmem, size = 0x12000, scoped, tag = 'internal scratch']
  #allocation2 [shape = 'f32[16,32]{1,0:T(8,128)}', space=vmem, size = 0x2000, scoped, tag = 'scratch operand']
  %s0 = inlined_call_operand.vmem [shape: f32[8,2,36], index: 0, kind: input, shape index: {}]
  %s1 = inlined_call_operand.vmem [shape: f32[3,2,32], index: 1, kind: input, shape index: {}]
  %s2 = inlined_call_operand.vmem [shape: f32[36,96], index: 2, kind: input, shape index: {}]
  %s3 = inlined_call_operand.vmem [shape: f32[5,32,128], index: 3, kind: input, shape index: {}]
  %s4 = inlined_call_operand.vmem [shape: f32[5,2,128], index: 4, kind: input, shape index: {}]
  %s5 = inlined_call_operand.vmem [shape: f32[16,4], index: 5, kind: output, shape index: {}]
  %s6 = sld [smem:[#allocation0]]
  $region30: #{model0_forward.1} parent=0
    _
  %s8 = ssub.s32 1, %s6
  %s9 = scalar_select 0, %s8, %s6
  // Predicated region
  $region2: #{model0_forward.1} parent=0 // pred_check
    _
  $region3: #{model0_forward.1} parent=0 // pred_check_branch
    %11 = sbr.rel (0) target = $region5
  $region4: #{model0_forward.1} parent=0 // pred_region
    _
  $region5: #{model0_forward.1} parent=0 // pred_fallthru
    _
  // Predicated region
  $region6: #{model0_forward.1} parent=0 // pred_check
    _
  $region7: #{model0_forward.1} parent=0 // pred_check_branch
    %13 = sbr.rel (0) target = $region9
  $region8: #{model0_forward.1} parent=0 // pred_region
    _
  $region9: #{model0_forward.1} parent=0 // pred_fallthru
    _
  // Predicated region
  $region10: #{model0_forward.1} parent=0 // pred_check
    _
  $region11: #{model0_forward.1} parent=0 // pred_check_branch
    %15 = sbr.rel (0) target = $region13
  $region12: #{model0_forward.1} parent=0 // pred_region
    _
  $region13: #{model0_forward.1} parent=0 // pred_fallthru
    _
  // Predicated region
  $region14: #{model0_forward.1} parent=0 // pred_check
    _
  $region15: #{model0_forward.1} parent=0 // pred_check_branch
    %17 = sbr.rel (0) target = $region17
  $region16: #{model0_forward.1} parent=0 // pred_region
    _
  $region17: #{model0_forward.1} parent=0 // pred_fallthru
    _
  // Predicated region
  $region18: #{model0_forward.1} parent=0 // pred_check
    _
  $region19: #{model0_forward.1} parent=0 // pred_check_branch
    %19 = sbr.rel (0) target = $region21
  $region20: #{model0_forward.1} parent=0 // pred_region
    _
  $region21: #{model0_forward.1} parent=0 // pred_fallthru
    _
  %v20 = vld [vmem:[%s2] sm:$0xf]
  %v21 = vld [vmem:[%s2 + $0x4] sm:$0xff]
  %v22 = vld [vmem:[%s2 + $0xc] sm:$0xff]
  %v23 = vld [vmem:[%s2 + $0x14] sm:$0xff]
  %v24 = vld [vmem:[%s2 + $0x1c] sm:$0xff]
  %v25 = vld [vmem:[%s3] sm:$0xff]
  %v26 = vld [vmem:[%s3 + $0x8] sm:$0xff]
  %v27 = vld [vmem:[%s3 + $0x10] sm:$0xff]
  %v28 = vld [vmem:[%s3 + $0x18] sm:$0xff]
  %s29 = scalar_lea.vmem %s3, 32
  %v30 = vld [vmem:[%s29] sm:$0xff]
  %v31 = vld [vmem:[%s29 + $0x8] sm:$0xff]
  %v32 = vld [vmem:[%s29 + $0x10] sm:$0xff]
  %v33 = vld [vmem:[%s29 + $0x18] sm:$0xff]
  %s34 = scalar_lea.vmem %s3, 64
  %v35 = vld [vmem:[%s34] sm:$0xff]
  %v36 = vld [vmem:[%s34 + $0x8] sm:$0xff]
  %v37 = vld [vmem:[%s34 + $0x10] sm:$0xff]
  %v38 = vld [vmem:[%s34 + $0x18] sm:$0xff]
  %s39 = scalar_lea.vmem %s3, 96
  %v40 = vld [vmem:[%s39] sm:$0xff]
  %v41 = vld [vmem:[%s39 + $0x8] sm:$0xff]
  %v42 = vld [vmem:[%s39 + $0x10] sm:$0xff]
  %v43 = vld [vmem:[%s39 + $0x18] sm:$0xff]
  %s44 = scalar_lea.vmem %s3, 128
  %v45 = vld [vmem:[%s44] sm:$0xff]
  %v46 = vld [vmem:[%s44 + $0x8] sm:$0xff]
  %v47 = vld [vmem:[%s44 + $0x10] sm:$0xff]
  %v48 = vld [vmem:[%s44 + $0x18] sm:$0xff]
  %v49 = vld [vmem:[%s4] sm:$0x3]
  %s50 = scalar_lea.vmem %s4, 2
  %v51 = vld [vmem:[%s50] sm:$0x3]
  %s52 = scalar_lea.vmem %s4, 4
  %v53 = vld [vmem:[%s52] sm:$0x3]
  %s54 = scalar_lea.vmem %s4, 6
  %v55 = vld [vmem:[%s54] sm:$0x3]
  %s56 = scalar_lea.vmem %s4, 8
  %v57 = vld [vmem:[%s56] sm:$0x3]
  %v58 = vld [vmem:[%s1] sm:$0x3]
  %s59 = scalar_lea.vmem %s1, 2
  %v60 = vld [vmem:[%s59] sm:$0x3]
  %s61 = scalar_lea.vmem %s1, 4
  %v62 = vld [vmem:[%s61] sm:$0x3]
  %v63 = vld [vmem:[%s0] sm:$0x3]
  %vm64 = vcmask 31744
  %v66 = vsel %vm64, %v63, 0
  %vm68 = vcmask 1043456
  %v70 = vsel %vm68, %v20, 0
  %72 = vmatprep.subr.mxu0 0.0
  %73 = vmatpush1.msra.mxu0 0.0
  %74 = vmatprep.subr.mxu0 0.0
  %75 = vmatpush1.msra.mxu0 0.0
  %76 = vmatprep.subr.mxu0 0.0
  %77 = vmatpush1.msra.mxu0 0.0
  %78 = vmatprep.subr.mxu0 0.0
  %79 = vmatpush1.msra.mxu0 0.0
  %80 = vmatprep.subr.mxu0 0.0
  %81 = vmatpush1.msra.mxu0 0.0
  %82 = vmatprep.subr.mxu0 0.0
  %83 = vmatpush1.msra.mxu0 0.0
  %84 = vmatprep.subr.mxu0 0.0
  %85 = vmatpush1.msra.mxu0 0.0
  %86 = vmatprep.subr.mxu0 0.0
  %87 = vmatpush1.msra.mxu0 0.0
  %88 = vmatprep.subr.mxu0 0.0
  %89 = vmatpush1.msra.mxu0 0.0
  %90 = vmatprep.subr.mxu0 0.0
  %91 = vmatpush1.msra.mxu0 0.0
  %92 = vmatprep.subr.mxu0 0.0
  %93 = vmatpush1.msra.mxu0 0.0
  %94 = vmatprep.subr.mxu0 0.0
  %95 = vmatpush1.msra.mxu0 0.0
  %96 = vmatprep.subr.mxu0 0.0
  %97 = vmatpush1.msra.mxu0 0.0
  %98 = vmatprep.subr.mxu0 0.0
  %99 = vmatpush1.msra.mxu0 0.0
  %100 = vmatprep.subr.mxu0 0.0
  %101 = vmatpush1.msra.mxu0 0.0
  %102 = vmatprep.subr.mxu0 0.0
  %103 = vmatpush1.msra.mxu0 %v70
  %104 = vmatprep.subr.mxu0 0.0
  %105 = vmatpush2.msra.mxu0 0.0
  %106 = vmatprep.subr.mxu0 0.0
  %107 = vmatpush2.msra.mxu0 0.0
  %108 = vmatprep.subr.mxu0 0.0
  %109 = vmatpush2.msra.mxu0 0.0
  %110 = vmatprep.subr.mxu0 0.0
  %111 = vmatpush2.msra.mxu0 0.0
  %112 = vmatprep.subr.mxu0 0.0
  %113 = vmatpush2.msra.mxu0 0.0
  %114 = vmatprep.subr.mxu0 0.0
  %115 = vmatpush2.msra.mxu0 0.0
  %116 = vmatprep.subr.mxu0 0.0
  %117 = vmatpush2.msra.mxu0 0.0
  %118 = vmatprep.subr.mxu0 0.0
  %119 = vmatpush2.msra.mxu0 0.0
  %120 = vmatprep.subr.mxu0 0.0
  %121 = vmatpush2.msra.mxu0 0.0
  %122 = vmatprep.subr.mxu0 0.0
  %123 = vmatpush2.msra.mxu0 0.0
  %124 = vmatprep.subr.mxu0 0.0
  %125 = vmatpush2.msra.mxu0 0.0
  %126 = vmatprep.subr.mxu0 0.0
  %127 = vmatpush2.msra.mxu0 0.0
  %128 = vmatprep.subr.mxu0 0.0
  %129 = vmatpush2.msra.mxu0 0.0
  %130 = vmatprep.subr.mxu0 0.0
  %131 = vmatpush2.msra.mxu0 0.0
  %132 = vmatprep.subr.mxu0 0.0
  %133 = vmatpush2.msra.mxu0 0.0
  %134 = vmatprep.subr.mxu0 0.0
  %135 = vmatpush2.msra.mxu0 0.0
  %136 = vmatprep.mubr.f32.mxu0 0.0
  %137 = vmatmul.mubr.f32.gmra.mxu0 %v66
  %v138 = vpop.f32.mrf.mxu0
  %v139 = vadd.f32 %v49, %v138
  %v140 = vpop.f32.mrf.mxu0
  %141 = vdwg.mxu0
  %s142 = scalar_lea.vmem %s0, 2
  %v143 = vld [vmem:[%s142] sm:$0x3]
  %v145 = vsel %vm64, %v143, 0
  %147 = vmatprep.subr.mxu0 0.0
  %148 = vmatpush1.msra.mxu0 0.0
  %149 = vmatprep.subr.mxu0 0.0
  %150 = vmatpush1.msra.mxu0 0.0
  %151 = vmatprep.subr.mxu0 0.0
  %152 = vmatpush1.msra.mxu0 0.0
  %153 = vmatprep.subr.mxu0 0.0
  %154 = vmatpush1.msra.mxu0 0.0
  %155 = vmatprep.subr.mxu0 0.0
  %156 = vmatpush1.msra.mxu0 0.0
  %157 = vmatprep.subr.mxu0 0.0
  %158 = vmatpush1.msra.mxu0 0.0
  %159 = vmatprep.subr.mxu0 0.0
  %160 = vmatpush1.msra.mxu0 0.0
  %161 = vmatprep.subr.mxu0 0.0
  %162 = vmatpush1.msra.mxu0 0.0
  %163 = vmatprep.subr.mxu0 0.0
  %164 = vmatpush1.msra.mxu0 0.0
  %165 = vmatprep.subr.mxu0 0.0
  %166 = vmatpush1.msra.mxu0 0.0
  %167 = vmatprep.subr.mxu0 0.0
  %168 = vmatpush1.msra.mxu0 0.0
  %169 = vmatprep.subr.mxu0 0.0
  %170 = vmatpush1.msra.mxu0 0.0
  %171 = vmatprep.subr.mxu0 0.0
  %172 = vmatpush1.msra.mxu0 0.0
  %173 = vmatprep.subr.mxu0 0.0
  %174 = vmatpush1.msra.mxu0 0.0
  %175 = vmatprep.subr.mxu0 0.0
  %176 = vmatpush1.msra.mxu0 0.0
  %177 = vmatprep.subr.mxu0 0.0
  %178 = vmatpush1.msra.mxu0 %v70
  %179 = vmatprep.subr.mxu0 0.0
  %180 = vmatpush2.msra.mxu0 0.0
  %181 = vmatprep.subr.mxu0 0.0
  %182 = vmatpush2.msra.mxu0 0.0
  %183 = vmatprep.subr.mxu0 0.0
  %184 = vmatpush2.msra.mxu0 0.0
  %185 = vmatprep.subr.mxu0 0.0
  %186 = vmatpush2.msra.mxu0 0.0
  %187 = vmatprep.subr.mxu0 0.0
  %188 = vmatpush2.msra.mxu0 0.0
  %189 = vmatprep.subr.mxu0 0.0
  %190 = vmatpush2.msra.mxu0 0.0
  %191 = vmatprep.subr.mxu0 0.0
  %192 = vmatpush2.msra.mxu0 0.0
  %193 = vmatprep.subr.mxu0 0.0
  %194 = vmatpush2.msra.mxu0 0.0
  %195 = vmatprep.subr.mxu0 0.0
  %196 = vmatpush2.msra.mxu0 0.0
  %197 = vmatprep.subr.mxu0 0.0
  %198 = vmatpush2.msra.mxu0 0.0
  %199 = vmatprep.subr.mxu0 0.0
  %200 = vmatpush2.msra.mxu0 0.0
  %201 = vmatprep.subr.mxu0 0.0
  %202 = vmatpush2.msra.mxu0 0.0
  %203 = vmatprep.subr.mxu0 0.0
  %204 = vmatpush2.msra.mxu0 0.0
  %205 = vmatprep.subr.mxu0 0.0
  %206 = vmatpush2.msra.mxu0 0.0
  %207 = vmatprep.subr.mxu0 0.0
  %208 = vmatpush2.msra.mxu0 0.0
  %209 = vmatprep.subr.mxu0 0.0
  %210 = vmatpush2.msra.mxu0 0.0
  %211 = vmatprep.mubr.f32.mxu0 0.0
  %212 = vmatmul.mubr.f32.gmra.mxu0 %v145
  %v213 = vpop.f32.mrf.mxu0
  %v214 = vadd.f32 %v49, %v213
  %v215 = vpop.f32.mrf.mxu0
  %216 = vdwg.mxu0
  %v217 = vmax.f32 %v143, 0.0
  %v218 = vsub.f32 0.0, %v217
  %v219 = vmul.f32 %v218, 1.442695
  %v220 = vpow.pop %v219
  %s221 = scalar_lea.vmem %s0, 4
  %v222 = vld [vmem:[%s221] sm:$0x3]
  %v224 = vsel %vm64, %v222, 0
  %226 = vmatprep.subr.mxu0 0.0
  %227 = vmatpush1.msra.mxu0 0.0
  %228 = vmatprep.subr.mxu0 0.0
  %229 = vmatpush1.msra.mxu0 0.0
  %230 = vmatprep.subr.mxu0 0.0
  %231 = vmatpush1.msra.mxu0 0.0
  %232 = vmatprep.subr.mxu0 0.0
  %233 = vmatpush1.msra.mxu0 0.0
  %234 = vmatprep.subr.mxu0 0.0
  %235 = vmatpush1.msra.mxu0 0.0
  %236 = vmatprep.subr.mxu0 0.0
  %237 = vmatpush1.msra.mxu0 0.0
  %238 = vmatprep.subr.mxu0 0.0
  %239 = vmatpush1.msra.mxu0 0.0
  %240 = vmatprep.subr.mxu0 0.0
  %241 = vmatpush1.msra.mxu0 0.0
  %242 = vmatprep.subr.mxu0 0.0
  %243 = vmatpush1.msra.mxu0 0.0
  %244 = vmatprep.subr.mxu0 0.0
  %245 = vmatpush1.msra.mxu0 0.0
  %246 = vmatprep.subr.mxu0 0.0
  %247 = vmatpush1.msra.mxu0 0.0
  %248 = vmatprep.subr.mxu0 0.0
  %249 = vmatpush1.msra.mxu0 0.0
  %250 = vmatprep.subr.mxu0 0.0
  %251 = vmatpush1.msra.mxu0 0.0
  %252 = vmatprep.subr.mxu0 0.0
  %253 = vmatpush1.msra.mxu0 0.0
  %254 = vmatprep.subr.mxu0 0.0
  %255 = vmatpush1.msra.mxu0 0.0
  %256 = vmatprep.subr.mxu0 0.0
  %257 = vmatpush1.msra.mxu0 %v70
  %258 = vmatprep.subr.mxu0 0.0
  %259 = vmatpush2.msra.mxu0 0.0
  %260 = vmatprep.subr.mxu0 0.0
  %261 = vmatpush2.msra.mxu0 0.0
  %262 = vmatprep.subr.mxu0 0.0
  %263 = vmatpush2.msra.mxu0 0.0
  %264 = vmatprep.subr.mxu0 0.0
  %265 = vmatpush2.msra.mxu0 0.0
  %266 = vmatprep.subr.mxu0 0.0
  %267 = vmatpush2.msra.mxu0 0.0
  %268 = vmatprep.subr.mxu0 0.0
  %269 = vmatpush2.msra.mxu0 0.0
  %270 = vmatprep.subr.mxu0 0.0
  %271 = vmatpush2.msra.mxu0 0.0
  %272 = vmatprep.subr.mxu0 0.0
  %273 = vmatpush2.msra.mxu0 0.0
  %274 = vmatprep.subr.mxu0 0.0
  %275 = vmatpush2.msra.mxu0 0.0
  %276 = vmatprep.subr.mxu0 0.0
  %277 = vmatpush2.msra.mxu0 0.0
  %278 = vmatprep.subr.mxu0 0.0
  %279 = vmatpush2.msra.mxu0 0.0
  %280 = vmatprep.subr.mxu0 0.0
  %281 = vmatpush2.msra.mxu0 0.0
  %282 = vmatprep.subr.mxu0 0.0
  %283 = vmatpush2.msra.mxu0 0.0
  %284 = vmatprep.subr.mxu0 0.0
  %285 = vmatpush2.msra.mxu0 0.0
  %286 = vmatprep.subr.mxu0 0.0
  %287 = vmatpush2.msra.mxu0 0.0
  %288 = vmatprep.subr.mxu0 0.0
  %289 = vmatpush2.msra.mxu0 0.0
  %290 = vmatprep.mubr.f32.mxu0 0.0
  %291 = vmatmul.mubr.f32.gmra.mxu0 %v224
  %v292 = vpop.f32.mrf.mxu0
  %v293 = vadd.f32 %v49, %v292
  %v294 = vpop.f32.mrf.mxu0
  %295 = vdwg.mxu0
  %v296 = vmax.f32 %v222, 0.0
  %v297 = vsub.f32 0.0, %v296
  %v298 = vmul.f32 %v297, 1.442695
  %v299 = vpow.pop %v298
  %s300 = scalar_lea.vmem %s0, 6
  %v301 = vld [vmem:[%s300] sm:$0x3]
  %v303 = vsel %vm64, %v301, 0
  %305 = vmatprep.subr.mxu0 0.0
  %306 = vmatpush1.msra.mxu0 0.0
  %307 = vmatprep.subr.mxu0 0.0
  %308 = vmatpush1.msra.mxu0 0.0
  %309 = vmatprep.subr.mxu0 0.0
  %310 = vmatpush1.msra.mxu0 0.0
  %311 = vmatprep.subr.mxu0 0.0
  %312 = vmatpush1.msra.mxu0 0.0
  %313 = vmatprep.subr.mxu0 0.0
  %314 = vmatpush1.msra.mxu0 0.0
  %315 = vmatprep.subr.mxu0 0.0
  %316 = vmatpush1.msra.mxu0 0.0
  %317 = vmatprep.subr.mxu0 0.0
  %318 = vmatpush1.msra.mxu0 0.0
  %319 = vmatprep.subr.mxu0 0.0
  %320 = vmatpush1.msra.mxu0 0.0
  %321 = vmatprep.subr.mxu0 0.0
  %322 = vmatpush1.msra.mxu0 0.0
  %323 = vmatprep.subr.mxu0 0.0
  %324 = vmatpush1.msra.mxu0 0.0
  %325 = vmatprep.subr.mxu0 0.0
  %326 = vmatpush1.msra.mxu0 0.0
  %327 = vmatprep.subr.mxu0 0.0
  %328 = vmatpush1.msra.mxu0 0.0
  %329 = vmatprep.subr.mxu0 0.0
  %330 = vmatpush1.msra.mxu0 0.0
  %331 = vmatprep.subr.mxu0 0.0
  %332 = vmatpush1.msra.mxu0 0.0
  %333 = vmatprep.subr.mxu0 0.0
  %334 = vmatpush1.msra.mxu0 0.0
  %335 = vmatprep.subr.mxu0 0.0
  %336 = vmatpush1.msra.mxu0 %v70
  %337 = vmatprep.subr.mxu0 0.0
  %338 = vmatpush2.msra.mxu0 0.0
  %339 = vmatprep.subr.mxu0 0.0
  %340 = vmatpush2.msra.mxu0 0.0
  %341 = vmatprep.subr.mxu0 0.0
  %342 = vmatpush2.msra.mxu0 0.0
  %343 = vmatprep.subr.mxu0 0.0
  %344 = vmatpush2.msra.mxu0 0.0
  %345 = vmatprep.subr.mxu0 0.0
  %346 = vmatpush2.msra.mxu0 0.0
  %347 = vmatprep.subr.mxu0 0.0
  %348 = vmatpush2.msra.mxu0 0.0
  %349 = vmatprep.subr.mxu0 0.0
  %350 = vmatpush2.msra.mxu0 0.0
  %351 = vmatprep.subr.mxu0 0.0
  %352 = vmatpush2.msra.mxu0 0.0
  %353 = vmatprep.subr.mxu0 0.0
  %354 = vmatpush2.msra.mxu0 0.0
  %355 = vmatprep.subr.mxu0 0.0
  %356 = vmatpush2.msra.mxu0 0.0
  %357 = vmatprep.subr.mxu0 0.0
  %358 = vmatpush2.msra.mxu0 0.0
  %359 = vmatprep.subr.mxu0 0.0
  %360 = vmatpush2.msra.mxu0 0.0
  %361 = vmatprep.subr.mxu0 0.0
  %362 = vmatpush2.msra.mxu0 0.0
  %363 = vmatprep.subr.mxu0 0.0
  %364 = vmatpush2.msra.mxu0 0.0
  %365 = vmatprep.subr.mxu0 0.0
  %366 = vmatpush2.msra.mxu0 0.0
  %367 = vmatprep.subr.mxu0 0.0
  %368 = vmatpush2.msra.mxu0 0.0
  %369 = vmatprep.mubr.f32.mxu0 0.0
  %370 = vmatmul.mubr.f32.gmra.mxu0 %v303
  %v371 = vpop.f32.mrf.mxu0
  %v372 = vadd.f32 %v49, %v371
  %v373 = vpop.f32.mrf.mxu0
  %374 = vdwg.mxu0
  %v375 = vmax.f32 %v301, 0.0
  %v376 = vsub.f32 0.0, %v375
  %v377 = vmul.f32 %v376, 1.442695
  %v378 = vpow.pop %v377
  %s379 = scalar_lea.vmem %s0, 8
  %v380 = vld [vmem:[%s379] sm:$0x3]
  %v382 = vsel %vm64, %v380, 0
  %384 = vmatprep.subr.mxu0 0.0
  %385 = vmatpush1.msra.mxu0 0.0
  %386 = vmatprep.subr.mxu0 0.0
  %387 = vmatpush1.msra.mxu0 0.0
  %388 = vmatprep.subr.mxu0 0.0
  %389 = vmatpush1.msra.mxu0 0.0
  %390 = vmatprep.subr.mxu0 0.0
  %391 = vmatpush1.msra.mxu0 0.0
  %392 = vmatprep.subr.mxu0 0.0
  %393 = vmatpush1.msra.mxu0 0.0
  %394 = vmatprep.subr.mxu0 0.0
  %395 = vmatpush1.msra.mxu0 0.0
  %396 = vmatprep.subr.mxu0 0.0
  %397 = vmatpush1.msra.mxu0 0.0
  %398 = vmatprep.subr.mxu0 0.0
  %399 = vmatpush1.msra.mxu0 0.0
  %400 = vmatprep.subr.mxu0 0.0
  %401 = vmatpush1.msra.mxu0 0.0
  %402 = vmatprep.subr.mxu0 0.0
  %403 = vmatpush1.msra.mxu0 0.0
  %404 = vmatprep.subr.mxu0 0.0
  %405 = vmatpush1.msra.mxu0 0.0
  %406 = vmatprep.subr.mxu0 0.0
  %407 = vmatpush1.msra.mxu0 0.0
  %408 = vmatprep.subr.mxu0 0.0
  %409 = vmatpush1.msra.mxu0 0.0
  %410 = vmatprep.subr.mxu0 0.0
  %411 = vmatpush1.msra.mxu0 0.0
  %412 = vmatprep.subr.mxu0 0.0
  %413 = vmatpush1.msra.mxu0 0.0
  %414 = vmatprep.subr.mxu0 0.0
  %415 = vmatpush1.msra.mxu0 %v70
  %416 = vmatprep.subr.mxu0 0.0
  %417 = vmatpush2.msra.mxu0 0.0
  %418 = vmatprep.subr.mxu0 0.0
  %419 = vmatpush2.msra.mxu0 0.0
  %420 = vmatprep.subr.mxu0 0.0
  %421 = vmatpush2.msra.mxu0 0.0
  %422 = vmatprep.subr.mxu0 0.0
  %423 = vmatpush2.msra.mxu0 0.0
  %424 = vmatprep.subr.mxu0 0.0
  %425 = vmatpush2.msra.mxu0 0.0
  %426 = vmatprep.subr.mxu0 0.0
  %427 = vmatpush2.msra.mxu0 0.0
  %428 = vmatprep.subr.mxu0 0.0
  %429 = vmatpush2.msra.mxu0 0.0
  %430 = vmatprep.subr.mxu0 0.0
  %431 = vmatpush2.msra.mxu0 0.0
  %432 = vmatprep.subr.mxu0 0.0
  %433 = vmatpush2.msra.mxu0 0.0
  %434 = vmatprep.subr.mxu0 0.0
  %435 = vmatpush2.msra.mxu0 0.0
  %436 = vmatprep.subr.mxu0 0.0
  %437 = vmatpush2.msra.mxu0 0.0
  %438 = vmatprep.subr.mxu0 0.0
  %439 = vmatpush2.msra.mxu0 0.0
  %440 = vmatprep.subr.mxu0 0.0
  %441 = vmatpush2.msra.mxu0 0.0
  %442 = vmatprep.subr.mxu0 0.0
  %443 = vmatpush2.msra.mxu0 0.0
  %444 = vmatprep.subr.mxu0 0.0
  %445 = vmatpush2.msra.mxu0 0.0
  %446 = vmatprep.subr.mxu0 0.0
  %447 = vmatpush2.msra.mxu0 0.0
  %448 = vmatprep.mubr.f32.mxu0 0.0
  %449 = vmatmul.mubr.f32.gmra.mxu0 %v382
  %v450 = vpop.f32.mrf.mxu0
  %v451 = vadd.f32 %v49, %v450
  %v452 = vpop.f32.mrf.mxu0
  %453 = vdwg.mxu0
  %v454 = vmax.f32 %v380, 0.0
  %v455 = vsub.f32 0.0, %v454
  %v456 = vmul.f32 %v455, 1.442695
  %v457 = vpow.pop %v456
  %s458 = scalar_lea.vmem %s0, 10
  %v459 = vld [vmem:[%s458] sm:$0x3]
  %v461 = vsel %vm64, %v459, 0
  %463 = vmatprep.subr.mxu0 0.0
  %464 = vmatpush1.msra.mxu0 0.0
  %465 = vmatprep.subr.mxu0 0.0
  %466 = vmatpush1.msra.mxu0 0.0
  %467 = vmatprep.subr.mxu0 0.0
  %468 = vmatpush1.msra.mxu0 0.0
  %469 = vmatprep.subr.mxu0 0.0
  %470 = vmatpush1.msra.mxu0 0.0
  %471 = vmatprep.subr.mxu0 0.0
  %472 = vmatpush1.msra.mxu0 0.0
  %473 = vmatprep.subr.mxu0 0.0
  %474 = vmatpush1.msra.mxu0 0.0
  %475 = vmatprep.subr.mxu0 0.0
  %476 = vmatpush1.msra.mxu0 0.0
  %477 = vmatprep.subr.mxu0 0.0
  %478 = vmatpush1.msra.mxu0 0.0
  %479 = vmatprep.subr.mxu0 0.0
  %480 = vmatpush1.msra.mxu0 0.0
  %481 = vmatprep.subr.mxu0 0.0
  %482 = vmatpush1.msra.mxu0 0.0
  %483 = vmatprep.subr.mxu0 0.0
  %484 = vmatpush1.msra.mxu0 0.0
  %485 = vmatprep.subr.mxu0 0.0
  %486 = vmatpush1.msra.mxu0 0.0
  %487 = vmatprep.subr.mxu0 0.0
  %488 = vmatpush1.msra.mxu0 0.0
  %489 = vmatprep.subr.mxu0 0.0
  %490 = vmatpush1.msra.mxu0 0.0
  %491 = vmatprep.subr.mxu0 0.0
  %492 = vmatpush1.msra.mxu0 0.0
  %493 = vmatprep.subr.mxu0 0.0
  %494 = vmatpush1.msra.mxu0 %v70
  %495 = vmatprep.subr.mxu0 0.0
  %496 = vmatpush2.msra.mxu0 0.0
  %497 = vmatprep.subr.mxu0 0.0
  %498 = vmatpush2.msra.mxu0 0.0
  %499 = vmatprep.subr.mxu0 0.0
  %500 = vmatpush2.msra.mxu0 0.0
  %501 = vmatprep.subr.mxu0 0.0
  %502 = vmatpush2.msra.mxu0 0.0
  %503 = vmatprep.subr.mxu0 0.0
  %504 = vmatpush2.msra.mxu0 0.0
  %505 = vmatprep.subr.mxu0 0.0
  %506 = vmatpush2.msra.mxu0 0.0
  %507 = vmatprep.subr.mxu0 0.0
  %508 = vmatpush2.msra.mxu0 0.0
  %509 = vmatprep.subr.mxu0 0.0
  %510 = vmatpush2.msra.mxu0 0.0
  %511 = vmatprep.subr.mxu0 0.0
  %512 = vmatpush2.msra.mxu0 0.0
  %513 = vmatprep.subr.mxu0 0.0
  %514 = vmatpush2.msra.mxu0 0.0
  %515 = vmatprep.subr.mxu0 0.0
  %516 = vmatpush2.msra.mxu0 0.0
  %517 = vmatprep.subr.mxu0 0.0
  %518 = vmatpush2.msra.mxu0 0.0
  %519 = vmatprep.subr.mxu0 0.0
  %520 = vmatpush2.msra.mxu0 0.0
  %521 = vmatprep.subr.mxu0 0.0
  %522 = vmatpush2.msra.mxu0 0.0
  %523 = vmatprep.subr.mxu0 0.0
  %524 = vmatpush2.msra.mxu0 0.0
  %525 = vmatprep.subr.mxu0 0.0
  %526 = vmatpush2.msra.mxu0 0.0
  %527 = vmatprep.mubr.f32.mxu0 0.0
  %528 = vmatmul.mubr.f32.gmra.mxu0 %v461
  %v529 = vpop.f32.mrf.mxu0
  %v530 = vadd.f32 %v49, %v529
  %v531 = vpop.f32.mrf.mxu0
  %532 = vdwg.mxu0
  %v533 = vmax.f32 %v459, 0.0
  %v534 = vsub.f32 0.0, %v533
  %v535 = vmul.f32 %v534, 1.442695
  %v536 = vpow.pop %v535
  %s537 = scalar_lea.vmem %s0, 12
  %v538 = vld [vmem:[%s537] sm:$0x3]
  %v540 = vsel %vm64, %v538, 0
  %542 = vmatprep.subr.mxu0 0.0
  %543 = vmatpush1.msra.mxu0 0.0
  %544 = vmatprep.subr.mxu0 0.0
  %545 = vmatpush1.msra.mxu0 0.0
  %546 = vmatprep.subr.mxu0 0.0
  %547 = vmatpush1.msra.mxu0 0.0
  %548 = vmatprep.subr.mxu0 0.0
  %549 = vmatpush1.msra.mxu0 0.0
  %550 = vmatprep.subr.mxu0 0.0
  %551 = vmatpush1.msra.mxu0 0.0
  %552 = vmatprep.subr.mxu0 0.0
  %553 = vmatpush1.msra.mxu0 0.0
  %554 = vmatprep.subr.mxu0 0.0
  %555 = vmatpush1.msra.mxu0 0.0
  %556 = vmatprep.subr.mxu0 0.0
  %557 = vmatpush1.msra.mxu0 0.0
  %558 = vmatprep.subr.mxu0 0.0
  %559 = vmatpush1.msra.mxu0 0.0
  %560 = vmatprep.subr.mxu0 0.0
  %561 = vmatpush1.msra.mxu0 0.0
  %562 = vmatprep.subr.mxu0 0.0
  %563 = vmatpush1.msra.mxu0 0.0
  %564 = vmatprep.subr.mxu0 0.0
  %565 = vmatpush1.msra.mxu0 0.0
  %566 = vmatprep.subr.mxu0 0.0
  %567 = vmatpush1.msra.mxu0 0.0
  %568 = vmatprep.subr.mxu0 0.0
  %569 = vmatpush1.msra.mxu0 0.0
  %570 = vmatprep.subr.mxu0 0.0
  %571 = vmatpush1.msra.mxu0 0.0
  %572 = vmatprep.subr.mxu0 0.0
  %573 = vmatpush1.msra.mxu0 %v70
  %574 = vmatprep.subr.mxu0 0.0
  %575 = vmatpush2.msra.mxu0 0.0
  %576 = vmatprep.subr.mxu0 0.0
  %577 = vmatpush2.msra.mxu0 0.0
  %578 = vmatprep.subr.mxu0 0.0
  %579 = vmatpush2.msra.mxu0 0.0
  %580 = vmatprep.subr.mxu0 0.0
  %581 = vmatpush2.msra.mxu0 0.0
  %582 = vmatprep.subr.mxu0 0.0
  %583 = vmatpush2.msra.mxu0 0.0
  %584 = vmatprep.subr.mxu0 0.0
  %585 = vmatpush2.msra.mxu0 0.0
  %586 = vmatprep.subr.mxu0 0.0
  %587 = vmatpush2.msra.mxu0 0.0
  %588 = vmatprep.subr.mxu0 0.0
  %589 = vmatpush2.msra.mxu0 0.0
  %590 = vmatprep.subr.mxu0 0.0
  %591 = vmatpush2.msra.mxu0 0.0
  %592 = vmatprep.subr.mxu0 0.0
  %593 = vmatpush2.msra.mxu0 0.0
  %594 = vmatprep.subr.mxu0 0.0
  %595 = vmatpush2.msra.mxu0 0.0
  %596 = vmatprep.subr.mxu0 0.0
  %597 = vmatpush2.msra.mxu0 0.0
  %598 = vmatprep.subr.mxu0 0.0
  %599 = vmatpush2.msra.mxu0 0.0
  %600 = vmatprep.subr.mxu0 0.0
  %601 = vmatpush2.msra.mxu0 0.0
  %602 = vmatprep.subr.mxu0 0.0
  %603 = vmatpush2.msra.mxu0 0.0
  %604 = vmatprep.subr.mxu0 0.0
  %605 = vmatpush2.msra.mxu0 0.0
  %606 = vmatprep.mubr.f32.mxu0 0.0
  %607 = vmatmul.mubr.f32.gmra.mxu0 %v540
  %v608 = vpop.f32.mrf.mxu0
  %v609 = vadd.f32 %v49, %v608
  %v610 = vpop.f32.mrf.mxu0
  %611 = vdwg.mxu0
  %v612 = vmax.f32 %v538, 0.0
  %v613 = vsub.f32 0.0, %v612
  %v614 = vmul.f32 %v613, 1.442695
  %v615 = vpow.pop %v614
  %s616 = scalar_lea.vmem %s0, 14
  %v617 = vld [vmem:[%s616] sm:$0x3]
  %v619 = vsel %vm64, %v617, 0
  %621 = vmatprep.subr.mxu0 0.0
  %622 = vmatpush1.msra.mxu0 0.0
  %623 = vmatprep.subr.mxu0 0.0
  %624 = vmatpush1.msra.mxu0 0.0
  %625 = vmatprep.subr.mxu0 0.0
  %626 = vmatpush1.msra.mxu0 0.0
  %627 = vmatprep.subr.mxu0 0.0
  %628 = vmatpush1.msra.mxu0 0.0
  %629 = vmatprep.subr.mxu0 0.0
  %630 = vmatpush1.msra.mxu0 0.0
  %631 = vmatprep.subr.mxu0 0.0
  %632 = vmatpush1.msra.mxu0 0.0
  %633 = vmatprep.subr.mxu0 0.0
  %634 = vmatpush1.msra.mxu0 0.0
  %635 = vmatprep.subr.mxu0 0.0
  %636 = vmatpush1.msra.mxu0 0.0
  %637 = vmatprep.subr.mxu0 0.0
  %638 = vmatpush1.msra.mxu0 0.0
  %639 = vmatprep.subr.mxu0 0.0
  %640 = vmatpush1.msra.mxu0 0.0
  %641 = vmatprep.subr.mxu0 0.0
  %642 = vmatpush1.msra.mxu0 0.0
  %643 = vmatprep.subr.mxu0 0.0
  %644 = vmatpush1.msra.mxu0 0.0
  %645 = vmatprep.subr.mxu0 0.0
  %646 = vmatpush1.msra.mxu0 0.0
  %647 = vmatprep.subr.mxu0 0.0
  %648 = vmatpush1.msra.mxu0 0.0
  %649 = vmatprep.subr.mxu0 0.0
  %650 = vmatpush1.msra.mxu0 0.0
  %651 = vmatprep.subr.mxu0 0.0
  %652 = vmatpush1.msra.mxu0 %v70
  %653 = vmatprep.subr.mxu0 0.0
  %654 = vmatpush2.msra.mxu0 0.0
  %655 = vmatprep.subr.mxu0 0.0
  %656 = vmatpush2.msra.mxu0 0.0
  %657 = vmatprep.subr.mxu0 0.0
  %658 = vmatpush2.msra.mxu0 0.0
  %659 = vmatprep.subr.mxu0 0.0
  %660 = vmatpush2.msra.mxu0 0.0
  %661 = vmatprep.subr.mxu0 0.0
  %662 = vmatpush2.msra.mxu0 0.0
  %663 = vmatprep.subr.mxu0 0.0
  %664 = vmatpush2.msra.mxu0 0.0
  %665 = vmatprep.subr.mxu0 0.0
  %666 = vmatpush2.msra.mxu0 0.0
  %667 = vmatprep.subr.mxu0 0.0
  %668 = vmatpush2.msra.mxu0 0.0
  %669 = vmatprep.subr.mxu0 0.0
  %670 = vmatpush2.msra.mxu0 0.0
  %671 = vmatprep.subr.mxu0 0.0
  %672 = vmatpush2.msra.mxu0 0.0
  %673 = vmatprep.subr.mxu0 0.0
  %674 = vmatpush2.msra.mxu0 0.0
  %675 = vmatprep.subr.mxu0 0.0
  %676 = vmatpush2.msra.mxu0 0.0
  %677 = vmatprep.subr.mxu0 0.0
  %678 = vmatpush2.msra.mxu0 0.0
  %679 = vmatprep.subr.mxu0 0.0
  %680 = vmatpush2.msra.mxu0 0.0
  %681 = vmatprep.subr.mxu0 0.0
  %682 = vmatpush2.msra.mxu0 0.0
  %683 = vmatprep.subr.mxu0 0.0
  %684 = vmatpush2.msra.mxu0 0.0
  %685 = vmatprep.mubr.f32.mxu0 0.0
  %686 = vmatmul.mubr.f32.gmra.mxu0 %v619
  %v687 = vpop.f32.mrf.mxu0
  %v688 = vadd.f32 %v49, %v687
  %v689 = vpop.f32.mrf.mxu0
  %690 = vdwg.mxu0
  %v691 = vmax.f32 %v617, 0.0
  %v692 = vsub.f32 0.0, %v691
  %v693 = vmul.f32 %v692, 1.442695
  %v694 = vpow.pop %v693
  %vm695 = vcmask 261120
  %v697 = vsel %vm695, %v58, 0
  %699 = vmatprep.subr.mxu0 0.0
  %700 = vmatpush1.msra.mxu0 0.0
  %701 = vmatprep.subr.mxu0 0.0
  %702 = vmatpush1.msra.mxu0 0.0
  %703 = vmatprep.subr.mxu0 0.0
  %704 = vmatpush1.msra.mxu0 0.0
  %705 = vmatprep.subr.mxu0 0.0
  %706 = vmatpush1.msra.mxu0 0.0
  %707 = vmatprep.subr.mxu0 0.0
  %708 = vmatpush1.msra.mxu0 0.0
  %709 = vmatprep.subr.mxu0 0.0
  %710 = vmatpush1.msra.mxu0 0.0
  %711 = vmatprep.subr.mxu0 0.0
  %712 = vmatpush1.msra.mxu0 0.0
  %713 = vmatprep.subr.mxu0 0.0
  %714 = vmatpush1.msra.mxu0 0.0
  %715 = vmatprep.subr.mxu0 0.0
  %716 = vmatpush1.msra.mxu0 0.0
  %717 = vmatprep.subr.mxu0 0.0
  %718 = vmatpush1.msra.mxu0 0.0
  %719 = vmatprep.subr.mxu0 0.0
  %720 = vmatpush1.msra.mxu0 0.0
  %721 = vmatprep.subr.mxu0 0.0
  %722 = vmatpush1.msra.mxu0 0.0
  %723 = vmatprep.subr.mxu0 0.0
  %724 = vmatpush1.msra.mxu0 %v24
  %725 = vmatprep.subr.mxu0 0.0
  %726 = vmatpush1.msra.mxu0 %v23
  %727 = vmatprep.subr.mxu0 0.0
  %728 = vmatpush1.msra.mxu0 %v22
  %729 = vmatprep.subr.mxu0 0.0
  %730 = vmatpush1.msra.mxu0 %v21
  %731 = vmatprep.subr.mxu0 0.0
  %732 = vmatpush2.msra.mxu0 0.0
  %733 = vmatprep.subr.mxu0 0.0
  %734 = vmatpush2.msra.mxu0 0.0
  %735 = vmatprep.subr.mxu0 0.0
  %736 = vmatpush2.msra.mxu0 0.0
  %737 = vmatprep.subr.mxu0 0.0
  %738 = vmatpush2.msra.mxu0 0.0
  %739 = vmatprep.subr.mxu0 0.0
  %740 = vmatpush2.msra.mxu0 0.0
  %741 = vmatprep.subr.mxu0 0.0
  %742 = vmatpush2.msra.mxu0 0.0
  %743 = vmatprep.subr.mxu0 0.0
  %744 = vmatpush2.msra.mxu0 0.0
  %745 = vmatprep.subr.mxu0 0.0
  %746 = vmatpush2.msra.mxu0 0.0
  %747 = vmatprep.subr.mxu0 0.0
  %748 = vmatpush2.msra.mxu0 0.0
  %749 = vmatprep.subr.mxu0 0.0
  %750 = vmatpush2.msra.mxu0 0.0
  %751 = vmatprep.subr.mxu0 0.0
  %752 = vmatpush2.msra.mxu0 0.0
  %753 = vmatprep.subr.mxu0 0.0
  %754 = vmatpush2.msra.mxu0 0.0
  %755 = vmatprep.subr.mxu0 0.0
  %756 = vmatpush2.msra.mxu0 0.0
  %757 = vmatprep.subr.mxu0 0.0
  %758 = vmatpush2.msra.mxu0 0.0
  %759 = vmatprep.subr.mxu0 0.0
  %760 = vmatpush2.msra.mxu0 0.0
  %761 = vmatprep.subr.mxu0 0.0
  %762 = vmatpush2.msra.mxu0 0.0
  %763 = vmatprep.mubr.f32.mxu0 0.0
  %764 = vmatmul.mubr.f32.gmra.mxu0 %v697
  %v765 = vpop.f32.mrf.mxu0
  %v766 = vadd.f32 %v51, %v765
  %v767 = vpop.f32.mrf.mxu0
  %768 = vdwg.mxu0
  %v769 = vadd.f32 %v139, %v766
  %v770 = vxor.u32 %v769, 2147483648
  %v771 = vmul.f32 %v770, 1.442695
  %v772 = vpow.pop %v771
  %v773 = vadd.f32 %v772, 1.0
  %v774 = vrcp.pop %v773
  %v775 = vmul.f32 1.0, %v774
  %777 = vrot.lane.b32.xlu0 %v766, 64
  %v778 = vpop.permute.xlu0 %777
  %v780 = vmul.f32 %v775, %v778
  %782 = vrot.lane.b32.xlu0 %v780, 64
  %v783 = vpop.permute.xlu0 %782
  %v785 = vadd.f32 %v139, %v783
  %v786 = vtanh.pop %v785
  %v787 = vsub.f32 1.0, %v775
  %789 = vrot.lane.b32.xlu0 %v786, 96
  %v790 = vpop.permute.xlu0 %789
  %v792 = vmul.f32 %v787, %v790
  %793 = vrot.lane.b32.xlu0 %v58, 32
  %v794 = vpop.permute.xlu0 %793
  %v796 = vmul.f32 %v775, %v794
  %v797 = vadd.f32 %v792, %v796
  %v799 = vsel %vm695, %v60, 0
  %801 = vmatprep.subr.mxu0 0.0
  %802 = vmatpush1.msra.mxu0 0.0
  %803 = vmatprep.subr.mxu0 0.0
  %804 = vmatpush1.msra.mxu0 0.0
  %805 = vmatprep.subr.mxu0 0.0
  %806 = vmatpush1.msra.mxu0 0.0
  %807 = vmatprep.subr.mxu0 0.0
  %808 = vmatpush1.msra.mxu0 0.0
  %809 = vmatprep.subr.mxu0 0.0
  %810 = vmatpush1.msra.mxu0 0.0
  %811 = vmatprep.subr.mxu0 0.0
  %812 = vmatpush1.msra.mxu0 0.0
  %813 = vmatprep.subr.mxu0 0.0
  %814 = vmatpush1.msra.mxu0 0.0
  %815 = vmatprep.subr.mxu0 0.0
  %816 = vmatpush1.msra.mxu0 0.0
  %817 = vmatprep.subr.mxu0 0.0
  %818 = vmatpush1.msra.mxu0 0.0
  %819 = vmatprep.subr.mxu0 0.0
  %820 = vmatpush1.msra.mxu0 0.0
  %821 = vmatprep.subr.mxu0 0.0
  %822 = vmatpush1.msra.mxu0 0.0
  %823 = vmatprep.subr.mxu0 0.0
  %824 = vmatpush1.msra.mxu0 0.0
  %825 = vmatprep.subr.mxu0 0.0
  %826 = vmatpush1.msra.mxu0 %v33
  %827 = vmatprep.subr.mxu0 0.0
  %828 = vmatpush1.msra.mxu0 %v32
  %829 = vmatprep.subr.mxu0 0.0
  %830 = vmatpush1.msra.mxu0 %v31
  %831 = vmatprep.subr.mxu0 0.0
  %832 = vmatpush1.msra.mxu0 %v30
  %833 = vmatprep.subr.mxu0 0.0
  %834 = vmatpush2.msra.mxu0 0.0
  %835 = vmatprep.subr.mxu0 0.0
  %836 = vmatpush2.msra.mxu0 0.0
  %837 = vmatprep.subr.mxu0 0.0
  %838 = vmatpush2.msra.mxu0 0.0
  %839 = vmatprep.subr.mxu0 0.0
  %840 = vmatpush2.msra.mxu0 0.0
  %841 = vmatprep.subr.mxu0 0.0
  %842 = vmatpush2.msra.mxu0 0.0
  %843 = vmatprep.subr.mxu0 0.0
  %844 = vmatpush2.msra.mxu0 0.0
  %845 = vmatprep.subr.mxu0 0.0
  %846 = vmatpush2.msra.mxu0 0.0
  %847 = vmatprep.subr.mxu0 0.0
  %848 = vmatpush2.msra.mxu0 0.0
  %849 = vmatprep.subr.mxu0 0.0
  %850 = vmatpush2.msra.mxu0 0.0
  %851 = vmatprep.subr.mxu0 0.0
  %852 = vmatpush2.msra.mxu0 0.0
  %853 = vmatprep.subr.mxu0 0.0
  %854 = vmatpush2.msra.mxu0 0.0
  %855 = vmatprep.subr.mxu0 0.0
  %856 = vmatpush2.msra.mxu0 0.0
  %857 = vmatprep.subr.mxu0 0.0
  %858 = vmatpush2.msra.mxu0 0.0
  %859 = vmatprep.subr.mxu0 0.0
  %860 = vmatpush2.msra.mxu0 0.0
  %861 = vmatprep.subr.mxu0 0.0
  %862 = vmatpush2.msra.mxu0 0.0
  %863 = vmatprep.subr.mxu0 0.0
  %864 = vmatpush2.msra.mxu0 0.0
  %865 = vmatprep.mubr.f32.mxu0 0.0
  %866 = vmatmul.mubr.f32.gmra.mxu0 %v799
  %v867 = vpop.f32.mrf.mxu0
  %v868 = vadd.f32 0.0, %v867
  %v869 = vpop.f32.mrf.mxu0
  %870 = vdwg.mxu0
  %872 = vrot.lane.b32.xlu0 %v797, 96
  %v873 = vpop.permute.xlu0 %872
  %v874 = vsel %vm695, %v873, 0
  %876 = vmatprep.subr.mxu0 0.0
  %877 = vmatpush1.msra.mxu0 0.0
  %878 = vmatprep.subr.mxu0 0.0
  %879 = vmatpush1.msra.mxu0 0.0
  %880 = vmatprep.subr.mxu0 0.0
  %881 = vmatpush1.msra.mxu0 0.0
  %882 = vmatprep.subr.mxu0 0.0
  %883 = vmatpush1.msra.mxu0 0.0
  %884 = vmatprep.subr.mxu0 0.0
  %885 = vmatpush1.msra.mxu0 0.0
  %886 = vmatprep.subr.mxu0 0.0
  %887 = vmatpush1.msra.mxu0 0.0
  %888 = vmatprep.subr.mxu0 0.0
  %889 = vmatpush1.msra.mxu0 0.0
  %890 = vmatprep.subr.mxu0 0.0
  %891 = vmatpush1.msra.mxu0 0.0
  %892 = vmatprep.subr.mxu0 0.0
  %893 = vmatpush1.msra.mxu0 0.0
  %894 = vmatprep.subr.mxu0 0.0
  %895 = vmatpush1.msra.mxu0 0.0
  %896 = vmatprep.subr.mxu0 0.0
  %897 = vmatpush1.msra.mxu0 0.0
  %898 = vmatprep.subr.mxu0 0.0
  %899 = vmatpush1.msra.mxu0 0.0
  %900 = vmatprep.subr.mxu0 0.0
  %901 = vmatpush1.msra.mxu0 %v28
  %902 = vmatprep.subr.mxu0 0.0
  %903 = vmatpush1.msra.mxu0 %v27
  %904 = vmatprep.subr.mxu0 0.0
  %905 = vmatpush1.msra.mxu0 %v26
  %906 = vmatprep.subr.mxu0 0.0
  %907 = vmatpush1.msra.mxu0 %v25
  %908 = vmatprep.subr.mxu0 0.0
  %909 = vmatpush2.msra.mxu0 0.0
  %910 = vmatprep.subr.mxu0 0.0
  %911 = vmatpush2.msra.mxu0 0.0
  %912 = vmatprep.subr.mxu0 0.0
  %913 = vmatpush2.msra.mxu0 0.0
  %914 = vmatprep.subr.mxu0 0.0
  %915 = vmatpush2.msra.mxu0 0.0
  %916 = vmatprep.subr.mxu0 0.0
  %917 = vmatpush2.msra.mxu0 0.0
  %918 = vmatprep.subr.mxu0 0.0
  %919 = vmatpush2.msra.mxu0 0.0
  %920 = vmatprep.subr.mxu0 0.0
  %921 = vmatpush2.msra.mxu0 0.0
  %922 = vmatprep.subr.mxu0 0.0
  %923 = vmatpush2.msra.mxu0 0.0
  %924 = vmatprep.subr.mxu0 0.0
  %925 = vmatpush2.msra.mxu0 0.0
  %926 = vmatprep.subr.mxu0 0.0
  %927 = vmatpush2.msra.mxu0 0.0
  %928 = vmatprep.subr.mxu0 0.0
  %929 = vmatpush2.msra.mxu0 0.0
  %930 = vmatprep.subr.mxu0 0.0
  %931 = vmatpush2.msra.mxu0 0.0
  %932 = vmatprep.subr.mxu0 0.0
  %933 = vmatpush2.msra.mxu0 0.0
  %934 = vmatprep.subr.mxu0 0.0
  %935 = vmatpush2.msra.mxu0 0.0
  %936 = vmatprep.subr.mxu0 0.0
  %937 = vmatpush2.msra.mxu0 0.0
  %938 = vmatprep.subr.mxu0 0.0
  %939 = vmatpush2.msra.mxu0 0.0
  %940 = vmatprep.mubr.f32.mxu0 0.0
  %941 = vmatmul.mubr.f32.gmra.mxu0 %v874
  %v942 = vpop.f32.mrf.mxu0
  %v943 = vadd.f32 %v868, %v942
  %v944 = vpop.f32.mrf.mxu0
  %945 = vdwg.mxu0
  %v946 = vadd.f32 %v943, %v53
  %v947 = vxor.u32 %v946, 2147483648
  %v948 = vmul.f32 %v947, 1.442695
  %v949 = vpow.pop %v948
  %v950 = vadd.f32 %v949, 1.0
  %v951 = vrcp.pop %v950
  %v952 = vmul.f32 1.0, %v951
  %954 = vrot.lane.b32.xlu0 %v946, 32
  %v955 = vpop.permute.xlu0 %954
  %v957 = vmul.f32 %v952, %v955
  %959 = vrot.lane.b32.xlu0 %v957, 64
  %v960 = vpop.permute.xlu0 %959
  %v962 = vadd.f32 %v946, %v960
  %v963 = vtanh.pop %v962
  %v964 = vsub.f32 1.0, %v952
  %966 = vrot.lane.b32.xlu0 %v963, 96
  %v967 = vpop.permute.xlu0 %966
  %v969 = vmul.f32 %v964, %v967
  %970 = vrot.lane.b32.xlu0 %v60, 32
  %v971 = vpop.permute.xlu0 %970
  %v973 = vmul.f32 %v952, %v971
  %v974 = vadd.f32 %v969, %v973
  %v976 = vsel %vm695, %v62, 0
  %978 = vmatprep.subr.mxu0 0.0
  %979 = vmatpush1.msra.mxu0 0.0
  %980 = vmatprep.subr.mxu0 0.0
  %981 = vmatpush1.msra.mxu0 0.0
  %982 = vmatprep.subr.mxu0 0.0
  %983 = vmatpush1.msra.mxu0 0.0
  %984 = vmatprep.subr.mxu0 0.0
  %985 = vmatpush1.msra.mxu0 0.0
  %986 = vmatprep.subr.mxu0 0.0
  %987 = vmatpush1.msra.mxu0 0.0
  %988 = vmatprep.subr.mxu0 0.0
  %989 = vmatpush1.msra.mxu0 0.0
  %990 = vmatprep.subr.mxu0 0.0
  %991 = vmatpush1.msra.mxu0 0.0
  %992 = vmatprep.subr.mxu0 0.0
  %993 = vmatpush1.msra.mxu0 0.0
  %994 = vmatprep.subr.mxu0 0.0
  %995 = vmatpush1.msra.mxu0 0.0
  %996 = vmatprep.subr.mxu0 0.0
  %997 = vmatpush1.msra.mxu0 0.0
  %998 = vmatprep.subr.mxu0 0.0
  %999 = vmatpush1.msra.mxu0 0.0
  %1000 = vmatprep.subr.mxu0 0.0
  %1001 = vmatpush1.msra.mxu0 0.0
  %1002 = vmatprep.subr.mxu0 0.0
  %1003 = vmatpush1.msra.mxu0 %v43
  %1004 = vmatprep.subr.mxu0 0.0
  %1005 = vmatpush1.msra.mxu0 %v42
  %1006 = vmatprep.subr.mxu0 0.0
  %1007 = vmatpush1.msra.mxu0 %v41
  %1008 = vmatprep.subr.mxu0 0.0
  %1009 = vmatpush1.msra.mxu0 %v40
  %1010 = vmatprep.subr.mxu0 0.0
  %1011 = vmatpush2.msra.mxu0 0.0
  %1012 = vmatprep.subr.mxu0 0.0
  %1013 = vmatpush2.msra.mxu0 0.0
  %1014 = vmatprep.subr.mxu0 0.0
  %1015 = vmatpush2.msra.mxu0 0.0
  %1016 = vmatprep.subr.mxu0 0.0
  %1017 = vmatpush2.msra.mxu0 0.0
  %1018 = vmatprep.subr.mxu0 0.0
  %1019 = vmatpush2.msra.mxu0 0.0
  %1020 = vmatprep.subr.mxu0 0.0
  %1021 = vmatpush2.msra.mxu0 0.0
  %1022 = vmatprep.subr.mxu0 0.0
  %1023 = vmatpush2.msra.mxu0 0.0
  %1024 = vmatprep.subr.mxu0 0.0
  %1025 = vmatpush2.msra.mxu0 0.0
  %1026 = vmatprep.subr.mxu0 0.0
  %1027 = vmatpush2.msra.mxu0 0.0
  %1028 = vmatprep.subr.mxu0 0.0
  %1029 = vmatpush2.msra.mxu0 0.0
  %1030 = vmatprep.subr.mxu0 0.0
  %1031 = vmatpush2.msra.mxu0 0.0
  %1032 = vmatprep.subr.mxu0 0.0
  %1033 = vmatpush2.msra.mxu0 0.0
  %1034 = vmatprep.subr.mxu0 0.0
  %1035 = vmatpush2.msra.mxu0 0.0
  %1036 = vmatprep.subr.mxu0 0.0
  %1037 = vmatpush2.msra.mxu0 0.0
  %1038 = vmatprep.subr.mxu0 0.0
  %1039 = vmatpush2.msra.mxu0 0.0
  %1040 = vmatprep.subr.mxu0 0.0
  %1041 = vmatpush2.msra.mxu0 0.0
  %1042 = vmatprep.mubr.f32.mxu0 0.0
  %1043 = vmatmul.mubr.f32.gmra.mxu0 %v976
  %v1044 = vpop.f32.mrf.mxu0
  %v1045 = vadd.f32 0.0, %v1044
  %v1046 = vpop.f32.mrf.mxu0
  %1047 = vdwg.mxu0
  %1049 = vrot.lane.b32.xlu0 %v974, 96
  %v1050 = vpop.permute.xlu0 %1049
  %v1051 = vsel %vm695, %v1050, 0
  %1053 = vmatprep.subr.mxu0 0.0
  %1054 = vmatpush1.msra.mxu0 0.0
  %1055 = vmatprep.subr.mxu0 0.0
  %1056 = vmatpush1.msra.mxu0 0.0
  %1057 = vmatprep.subr.mxu0 0.0
  %1058 = vmatpush1.msra.mxu0 0.0
  %1059 = vmatprep.subr.mxu0 0.0
  %1060 = vmatpush1.msra.mxu0 0.0
  %1061 = vmatprep.subr.mxu0 0.0
  %1062 = vmatpush1.msra.mxu0 0.0
  %1063 = vmatprep.subr.mxu0 0.0
  %1064 = vmatpush1.msra.mxu0 0.0
  %1065 = vmatprep.subr.mxu0 0.0
  %1066 = vmatpush1.msra.mxu0 0.0
  %1067 = vmatprep.subr.mxu0 0.0
  %1068 = vmatpush1.msra.mxu0 0.0
  %1069 = vmatprep.subr.mxu0 0.0
  %1070 = vmatpush1.msra.mxu0 0.0
  %1071 = vmatprep.subr.mxu0 0.0
  %1072 = vmatpush1.msra.mxu0 0.0
  %1073 = vmatprep.subr.mxu0 0.0
  %1074 = vmatpush1.msra.mxu0 0.0
  %1075 = vmatprep.subr.mxu0 0.0
  %1076 = vmatpush1.msra.mxu0 0.0
  %1077 = vmatprep.subr.mxu0 0.0
  %1078 = vmatpush1.msra.mxu0 %v38
  %1079 = vmatprep.subr.mxu0 0.0
  %1080 = vmatpush1.msra.mxu0 %v37
  %1081 = vmatprep.subr.mxu0 0.0
  %1082 = vmatpush1.msra.mxu0 %v36
  %1083 = vmatprep.subr.mxu0 0.0
  %1084 = vmatpush1.msra.mxu0 %v35
  %1085 = vmatprep.subr.mxu0 0.0
  %1086 = vmatpush2.msra.mxu0 0.0
  %1087 = vmatprep.subr.mxu0 0.0
  %1088 = vmatpush2.msra.mxu0 0.0
  %1089 = vmatprep.subr.mxu0 0.0
  %1090 = vmatpush2.msra.mxu0 0.0
  %1091 = vmatprep.subr.mxu0 0.0
  %1092 = vmatpush2.msra.mxu0 0.0
  %1093 = vmatprep.subr.mxu0 0.0
  %1094 = vmatpush2.msra.mxu0 0.0
  %1095 = vmatprep.subr.mxu0 0.0
  %1096 = vmatpush2.msra.mxu0 0.0
  %1097 = vmatprep.subr.mxu0 0.0
  %1098 = vmatpush2.msra.mxu0 0.0
  %1099 = vmatprep.subr.mxu0 0.0
  %1100 = vmatpush2.msra.mxu0 0.0
  %1101 = vmatprep.subr.mxu0 0.0
  %1102 = vmatpush2.msra.mxu0 0.0
  %1103 = vmatprep.subr.mxu0 0.0
  %1104 = vmatpush2.msra.mxu0 0.0
  %1105 = vmatprep.subr.mxu0 0.0
  %1106 = vmatpush2.msra.mxu0 0.0
  %1107 = vmatprep.subr.mxu0 0.0
  %1108 = vmatpush2.msra.mxu0 0.0
  %1109 = vmatprep.subr.mxu0 0.0
  %1110 = vmatpush2.msra.mxu0 0.0
  %1111 = vmatprep.subr.mxu0 0.0
  %1112 = vmatpush2.msra.mxu0 0.0
  %1113 = vmatprep.subr.mxu0 0.0
  %1114 = vmatpush2.msra.mxu0 0.0
  %1115 = vmatprep.subr.mxu0 0.0
  %1116 = vmatpush2.msra.mxu0 0.0
  %1117 = vmatprep.mubr.f32.mxu0 0.0
  %1118 = vmatmul.mubr.f32.gmra.mxu0 %v1051
  %v1119 = vpop.f32.mrf.mxu0
  %v1120 = vadd.f32 %v1045, %v1119
  %v1121 = vpop.f32.mrf.mxu0
  %1122 = vdwg.mxu0
  %v1123 = vadd.f32 %v1120, %v55
  %v1124 = vxor.u32 %v1123, 2147483648
  %v1125 = vmul.f32 %v1124, 1.442695
  %v1126 = vpow.pop %v1125
  %v1127 = vadd.f32 %v1126, 1.0
  %v1128 = vrcp.pop %v1127
  %v1129 = vmul.f32 1.0, %v1128
  %1131 = vrot.lane.b32.xlu0 %v1123, 32
  %v1132 = vpop.permute.xlu0 %1131
  %v1134 = vmul.f32 %v1129, %v1132
  %1136 = vrot.lane.b32.xlu0 %v1134, 64
  %v1137 = vpop.permute.xlu0 %1136
  %v1139 = vadd.f32 %v1123, %v1137
  %v1140 = vtanh.pop %v1139
  %v1141 = vsub.f32 1.0, %v1129
  %1143 = vrot.lane.b32.xlu0 %v1140, 96
  %v1144 = vpop.permute.xlu0 %1143
  %v1146 = vmul.f32 %v1141, %v1144
  %1147 = vrot.lane.b32.xlu0 %v62, 32
  %v1148 = vpop.permute.xlu0 %1147
  %v1150 = vmul.f32 %v1129, %v1148
  %v1151 = vadd.f32 %v1146, %v1150
  %1153 = vrot.lane.b32.xlu0 %v1151, 96
  %v1154 = vpop.permute.xlu0 %1153
  %vm1156 = vcmask 254976
  %1157 = vst.msk [vmem:[#allocation2] sm:$0x3] %vm1156, %v1154
  %1159 = vrot.lane.b32.xlu0 %v220, 28
  %v1160 = vpop.permute.xlu0 %1159
  %v1162 = vmul.f32 %v797, %v1160
  %v1163 = vmul.f32 %v974, %v1160
  %v1164 = vmul.f32 %v1151, %v1160
  %1166 = vrot.lane.b32.xlu0 %v1162, 96
  %v1167 = vpop.permute.xlu0 %1166
  %v1168 = vsel %vm695, %v1167, 0
  %1170 = vmatprep.subr.mxu0 0.0
  %1171 = vmatpush1.msra.mxu0 0.0
  %1172 = vmatprep.subr.mxu0 0.0
  %1173 = vmatpush1.msra.mxu0 0.0
  %1174 = vmatprep.subr.mxu0 0.0
  %1175 = vmatpush1.msra.mxu0 0.0
  %1176 = vmatprep.subr.mxu0 0.0
  %1177 = vmatpush1.msra.mxu0 0.0
  %1178 = vmatprep.subr.mxu0 0.0
  %1179 = vmatpush1.msra.mxu0 0.0
  %1180 = vmatprep.subr.mxu0 0.0
  %1181 = vmatpush1.msra.mxu0 0.0
  %1182 = vmatprep.subr.mxu0 0.0
  %1183 = vmatpush1.msra.mxu0 0.0
  %1184 = vmatprep.subr.mxu0 0.0
  %1185 = vmatpush1.msra.mxu0 0.0
  %1186 = vmatprep.subr.mxu0 0.0
  %1187 = vmatpush1.msra.mxu0 0.0
  %1188 = vmatprep.subr.mxu0 0.0
  %1189 = vmatpush1.msra.mxu0 0.0
  %1190 = vmatprep.subr.mxu0 0.0
  %1191 = vmatpush1.msra.mxu0 0.0
  %1192 = vmatprep.subr.mxu0 0.0
  %1193 = vmatpush1.msra.mxu0 0.0
  %1194 = vmatprep.subr.mxu0 0.0
  %1195 = vmatpush1.msra.mxu0 %v24
  %1196 = vmatprep.subr.mxu0 0.0
  %1197 = vmatpush1.msra.mxu0 %v23
  %1198 = vmatprep.subr.mxu0 0.0
  %1199 = vmatpush1.msra.mxu0 %v22
  %1200 = vmatprep.subr.mxu0 0.0
  %1201 = vmatpush1.msra.mxu0 %v21
  %1202 = vmatprep.subr.mxu0 0.0
  %1203 = vmatpush2.msra.mxu0 0.0
  %1204 = vmatprep.subr.mxu0 0.0
  %1205 = vmatpush2.msra.mxu0 0.0
  %1206 = vmatprep.subr.mxu0 0.0
  %1207 = vmatpush2.msra.mxu0 0.0
  %1208 = vmatprep.subr.mxu0 0.0
  %1209 = vmatpush2.msra.mxu0 0.0
  %1210 = vmatprep.subr.mxu0 0.0
  %1211 = vmatpush2.msra.mxu0 0.0
  %1212 = vmatprep.subr.mxu0 0.0
  %1213 = vmatpush2.msra.mxu0 0.0
  %1214 = vmatprep.subr.mxu0 0.0
  %1215 = vmatpush2.msra.mxu0 0.0
  %1216 = vmatprep.subr.mxu0 0.0
  %1217 = vmatpush2.msra.mxu0 0.0
  %1218 = vmatprep.subr.mxu0 0.0
  %1219 = vmatpush2.msra.mxu0 0.0
  %1220 = vmatprep.subr.mxu0 0.0
  %1221 = vmatpush2.msra.mxu0 0.0
  %1222 = vmatprep.subr.mxu0 0.0
  %1223 = vmatpush2.msra.mxu0 0.0
  %1224 = vmatprep.subr.mxu0 0.0
  %1225 = vmatpush2.msra.mxu0 0.0
  %1226 = vmatprep.subr.mxu0 0.0
  %1227 = vmatpush2.msra.mxu0 0.0
  %1228 = vmatprep.subr.mxu0 0.0
  %1229 = vmatpush2.msra.mxu0 0.0
  %1230 = vmatprep.subr.mxu0 0.0
  %1231 = vmatpush2.msra.mxu0 0.0
  %1232 = vmatprep.subr.mxu0 0.0
  %1233 = vmatpush2.msra.mxu0 0.0
  %1234 = vmatprep.mubr.f32.mxu0 0.0
  %1235 = vmatmul.mubr.f32.gmra.mxu0 %v1168
  %v1236 = vpop.f32.mrf.mxu0
  %v1237 = vadd.f32 %v51, %v1236
  %v1238 = vpop.f32.mrf.mxu0
  %1239 = vdwg.mxu0
  %v1240 = vadd.f32 %v214, %v1237
  %v1241 = vxor.u32 %v1240, 2147483648
  %v1242 = vmul.f32 %v1241, 1.442695
  %v1243 = vpow.pop %v1242
  %v1244 = vadd.f32 %v1243, 1.0
  %v1245 = vrcp.pop %v1244
  %v1246 = vmul.f32 1.0, %v1245
  %1248 = vrot.lane.b32.xlu0 %v1237, 64
  %v1249 = vpop.permute.xlu0 %1248
  %v1251 = vmul.f32 %v1246, %v1249
  %1253 = vrot.lane.b32.xlu0 %v1251, 64
  %v1254 = vpop.permute.xlu0 %1253
  %v1256 = vadd.f32 %v214, %v1254
  %v1257 = vtanh.pop %v1256
  %v1258 = vsub.f32 1.0, %v1246
  %1260 = vrot.lane.b32.xlu0 %v1257, 96
  %v1261 = vpop.permute.xlu0 %1260
  %v1263 = vmul.f32 %v1258, %v1261
  %v1264 = vmul.f32 %v1246, %v1162
  %v1265 = vadd.f32 %v1263, %v1264
  %1267 = vrot.lane.b32.xlu0 %v1163, 96
  %v1268 = vpop.permute.xlu0 %1267
  %v1269 = vsel %vm695, %v1268, 0
  %1271 = vmatprep.subr.mxu0 0.0
  %1272 = vmatpush1.msra.mxu0 0.0
  %1273 = vmatprep.subr.mxu0 0.0
  %1274 = vmatpush1.msra.mxu0 0.0
  %1275 = vmatprep.subr.mxu0 0.0
  %1276 = vmatpush1.msra.mxu0 0.0
  %1277 = vmatprep.subr.mxu0 0.0
  %1278 = vmatpush1.msra.mxu0 0.0
  %1279 = vmatprep.subr.mxu0 0.0
  %1280 = vmatpush1.msra.mxu0 0.0
  %1281 = vmatprep.subr.mxu0 0.0
  %1282 = vmatpush1.msra.mxu0 0.0
  %1283 = vmatprep.subr.mxu0 0.0
  %1284 = vmatpush1.msra.mxu0 0.0
  %1285 = vmatprep.subr.mxu0 0.0
  %1286 = vmatpush1.msra.mxu0 0.0
  %1287 = vmatprep.subr.mxu0 0.0
  %1288 = vmatpush1.msra.mxu0 0.0
  %1289 = vmatprep.subr.mxu0 0.0
  %1290 = vmatpush1.msra.mxu0 0.0
  %1291 = vmatprep.subr.mxu0 0.0
  %1292 = vmatpush1.msra.mxu0 0.0
  %1293 = vmatprep.subr.mxu0 0.0
  %1294 = vmatpush1.msra.mxu0 0.0
  %1295 = vmatprep.subr.mxu0 0.0
  %1296 = vmatpush1.msra.mxu0 %v33
  %1297 = vmatprep.subr.mxu0 0.0
  %1298 = vmatpush1.msra.mxu0 %v32
  %1299 = vmatprep.subr.mxu0 0.0
  %1300 = vmatpush1.msra.mxu0 %v31
  %1301 = vmatprep.subr.mxu0 0.0
  %1302 = vmatpush1.msra.mxu0 %v30
  %1303 = vmatprep.subr.mxu0 0.0
  %1304 = vmatpush2.msra.mxu0 0.0
  %1305 = vmatprep.subr.mxu0 0.0
  %1306 = vmatpush2.msra.mxu0 0.0
  %1307 = vmatprep.subr.mxu0 0.0
  %1308 = vmatpush2.msra.mxu0 0.0
  %1309 = vmatprep.subr.mxu0 0.0
  %1310 = vmatpush2.msra.mxu0 0.0
  %1311 = vmatprep.subr.mxu0 0.0
  %1312 = vmatpush2.msra.mxu0 0.0
  %1313 = vmatprep.subr.mxu0 0.0
  %1314 = vmatpush2.msra.mxu0 0.0
  %1315 = vmatprep.subr.mxu0 0.0
  %1316 = vmatpush2.msra.mxu0 0.0
  %1317 = vmatprep.subr.mxu0 0.0
  %1318 = vmatpush2.msra.mxu0 0.0
  %1319 = vmatprep.subr.mxu0 0.0
  %1320 = vmatpush2.msra.mxu0 0.0
  %1321 = vmatprep.subr.mxu0 0.0
  %1322 = vmatpush2.msra.mxu0 0.0
  %1323 = vmatprep.subr.mxu0 0.0
  %1324 = vmatpush2.msra.mxu0 0.0
  %1325 = vmatprep.subr.mxu0 0.0
  %1326 = vmatpush2.msra.mxu0 0.0
  %1327 = vmatprep.subr.mxu0 0.0
  %1328 = vmatpush2.msra.mxu0 0.0
  %1329 = vmatprep.subr.mxu0 0.0
  %1330 = vmatpush2.msra.mxu0 0.0
  %1331 = vmatprep.subr.mxu0 0.0
  %1332 = vmatpush2.msra.mxu0 0.0
  %1333 = vmatprep.subr.mxu0 0.0
  %1334 = vmatpush2.msra.mxu0 0.0
  %1335 = vmatprep.mubr.f32.mxu0 0.0
  %1336 = vmatmul.mubr.f32.gmra.mxu0 %v1269
  %v1337 = vpop.f32.mrf.mxu0
  %v1338 = vadd.f32 0.0, %v1337
  %v1339 = vpop.f32.mrf.mxu0
  %1340 = vdwg.mxu0
  %1342 = vrot.lane.b32.xlu0 %v1265, 96
  %v1343 = vpop.permute.xlu0 %1342
  %v1344 = vsel %vm695, %v1343, 0
  %1346 = vmatprep.subr.mxu0 0.0
  %1347 = vmatpush1.msra.mxu0 0.0
  %1348 = vmatprep.subr.mxu0 0.0
  %1349 = vmatpush1.msra.mxu0 0.0
  %1350 = vmatprep.subr.mxu0 0.0
  %1351 = vmatpush1.msra.mxu0 0.0
  %1352 = vmatprep.subr.mxu0 0.0
  %1353 = vmatpush1.msra.mxu0 0.0
  %1354 = vmatprep.subr.mxu0 0.0
  %1355 = vmatpush1.msra.mxu0 0.0
  %1356 = vmatprep.subr.mxu0 0.0
  %1357 = vmatpush1.msra.mxu0 0.0
  %1358 = vmatprep.subr.mxu0 0.0
  %1359 = vmatpush1.msra.mxu0 0.0
  %1360 = vmatprep.subr.mxu0 0.0
  %1361 = vmatpush1.msra.mxu0 0.0
  %1362 = vmatprep.subr.mxu0 0.0
  %1363 = vmatpush1.msra.mxu0 0.0
  %1364 = vmatprep.subr.mxu0 0.0
  %1365 = vmatpush1.msra.mxu0 0.0
  %1366 = vmatprep.subr.mxu0 0.0
  %1367 = vmatpush1.msra.mxu0 0.0
  %1368 = vmatprep.subr.mxu0 0.0
  %1369 = vmatpush1.msra.mxu0 0.0
  %1370 = vmatprep.subr.mxu0 0.0
  %1371 = vmatpush1.msra.mxu0 %v28
  %1372 = vmatprep.subr.mxu0 0.0
  %1373 = vmatpush1.msra.mxu0 %v27
  %1374 = vmatprep.subr.mxu0 0.0
  %1375 = vmatpush1.msra.mxu0 %v26
  %1376 = vmatprep.subr.mxu0 0.0
  %1377 = vmatpush1.msra.mxu0 %v25
  %1378 = vmatprep.subr.mxu0 0.0
  %1379 = vmatpush2.msra.mxu0 0.0
  %1380 = vmatprep.subr.mxu0 0.0
  %1381 = vmatpush2.msra.mxu0 0.0
  %1382 = vmatprep.subr.mxu0 0.0
  %1383 = vmatpush2.msra.mxu0 0.0
  %1384 = vmatprep.subr.mxu0 0.0
  %1385 = vmatpush2.msra.mxu0 0.0
  %1386 = vmatprep.subr.mxu0 0.0
  %1387 = vmatpush2.msra.mxu0 0.0
  %1388 = vmatprep.subr.mxu0 0.0
  %1389 = vmatpush2.msra.mxu0 0.0
  %1390 = vmatprep.subr.mxu0 0.0
  %1391 = vmatpush2.msra.mxu0 0.0
  %1392 = vmatprep.subr.mxu0 0.0
  %1393 = vmatpush2.msra.mxu0 0.0
  %1394 = vmatprep.subr.mxu0 0.0
  %1395 = vmatpush2.msra.mxu0 0.0
  %1396 = vmatprep.subr.mxu0 0.0
  %1397 = vmatpush2.msra.mxu0 0.0
  %1398 = vmatprep.subr.mxu0 0.0
  %1399 = vmatpush2.msra.mxu0 0.0
  %1400 = vmatprep.subr.mxu0 0.0
  %1401 = vmatpush2.msra.mxu0 0.0
  %1402 = vmatprep.subr.mxu0 0.0
  %1403 = vmatpush2.msra.mxu0 0.0
  %1404 = vmatprep.subr.mxu0 0.0
  %1405 = vmatpush2.msra.mxu0 0.0
  %1406 = vmatprep.subr.mxu0 0.0
  %1407 = vmatpush2.msra.mxu0 0.0
  %1408 = vmatprep.subr.mxu0 0.0
  %1409 = vmatpush2.msra.mxu0 0.0
  %1410 = vmatprep.mubr.f32.mxu0 0.0
  %1411 = vmatmul.mubr.f32.gmra.mxu0 %v1344
  %v1412 = vpop.f32.mrf.mxu0
  %v1413 = vadd.f32 %v1338, %v1412
  %v1414 = vpop.f32.mrf.mxu0
  %1415 = vdwg.mxu0
  %v1416 = vadd.f32 %v1413, %v53
  %v1417 = vxor.u32 %v1416, 2147483648
  %v1418 = vmul.f32 %v1417, 1.442695
  %v1419 = vpow.pop %v1418
  %v1420 = vadd.f32 %v1419, 1.0
  %v1421 = vrcp.pop %v1420
  %v1422 = vmul.f32 1.0, %v1421
  %1424 = vrot.lane.b32.xlu0 %v1416, 32
  %v1425 = vpop.permute.xlu0 %1424
  %v1427 = vmul.f32 %v1422, %v1425
  %1429 = vrot.lane.b32.xlu0 %v1427, 64
  %v1430 = vpop.permute.xlu0 %1429
  %v1432 = vadd.f32 %v1416, %v1430
  %v1433 = vtanh.pop %v1432
  %v1434 = vsub.f32 1.0, %v1422
  %1436 = vrot.lane.b32.xlu0 %v1433, 96
  %v1437 = vpop.permute.xlu0 %1436
  %v1439 = vmul.f32 %v1434, %v1437
  %v1440 = vmul.f32 %v1422, %v1163
  %v1441 = vadd.f32 %v1439, %v1440
  %1443 = vrot.lane.b32.xlu0 %v1164, 96
  %v1444 = vpop.permute.xlu0 %1443
  %v1445 = vsel %vm695, %v1444, 0
  %1447 = vmatprep.subr.mxu0 0.0
  %1448 = vmatpush1.msra.mxu0 0.0
  %1449 = vmatprep.subr.mxu0 0.0
  %1450 = vmatpush1.msra.mxu0 0.0
  %1451 = vmatprep.subr.mxu0 0.0
  %1452 = vmatpush1.msra.mxu0 0.0
  %1453 = vmatprep.subr.mxu0 0.0
  %1454 = vmatpush1.msra.mxu0 0.0
  %1455 = vmatprep.subr.mxu0 0.0
  %1456 = vmatpush1.msra.mxu0 0.0
  %1457 = vmatprep.subr.mxu0 0.0
  %1458 = vmatpush1.msra.mxu0 0.0
  %1459 = vmatprep.subr.mxu0 0.0
  %1460 = vmatpush1.msra.mxu0 0.0
  %1461 = vmatprep.subr.mxu0 0.0
  %1462 = vmatpush1.msra.mxu0 0.0
  %1463 = vmatprep.subr.mxu0 0.0
  %1464 = vmatpush1.msra.mxu0 0.0
  %1465 = vmatprep.subr.mxu0 0.0
  %1466 = vmatpush1.msra.mxu0 0.0
  %1467 = vmatprep.subr.mxu0 0.0
  %1468 = vmatpush1.msra.mxu0 0.0
  %1469 = vmatprep.subr.mxu0 0.0
  %1470 = vmatpush1.msra.mxu0 0.0
  %1471 = vmatprep.subr.mxu0 0.0
  %1472 = vmatpush1.msra.mxu0 %v43
  %1473 = vmatprep.subr.mxu0 0.0
  %1474 = vmatpush1.msra.mxu0 %v42
  %1475 = vmatprep.subr.mxu0 0.0
  %1476 = vmatpush1.msra.mxu0 %v41
  %1477 = vmatprep.subr.mxu0 0.0
  %1478 = vmatpush1.msra.mxu0 %v40
  %1479 = vmatprep.subr.mxu0 0.0
  %1480 = vmatpush2.msra.mxu0 0.0
  %1481 = vmatprep.subr.mxu0 0.0
  %1482 = vmatpush2.msra.mxu0 0.0
  %1483 = vmatprep.subr.mxu0 0.0
  %1484 = vmatpush2.msra.mxu0 0.0
  %1485 = vmatprep.subr.mxu0 0.0
  %1486 = vmatpush2.msra.mxu0 0.0
  %1487 = vmatprep.subr.mxu0 0.0
  %1488 = vmatpush2.msra.mxu0 0.0
  %1489 = vmatprep.subr.mxu0 0.0
  %1490 = vmatpush2.msra.mxu0 0.0
  %1491 = vmatprep.subr.mxu0 0.0
  %1492 = vmatpush2.msra.mxu0 0.0
  %1493 = vmatprep.subr.mxu0 0.0
  %1494 = vmatpush2.msra.mxu0 0.0
  %1495 = vmatprep.subr.mxu0 0.0
  %1496 = vmatpush2.msra.mxu0 0.0
  %1497 = vmatprep.subr.mxu0 0.0
  %1498 = vmatpush2.msra.mxu0 0.0
  %1499 = vmatprep.subr.mxu0 0.0
  %1500 = vmatpush2.msra.mxu0 0.0
  %1501 = vmatprep.subr.mxu0 0.0
  %1502 = vmatpush2.msra.mxu0 0.0
  %1503 = vmatprep.subr.mxu0 0.0
  %1504 = vmatpush2.msra.mxu0 0.0
  %1505 = vmatprep.subr.mxu0 0.0
  %1506 = vmatpush2.msra.mxu0 0.0
  %1507 = vmatprep.subr.mxu0 0.0
  %1508 = vmatpush2.msra.mxu0 0.0
  %1509 = vmatprep.subr.mxu0 0.0
  %1510 = vmatpush2.msra.mxu0 0.0
  %1511 = vmatprep.mubr.f32.mxu0 0.0
  %1512 = vmatmul.mubr.f32.gmra.mxu0 %v1445
  %v1513 = vpop.f32.mrf.mxu0
  %v1514 = vadd.f32 0.0, %v1513
  %v1515 = vpop.f32.mrf.mxu0
  %1516 = vdwg.mxu0
  %1518 = vrot.lane.b32.xlu0 %v1441, 96
  %v1519 = vpop.permute.xlu0 %1518
  %v1520 = vsel %vm695, %v1519, 0
  %1522 = vmatprep.subr.mxu0 0.0
  %1523 = vmatpush1.msra.mxu0 0.0
  %1524 = vmatprep.subr.mxu0 0.0
  %1525 = vmatpush1.msra.mxu0 0.0
  %1526 = vmatprep.subr.mxu0 0.0
  %1527 = vmatpush1.msra.mxu0 0.0
  %1528 = vmatprep.subr.mxu0 0.0
  %1529 = vmatpush1.msra.mxu0 0.0
  %1530 = vmatprep.subr.mxu0 0.0
  %1531 = vmatpush1.msra.mxu0 0.0
  %1532 = vmatprep.subr.mxu0 0.0
  %1533 = vmatpush1.msra.mxu0 0.0
  %1534 = vmatprep.subr.mxu0 0.0
  %1535 = vmatpush1.msra.mxu0 0.0
  %1536 = vmatprep.subr.mxu0 0.0
  %1537 = vmatpush1.msra.mxu0 0.0
  %1538 = vmatprep.subr.mxu0 0.0
  %1539 = vmatpush1.msra.mxu0 0.0
  %1540 = vmatprep.subr.mxu0 0.0
  %1541 = vmatpush1.msra.mxu0 0.0
  %1542 = vmatprep.subr.mxu0 0.0
  %1543 = vmatpush1.msra.mxu0 0.0
  %1544 = vmatprep.subr.mxu0 0.0
  %1545 = vmatpush1.msra.mxu0 0.0
  %1546 = vmatprep.subr.mxu0 0.0
  %1547 = vmatpush1.msra.mxu0 %v38
  %1548 = vmatprep.subr.mxu0 0.0
  %1549 = vmatpush1.msra.mxu0 %v37
  %1550 = vmatprep.subr.mxu0 0.0
  %1551 = vmatpush1.msra.mxu0 %v36
  %1552 = vmatprep.subr.mxu0 0.0
  %1553 = vmatpush1.msra.mxu0 %v35
  %1554 = vmatprep.subr.mxu0 0.0
  %1555 = vmatpush2.msra.mxu0 0.0
  %1556 = vmatprep.subr.mxu0 0.0
  %1557 = vmatpush2.msra.mxu0 0.0
  %1558 = vmatprep.subr.mxu0 0.0
  %1559 = vmatpush2.msra.mxu0 0.0
  %1560 = vmatprep.subr.mxu0 0.0
  %1561 = vmatpush2.msra.mxu0 0.0
  %1562 = vmatprep.subr.mxu0 0.0
  %1563 = vmatpush2.msra.mxu0 0.0
  %1564 = vmatprep.subr.mxu0 0.0
  %1565 = vmatpush2.msra.mxu0 0.0
  %1566 = vmatprep.subr.mxu0 0.0
  %1567 = vmatpush2.msra.mxu0 0.0
  %1568 = vmatprep.subr.mxu0 0.0
  %1569 = vmatpush2.msra.mxu0 0.0
  %1570 = vmatprep.subr.mxu0 0.0
  %1571 = vmatpush2.msra.mxu0 0.0
  %1572 = vmatprep.subr.mxu0 0.0
  %1573 = vmatpush2.msra.mxu0 0.0
  %1574 = vmatprep.subr.mxu0 0.0
  %1575 = vmatpush2.msra.mxu0 0.0
  %1576 = vmatprep.subr.mxu0 0.0
  %1577 = vmatpush2.msra.mxu0 0.0
  %1578 = vmatprep.subr.mxu0 0.0
  %1579 = vmatpush2.msra.mxu0 0.0
  %1580 = vmatprep.subr.mxu0 0.0
  %1581 = vmatpush2.msra.mxu0 0.0
  %1582 = vmatprep.subr.mxu0 0.0
  %1583 = vmatpush2.msra.mxu0 0.0
  %1584 = vmatprep.subr.mxu0 0.0
  %1585 = vmatpush2.msra.mxu0 0.0
  %1586 = vmatprep.mubr.f32.mxu0 0.0
  %1587 = vmatmul.mubr.f32.gmra.mxu0 %v1520
  %v1588 = vpop.f32.mrf.mxu0
  %v1589 = vadd.f32 %v1514, %v1588
  %v1590 = vpop.f32.mrf.mxu0
  %1591 = vdwg.mxu0
  %v1592 = vadd.f32 %v1589, %v55
  %v1593 = vxor.u32 %v1592, 2147483648
  %v1594 = vmul.f32 %v1593, 1.442695
  %v1595 = vpow.pop %v1594
  %v1596 = vadd.f32 %v1595, 1.0
  %v1597 = vrcp.pop %v1596
  %v1598 = vmul.f32 1.0, %v1597
  %1600 = vrot.lane.b32.xlu0 %v1592, 32
  %v1601 = vpop.permute.xlu0 %1600
  %v1603 = vmul.f32 %v1598, %v1601
  %1605 = vrot.lane.b32.xlu0 %v1603, 64
  %v1606 = vpop.permute.xlu0 %1605
  %v1608 = vadd.f32 %v1592, %v1606
  %v1609 = vtanh.pop %v1608
  %v1610 = vsub.f32 1.0, %v1598
  %1612 = vrot.lane.b32.xlu0 %v1609, 96
  %v1613 = vpop.permute.xlu0 %1612
  %v1615 = vmul.f32 %v1610, %v1613
  %v1616 = vmul.f32 %v1598, %v1164
  %v1617 = vadd.f32 %v1615, %v1616
  %1619 = vrot.lane.b32.xlu0 %v1617, 96
  %v1620 = vpop.permute.xlu0 %1619
  %1622 = vst.msk [vmem:[#allocation2 + $0x2] sm:$0x3] %vm1156, %v1620
  %1624 = vrot.lane.b32.xlu0 %v299, 28
  %v1625 = vpop.permute.xlu0 %1624
  %v1627 = vmul.f32 %v1265, %v1625
  %v1628 = vmul.f32 %v1441, %v1625
  %v1629 = vmul.f32 %v1617, %v1625
  %1631 = vrot.lane.b32.xlu0 %v1627, 96
  %v1632 = vpop.permute.xlu0 %1631
  %v1633 = vsel %vm695, %v1632, 0
  %1635 = vmatprep.subr.mxu0 0.0
  %1636 = vmatpush1.msra.mxu0 0.0
  %1637 = vmatprep.subr.mxu0 0.0
  %1638 = vmatpush1.msra.mxu0 0.0
  %1639 = vmatprep.subr.mxu0 0.0
  %1640 = vmatpush1.msra.mxu0 0.0
  %1641 = vmatprep.subr.mxu0 0.0
  %1642 = vmatpush1.msra.mxu0 0.0
  %1643 = vmatprep.subr.mxu0 0.0
  %1644 = vmatpush1.msra.mxu0 0.0
  %1645 = vmatprep.subr.mxu0 0.0
  %1646 = vmatpush1.msra.mxu0 0.0
  %1647 = vmatprep.subr.mxu0 0.0
  %1648 = vmatpush1.msra.mxu0 0.0
  %1649 = vmatprep.subr.mxu0 0.0
  %1650 = vmatpush1.msra.mxu0 0.0
  %1651 = vmatprep.subr.mxu0 0.0
  %1652 = vmatpush1.msra.mxu0 0.0
  %1653 = vmatprep.subr.mxu0 0.0
  %1654 = vmatpush1.msra.mxu0 0.0
  %1655 = vmatprep.subr.mxu0 0.0
  %1656 = vmatpush1.msra.mxu0 0.0
  %1657 = vmatprep.subr.mxu0 0.0
  %1658 = vmatpush1.msra.mxu0 0.0
  %1659 = vmatprep.subr.mxu0 0.0
  %1660 = vmatpush1.msra.mxu0 %v24
  %1661 = vmatprep.subr.mxu0 0.0
  %1662 = vmatpush1.msra.mxu0 %v23
  %1663 = vmatprep.subr.mxu0 0.0
  %1664 = vmatpush1.msra.mxu0 %v22
  %1665 = vmatprep.subr.mxu0 0.0
  %1666 = vmatpush1.msra.mxu0 %v21
  %1667 = vmatprep.subr.mxu0 0.0
  %1668 = vmatpush2.msra.mxu0 0.0
  %1669 = vmatprep.subr.mxu0 0.0
  %1670 = vmatpush2.msra.mxu0 0.0
  %1671 = vmatprep.subr.mxu0 0.0
  %1672 = vmatpush2.msra.mxu0 0.0
  %1673 = vmatprep.subr.mxu0 0.0
  %1674 = vmatpush2.msra.mxu0 0.0
  %1675 = vmatprep.subr.mxu0 0.0
  %1676 = vmatpush2.msra.mxu0 0.0
  %1677 = vmatprep.subr.mxu0 0.0
  %1678 = vmatpush2.msra.mxu0 0.0
  %1679 = vmatprep.subr.mxu0 0.0
  %1680 = vmatpush2.msra.mxu0 0.0
  %1681 = vmatprep.subr.mxu0 0.0
  %1682 = vmatpush2.msra.mxu0 0.0
  %1683 = vmatprep.subr.mxu0 0.0
  %1684 = vmatpush2.msra.mxu0 0.0
  %1685 = vmatprep.subr.mxu0 0.0
  %1686 = vmatpush2.msra.mxu0 0.0
  %1687 = vmatprep.subr.mxu0 0.0
  %1688 = vmatpush2.msra.mxu0 0.0
  %1689 = vmatprep.subr.mxu0 0.0
  %1690 = vmatpush2.msra.mxu0 0.0
  %1691 = vmatprep.subr.mxu0 0.0
  %1692 = vmatpush2.msra.mxu0 0.0
  %1693 = vmatprep.subr.mxu0 0.0
  %1694 = vmatpush2.msra.mxu0 0.0
  %1695 = vmatprep.subr.mxu0 0.0
  %1696 = vmatpush2.msra.mxu0 0.0
  %1697 = vmatprep.subr.mxu0 0.0
  %1698 = vmatpush2.msra.mxu0 0.0
  %1699 = vmatprep.mubr.f32.mxu0 0.0
  %1700 = vmatmul.mubr.f32.gmra.mxu0 %v1633
  %v1701 = vpop.f32.mrf.mxu0
  %v1702 = vadd.f32 %v51, %v1701
  %v1703 = vpop.f32.mrf.mxu0
  %1704 = vdwg.mxu0
  %v1705 = vadd.f32 %v293, %v1702
  %v1706 = vxor.u32 %v1705, 2147483648
  %v1707 = vmul.f32 %v1706, 1.442695
  %v1708 = vpow.pop %v1707
  %v1709 = vadd.f32 %v1708, 1.0
  %v1710 = vrcp.pop %v1709
  %v1711 = vmul.f32 1.0, %v1710
  %1713 = vrot.lane.b32.xlu0 %v1702, 64
  %v1714 = vpop.permute.xlu0 %1713
  %v1716 = vmul.f32 %v1711, %v1714
  %1718 = vrot.lane.b32.xlu0 %v1716, 64
  %v1719 = vpop.permute.xlu0 %1718
  %v1721 = vadd.f32 %v293, %v1719
  %v1722 = vtanh.pop %v1721
  %v1723 = vsub.f32 1.0, %v1711
  %1725 = vrot.lane.b32.xlu0 %v1722, 96
  %v1726 = vpop.permute.xlu0 %1725
  %v1728 = vmul.f32 %v1723, %v1726
  %v1729 = vmul.f32 %v1711, %v1627
  %v1730 = vadd.f32 %v1728, %v1729
  %1732 = vrot.lane.b32.xlu0 %v1628, 96
  %v1733 = vpop.permute.xlu0 %1732
  %v1734 = vsel %vm695, %v1733, 0
  %1736 = vmatprep.subr.mxu0 0.0
  %1737 = vmatpush1.msra.mxu0 0.0
  %1738 = vmatprep.subr.mxu0 0.0
  %1739 = vmatpush1.msra.mxu0 0.0
  %1740 = vmatprep.subr.mxu0 0.0
  %1741 = vmatpush1.msra.mxu0 0.0
  %1742 = vmatprep.subr.mxu0 0.0
  %1743 = vmatpush1.msra.mxu0 0.0
  %1744 = vmatprep.subr.mxu0 0.0
  %1745 = vmatpush1.msra.mxu0 0.0
  %1746 = vmatprep.subr.mxu0 0.0
  %1747 = vmatpush1.msra.mxu0 0.0
  %1748 = vmatprep.subr.mxu0 0.0
  %1749 = vmatpush1.msra.mxu0 0.0
  %1750 = vmatprep.subr.mxu0 0.0
  %1751 = vmatpush1.msra.mxu0 0.0
  %1752 = vmatprep.subr.mxu0 0.0
  %1753 = vmatpush1.msra.mxu0 0.0
  %1754 = vmatprep.subr.mxu0 0.0
  %1755 = vmatpush1.msra.mxu0 0.0
  %1756 = vmatprep.subr.mxu0 0.0
  %1757 = vmatpush1.msra.mxu0 0.0
  %1758 = vmatprep.subr.mxu0 0.0
  %1759 = vmatpush1.msra.mxu0 0.0
  %1760 = vmatprep.subr.mxu0 0.0
  %1761 = vmatpush1.msra.mxu0 %v33
  %1762 = vmatprep.subr.mxu0 0.0
  %1763 = vmatpush1.msra.mxu0 %v32
  %1764 = vmatprep.subr.mxu0 0.0
  %1765 = vmatpush1.msra.mxu0 %v31
  %1766 = vmatprep.subr.mxu0 0.0
  %1767 = vmatpush1.msra.mxu0 %v30
  %1768 = vmatprep.subr.mxu0 0.0
  %1769 = vmatpush2.msra.mxu0 0.0
  %1770 = vmatprep.subr.mxu0 0.0
  %1771 = vmatpush2.msra.mxu0 0.0
  %1772 = vmatprep.subr.mxu0 0.0
  %1773 = vmatpush2.msra.mxu0 0.0
  %1774 = vmatprep.subr.mxu0 0.0
  %1775 = vmatpush2.msra.mxu0 0.0
  %1776 = vmatprep.subr.mxu0 0.0
  %1777 = vmatpush2.msra.mxu0 0.0
  %1778 = vmatprep.subr.mxu0 0.0
  %1779 = vmatpush2.msra.mxu0 0.0
  %1780 = vmatprep.subr.mxu0 0.0
  %1781 = vmatpush2.msra.mxu0 0.0
  %1782 = vmatprep.subr.mxu0 0.0
  %1783 = vmatpush2.msra.mxu0 0.0
  %1784 = vmatprep.subr.mxu0 0.0
  %1785 = vmatpush2.msra.mxu0 0.0
  %1786 = vmatprep.subr.mxu0 0.0
  %1787 = vmatpush2.msra.mxu0 0.0
  %1788 = vmatprep.subr.mxu0 0.0
  %1789 = vmatpush2.msra.mxu0 0.0
  %1790 = vmatprep.subr.mxu0 0.0
  %1791 = vmatpush2.msra.mxu0 0.0
  %1792 = vmatprep.subr.mxu0 0.0
  %1793 = vmatpush2.msra.mxu0 0.0
  %1794 = vmatprep.subr.mxu0 0.0
  %1795 = vmatpush2.msra.mxu0 0.0
  %1796 = vmatprep.subr.mxu0 0.0
  %1797 = vmatpush2.msra.mxu0 0.0
  %1798 = vmatprep.subr.mxu0 0.0
  %1799 = vmatpush2.msra.mxu0 0.0
  %1800 = vmatprep.mubr.f32.mxu0 0.0
  %1801 = vmatmul.mubr.f32.gmra.mxu0 %v1734
  %v1802 = vpop.f32.mrf.mxu0
  %v1803 = vadd.f32 0.0, %v1802
  %v1804 = vpop.f32.mrf.mxu0
  %1805 = vdwg.mxu0
  %1807 = vrot.lane.b32.xlu0 %v1730, 96
  %v1808 = vpop.permute.xlu0 %1807
  %v1809 = vsel %vm695, %v1808, 0
  %1811 = vmatprep.subr.mxu0 0.0
  %1812 = vmatpush1.msra.mxu0 0.0
  %1813 = vmatprep.subr.mxu0 0.0
  %1814 = vmatpush1.msra.mxu0 0.0
  %1815 = vmatprep.subr.mxu0 0.0
  %1816 = vmatpush1.msra.mxu0 0.0
  %1817 = vmatprep.subr.mxu0 0.0
  %1818 = vmatpush1.msra.mxu0 0.0
  %1819 = vmatprep.subr.mxu0 0.0
  %1820 = vmatpush1.msra.mxu0 0.0
  %1821 = vmatprep.subr.mxu0 0.0
  %1822 = vmatpush1.msra.mxu0 0.0
  %1823 = vmatprep.subr.mxu0 0.0
  %1824 = vmatpush1.msra.mxu0 0.0
  %1825 = vmatprep.subr.mxu0 0.0
  %1826 = vmatpush1.msra.mxu0 0.0
  %1827 = vmatprep.subr.mxu0 0.0
  %1828 = vmatpush1.msra.mxu0 0.0
  %1829 = vmatprep.subr.mxu0 0.0
  %1830 = vmatpush1.msra.mxu0 0.0
  %1831 = vmatprep.subr.mxu0 0.0
  %1832 = vmatpush1.msra.mxu0 0.0
  %1833 = vmatprep.subr.mxu0 0.0
  %1834 = vmatpush1.msra.mxu0 0.0
  %1835 = vmatprep.subr.mxu0 0.0
  %1836 = vmatpush1.msra.mxu0 %v28
  %1837 = vmatprep.subr.mxu0 0.0
  %1838 = vmatpush1.msra.mxu0 %v27
  %1839 = vmatprep.subr.mxu0 0.0
  %1840 = vmatpush1.msra.mxu0 %v26
  %1841 = vmatprep.subr.mxu0 0.0
  %1842 = vmatpush1.msra.mxu0 %v25
  %1843 = vmatprep.subr.mxu0 0.0
  %1844 = vmatpush2.msra.mxu0 0.0
  %1845 = vmatprep.subr.mxu0 0.0
  %1846 = vmatpush2.msra.mxu0 0.0
  %1847 = vmatprep.subr.mxu0 0.0
  %1848 = vmatpush2.msra.mxu0 0.0
  %1849 = vmatprep.subr.mxu0 0.0
  %1850 = vmatpush2.msra.mxu0 0.0
  %1851 = vmatprep.subr.mxu0 0.0
  %1852 = vmatpush2.msra.mxu0 0.0
  %1853 = vmatprep.subr.mxu0 0.0
  %1854 = vmatpush2.msra.mxu0 0.0
  %1855 = vmatprep.subr.mxu0 0.0
  %1856 = vmatpush2.msra.mxu0 0.0
  %1857 = vmatprep.subr.mxu0 0.0
  %1858 = vmatpush2.msra.mxu0 0.0
  %1859 = vmatprep.subr.mxu0 0.0
  %1860 = vmatpush2.msra.mxu0 0.0
  %1861 = vmatprep.subr.mxu0 0.0
  %1862 = vmatpush2.msra.mxu0 0.0
  %1863 = vmatprep.subr.mxu0 0.0
  %1864 = vmatpush2.msra.mxu0 0.0
  %1865 = vmatprep.subr.mxu0 0.0
  %1866 = vmatpush2.msra.mxu0 0.0
  %1867 = vmatprep.subr.mxu0 0.0
  %1868 = vmatpush2.msra.mxu0 0.0
  %1869 = vmatprep.subr.mxu0 0.0
  %1870 = vmatpush2.msra.mxu0 0.0
  %1871 = vmatprep.subr.mxu0 0.0
  %1872 = vmatpush2.msra.mxu0 0.0
  %1873 = vmatprep.subr.mxu0 0.0
  %1874 = vmatpush2.msra.mxu0 0.0
  %1875 = vmatprep.mubr.f32.mxu0 0.0
  %1876 = vmatmul.mubr.f32.gmra.mxu0 %v1809
  %v1877 = vpop.f32.mrf.mxu0
  %v1878 = vadd.f32 %v1803, %v1877
  %v1879 = vpop.f32.mrf.mxu0
  %1880 = vdwg.mxu0
  %v1881 = vadd.f32 %v1878, %v53
  %v1882 = vxor.u32 %v1881, 2147483648
  %v1883 = vmul.f32 %v1882, 1.442695
  %v1884 = vpow.pop %v1883
  %v1885 = vadd.f32 %v1884, 1.0
  %v1886 = vrcp.pop %v1885
  %v1887 = vmul.f32 1.0, %v1886
  %1889 = vrot.lane.b32.xlu0 %v1881, 32
  %v1890 = vpop.permute.xlu0 %1889
  %v1892 = vmul.f32 %v1887, %v1890
  %1894 = vrot.lane.b32.xlu0 %v1892, 64
  %v1895 = vpop.permute.xlu0 %1894
  %v1897 = vadd.f32 %v1881, %v1895
  %v1898 = vtanh.pop %v1897
  %v1899 = vsub.f32 1.0, %v1887
  %1901 = vrot.lane.b32.xlu0 %v1898, 96
  %v1902 = vpop.permute.xlu0 %1901
  %v1904 = vmul.f32 %v1899, %v1902
  %v1905 = vmul.f32 %v1887, %v1628
  %v1906 = vadd.f32 %v1904, %v1905
  %1908 = vrot.lane.b32.xlu0 %v1629, 96
  %v1909 = vpop.permute.xlu0 %1908
  %v1910 = vsel %vm695, %v1909, 0
  %1912 = vmatprep.subr.mxu0 0.0
  %1913 = vmatpush1.msra.mxu0 0.0
  %1914 = vmatprep.subr.mxu0 0.0
  %1915 = vmatpush1.msra.mxu0 0.0
  %1916 = vmatprep.subr.mxu0 0.0
  %1917 = vmatpush1.msra.mxu0 0.0
  %1918 = vmatprep.subr.mxu0 0.0
  %1919 = vmatpush1.msra.mxu0 0.0
  %1920 = vmatprep.subr.mxu0 0.0
  %1921 = vmatpush1.msra.mxu0 0.0
  %1922 = vmatprep.subr.mxu0 0.0
  %1923 = vmatpush1.msra.mxu0 0.0
  %1924 = vmatprep.subr.mxu0 0.0
  %1925 = vmatpush1.msra.mxu0 0.0
  %1926 = vmatprep.subr.mxu0 0.0
  %1927 = vmatpush1.msra.mxu0 0.0
  %1928 = vmatprep.subr.mxu0 0.0
  %1929 = vmatpush1.msra.mxu0 0.0
  %1930 = vmatprep.subr.mxu0 0.0
  %1931 = vmatpush1.msra.mxu0 0.0
  %1932 = vmatprep.subr.mxu0 0.0
  %1933 = vmatpush1.msra.mxu0 0.0
  %1934 = vmatprep.subr.mxu0 0.0
  %1935 = vmatpush1.msra.mxu0 0.0
  %1936 = vmatprep.subr.mxu0 0.0
  %1937 = vmatpush1.msra.mxu0 %v43
  %1938 = vmatprep.subr.mxu0 0.0
  %1939 = vmatpush1.msra.mxu0 %v42
  %1940 = vmatprep.subr.mxu0 0.0
  %1941 = vmatpush1.msra.mxu0 %v41
  %1942 = vmatprep.subr.mxu0 0.0
  %1943 = vmatpush1.msra.mxu0 %v40
  %1944 = vmatprep.subr.mxu0 0.0
  %1945 = vmatpush2.msra.mxu0 0.0
  %1946 = vmatprep.subr.mxu0 0.0
  %1947 = vmatpush2.msra.mxu0 0.0
  %1948 = vmatprep.subr.mxu0 0.0
  %1949 = vmatpush2.msra.mxu0 0.0
  %1950 = vmatprep.subr.mxu0 0.0
  %1951 = vmatpush2.msra.mxu0 0.0
  %1952 = vmatprep.subr.mxu0 0.0
  %1953 = vmatpush2.msra.mxu0 0.0
  %1954 = vmatprep.subr.mxu0 0.0
  %1955 = vmatpush2.msra.mxu0 0.0
  %1956 = vmatprep.subr.mxu0 0.0
  %1957 = vmatpush2.msra.mxu0 0.0
  %1958 = vmatprep.subr.mxu0 0.0
  %1959 = vmatpush2.msra.mxu0 0.0
  %1960 = vmatprep.subr.mxu0 0.0
  %1961 = vmatpush2.msra.mxu0 0.0
  %1962 = vmatprep.subr.mxu0 0.0
  %1963 = vmatpush2.msra.mxu0 0.0
  %1964 = vmatprep.subr.mxu0 0.0
  %1965 = vmatpush2.msra.mxu0 0.0
  %1966 = vmatprep.subr.mxu0 0.0
  %1967 = vmatpush2.msra.mxu0 0.0
  %1968 = vmatprep.subr.mxu0 0.0
  %1969 = vmatpush2.msra.mxu0 0.0
  %1970 = vmatprep.subr.mxu0 0.0
  %1971 = vmatpush2.msra.mxu0 0.0
  %1972 = vmatprep.subr.mxu0 0.0
  %1973 = vmatpush2.msra.mxu0 0.0
  %1974 = vmatprep.subr.mxu0 0.0
  %1975 = vmatpush2.msra.mxu0 0.0
  %1976 = vmatprep.mubr.f32.mxu0 0.0
  %1977 = vmatmul.mubr.f32.gmra.mxu0 %v1910
  %v1978 = vpop.f32.mrf.mxu0
  %v1979 = vadd.f32 0.0, %v1978
  %v1980 = vpop.f32.mrf.mxu0
  %1981 = vdwg.mxu0
  %1983 = vrot.lane.b32.xlu0 %v1906, 96
  %v1984 = vpop.permute.xlu0 %1983
  %v1985 = vsel %vm695, %v1984, 0
  %1987 = vmatprep.subr.mxu0 0.0
  %1988 = vmatpush1.msra.mxu0 0.0
  %1989 = vmatprep.subr.mxu0 0.0
  %1990 = vmatpush1.msra.mxu0 0.0
  %1991 = vmatprep.subr.mxu0 0.0
  %1992 = vmatpush1.msra.mxu0 0.0
  %1993 = vmatprep.subr.mxu0 0.0
  %1994 = vmatpush1.msra.mxu0 0.0
  %1995 = vmatprep.subr.mxu0 0.0
  %1996 = vmatpush1.msra.mxu0 0.0
  %1997 = vmatprep.subr.mxu0 0.0
  %1998 = vmatpush1.msra.mxu0 0.0
  %1999 = vmatprep.subr.mxu0 0.0
  %2000 = vmatpush1.msra.mxu0 0.0
  %2001 = vmatprep.subr.mxu0 0.0
  %2002 = vmatpush1.msra.mxu0 0.0
  %2003 = vmatprep.subr.mxu0 0.0
  %2004 = vmatpush1.msra.mxu0 0.0
  %2005 = vmatprep.subr.mxu0 0.0
  %2006 = vmatpush1.msra.mxu0 0.0
  %2007 = vmatprep.subr.mxu0 0.0
  %2008 = vmatpush1.msra.mxu0 0.0
  %2009 = vmatprep.subr.mxu0 0.0
  %2010 = vmatpush1.msra.mxu0 0.0
  %2011 = vmatprep.subr.mxu0 0.0
  %2012 = vmatpush1.msra.mxu0 %v38
  %2013 = vmatprep.subr.mxu0 0.0
  %2014 = vmatpush1.msra.mxu0 %v37
  %2015 = vmatprep.subr.mxu0 0.0
  %2016 = vmatpush1.msra.mxu0 %v36
  %2017 = vmatprep.subr.mxu0 0.0
  %2018 = vmatpush1.msra.mxu0 %v35
  %2019 = vmatprep.subr.mxu0 0.0
  %2020 = vmatpush2.msra.mxu0 0.0
  %2021 = vmatprep.subr.mxu0 0.0
  %2022 = vmatpush2.msra.mxu0 0.0
  %2023 = vmatprep.subr.mxu0 0.0
  %2024 = vmatpush2.msra.mxu0 0.0
  %2025 = vmatprep.subr.mxu0 0.0
  %2026 = vmatpush2.msra.mxu0 0.0
  %2027 = vmatprep.subr.mxu0 0.0
  %2028 = vmatpush2.msra.mxu0 0.0
  %2029 = vmatprep.subr.mxu0 0.0
  %2030 = vmatpush2.msra.mxu0 0.0
  %2031 = vmatprep.subr.mxu0 0.0
  %2032 = vmatpush2.msra.mxu0 0.0
  %2033 = vmatprep.subr.mxu0 0.0
  %2034 = vmatpush2.msra.mxu0 0.0
  %2035 = vmatprep.subr.mxu0 0.0
  %2036 = vmatpush2.msra.mxu0 0.0
  %2037 = vmatprep.subr.mxu0 0.0
  %2038 = vmatpush2.msra.mxu0 0.0
  %2039 = vmatprep.subr.mxu0 0.0
  %2040 = vmatpush2.msra.mxu0 0.0
  %2041 = vmatprep.subr.mxu0 0.0
  %2042 = vmatpush2.msra.mxu0 0.0
  %2043 = vmatprep.subr.mxu0 0.0
  %2044 = vmatpush2.msra.mxu0 0.0
  %2045 = vmatprep.subr.mxu0 0.0
  %2046 = vmatpush2.msra.mxu0 0.0
  %2047 = vmatprep.subr.mxu0 0.0
  %2048 = vmatpush2.msra.mxu0 0.0
  %2049 = vmatprep.subr.mxu0 0.0
  %2050 = vmatpush2.msra.mxu0 0.0
  %2051 = vmatprep.mubr.f32.mxu0 0.0
  %2052 = vmatmul.mubr.f32.gmra.mxu0 %v1985
  %v2053 = vpop.f32.mrf.mxu0
  %v2054 = vadd.f32 %v1979, %v2053
  %v2055 = vpop.f32.mrf.mxu0
  %2056 = vdwg.mxu0
  %v2057 = vadd.f32 %v2054, %v55
  %v2058 = vxor.u32 %v2057, 2147483648
  %v2059 = vmul.f32 %v2058, 1.442695
  %v2060 = vpow.pop %v2059
  %v2061 = vadd.f32 %v2060, 1.0
  %v2062 = vrcp.pop %v2061
  %v2063 = vmul.f32 1.0, %v2062
  %2065 = vrot.lane.b32.xlu0 %v2057, 32
  %v2066 = vpop.permute.xlu0 %2065
  %v2068 = vmul.f32 %v2063, %v2066
  %2070 = vrot.lane.b32.xlu0 %v2068, 64
  %v2071 = vpop.permute.xlu0 %2070
  %v2073 = vadd.f32 %v2057, %v2071
  %v2074 = vtanh.pop %v2073
  %v2075 = vsub.f32 1.0, %v2063
  %2077 = vrot.lane.b32.xlu0 %v2074, 96
  %v2078 = vpop.permute.xlu0 %2077
  %v2080 = vmul.f32 %v2075, %v2078
  %v2081 = vmul.f32 %v2063, %v1629
  %v2082 = vadd.f32 %v2080, %v2081
  %2084 = vrot.lane.b32.xlu0 %v2082, 96
  %v2085 = vpop.permute.xlu0 %2084
  %2087 = vst.msk [vmem:[#allocation2 + $0x4] sm:$0x3] %vm1156, %v2085
  %2089 = vrot.lane.b32.xlu0 %v378, 28
  %v2090 = vpop.permute.xlu0 %2089
  %v2092 = vmul.f32 %v1730, %v2090
  %v2093 = vmul.f32 %v1906, %v2090
  %v2094 = vmul.f32 %v2082, %v2090
  %2096 = vrot.lane.b32.xlu0 %v2092, 96
  %v2097 = vpop.permute.xlu0 %2096
  %v2098 = vsel %vm695, %v2097, 0
  %2100 = vmatprep.subr.mxu0 0.0
  %2101 = vmatpush1.msra.mxu0 0.0
  %2102 = vmatprep.subr.mxu0 0.0
  %2103 = vmatpush1.msra.mxu0 0.0
  %2104 = vmatprep.subr.mxu0 0.0
  %2105 = vmatpush1.msra.mxu0 0.0
  %2106 = vmatprep.subr.mxu0 0.0
  %2107 = vmatpush1.msra.mxu0 0.0
  %2108 = vmatprep.subr.mxu0 0.0
  %2109 = vmatpush1.msra.mxu0 0.0
  %2110 = vmatprep.subr.mxu0 0.0
  %2111 = vmatpush1.msra.mxu0 0.0
  %2112 = vmatprep.subr.mxu0 0.0
  %2113 = vmatpush1.msra.mxu0 0.0
  %2114 = vmatprep.subr.mxu0 0.0
  %2115 = vmatpush1.msra.mxu0 0.0
  %2116 = vmatprep.subr.mxu0 0.0
  %2117 = vmatpush1.msra.mxu0 0.0
  %2118 = vmatprep.subr.mxu0 0.0
  %2119 = vmatpush1.msra.mxu0 0.0
  %2120 = vmatprep.subr.mxu0 0.0
  %2121 = vmatpush1.msra.mxu0 0.0
  %2122 = vmatprep.subr.mxu0 0.0
  %2123 = vmatpush1.msra.mxu0 0.0
  %2124 = vmatprep.subr.mxu0 0.0
  %2125 = vmatpush1.msra.mxu0 %v24
  %2126 = vmatprep.subr.mxu0 0.0
  %2127 = vmatpush1.msra.mxu0 %v23
  %2128 = vmatprep.subr.mxu0 0.0
  %2129 = vmatpush1.msra.mxu0 %v22
  %2130 = vmatprep.subr.mxu0 0.0
  %2131 = vmatpush1.msra.mxu0 %v21
  %2132 = vmatprep.subr.mxu0 0.0
  %2133 = vmatpush2.msra.mxu0 0.0
  %2134 = vmatprep.subr.mxu0 0.0
  %2135 = vmatpush2.msra.mxu0 0.0
  %2136 = vmatprep.subr.mxu0 0.0
  %2137 = vmatpush2.msra.mxu0 0.0
  %2138 = vmatprep.subr.mxu0 0.0
  %2139 = vmatpush2.msra.mxu0 0.0
  %2140 = vmatprep.subr.mxu0 0.0
  %2141 = vmatpush2.msra.mxu0 0.0
  %2142 = vmatprep.subr.mxu0 0.0
  %2143 = vmatpush2.msra.mxu0 0.0
  %2144 = vmatprep.subr.mxu0 0.0
  %2145 = vmatpush2.msra.mxu0 0.0
  %2146 = vmatprep.subr.mxu0 0.0
  %2147 = vmatpush2.msra.mxu0 0.0
  %2148 = vmatprep.subr.mxu0 0.0
  %2149 = vmatpush2.msra.mxu0 0.0
  %2150 = vmatprep.subr.mxu0 0.0
  %2151 = vmatpush2.msra.mxu0 0.0
  %2152 = vmatprep.subr.mxu0 0.0
  %2153 = vmatpush2.msra.mxu0 0.0
  %2154 = vmatprep.subr.mxu0 0.0
  %2155 = vmatpush2.msra.mxu0 0.0
  %2156 = vmatprep.subr.mxu0 0.0
  %2157 = vmatpush2.msra.mxu0 0.0
  %2158 = vmatprep.subr.mxu0 0.0
  %2159 = vmatpush2.msra.mxu0 0.0
  %2160 = vmatprep.subr.mxu0 0.0
  %2161 = vmatpush2.msra.mxu0 0.0
  %2162 = vmatprep.subr.mxu0 0.0
  %2163 = vmatpush2.msra.mxu0 0.0
  %2164 = vmatprep.mubr.f32.mxu0 0.0
  %2165 = vmatmul.mubr.f32.gmra.mxu0 %v2098
  %v2166 = vpop.f32.mrf.mxu0
  %v2167 = vadd.f32 %v51, %v2166
  %v2168 = vpop.f32.mrf.mxu0
  %2169 = vdwg.mxu0
  %v2170 = vadd.f32 %v372, %v2167
  %v2171 = vxor.u32 %v2170, 2147483648
  %v2172 = vmul.f32 %v2171, 1.442695
  %v2173 = vpow.pop %v2172
  %v2174 = vadd.f32 %v2173, 1.0
  %v2175 = vrcp.pop %v2174
  %v2176 = vmul.f32 1.0, %v2175
  %2178 = vrot.lane.b32.xlu0 %v2167, 64
  %v2179 = vpop.permute.xlu0 %2178
  %v2181 = vmul.f32 %v2176, %v2179
  %2183 = vrot.lane.b32.xlu0 %v2181, 64
  %v2184 = vpop.permute.xlu0 %2183
  %v2186 = vadd.f32 %v372, %v2184
  %v2187 = vtanh.pop %v2186
  %v2188 = vsub.f32 1.0, %v2176
  %2190 = vrot.lane.b32.xlu0 %v2187, 96
  %v2191 = vpop.permute.xlu0 %2190
  %v2193 = vmul.f32 %v2188, %v2191
  %v2194 = vmul.f32 %v2176, %v2092
  %v2195 = vadd.f32 %v2193, %v2194
  %2197 = vrot.lane.b32.xlu0 %v2093, 96
  %v2198 = vpop.permute.xlu0 %2197
  %v2199 = vsel %vm695, %v2198, 0
  %2201 = vmatprep.subr.mxu0 0.0
  %2202 = vmatpush1.msra.mxu0 0.0
  %2203 = vmatprep.subr.mxu0 0.0
  %2204 = vmatpush1.msra.mxu0 0.0
  %2205 = vmatprep.subr.mxu0 0.0
  %2206 = vmatpush1.msra.mxu0 0.0
  %2207 = vmatprep.subr.mxu0 0.0
  %2208 = vmatpush1.msra.mxu0 0.0
  %2209 = vmatprep.subr.mxu0 0.0
  %2210 = vmatpush1.msra.mxu0 0.0
  %2211 = vmatprep.subr.mxu0 0.0
  %2212 = vmatpush1.msra.mxu0 0.0
  %2213 = vmatprep.subr.mxu0 0.0
  %2214 = vmatpush1.msra.mxu0 0.0
  %2215 = vmatprep.subr.mxu0 0.0
  %2216 = vmatpush1.msra.mxu0 0.0
  %2217 = vmatprep.subr.mxu0 0.0
  %2218 = vmatpush1.msra.mxu0 0.0
  %2219 = vmatprep.subr.mxu0 0.0
  %2220 = vmatpush1.msra.mxu0 0.0
  %2221 = vmatprep.subr.mxu0 0.0
  %2222 = vmatpush1.msra.mxu0 0.0
  %2223 = vmatprep.subr.mxu0 0.0
  %2224 = vmatpush1.msra.mxu0 0.0
  %2225 = vmatprep.subr.mxu0 0.0
  %2226 = vmatpush1.msra.mxu0 %v33
  %2227 = vmatprep.subr.mxu0 0.0
  %2228 = vmatpush1.msra.mxu0 %v32
  %2229 = vmatprep.subr.mxu0 0.0
  %2230 = vmatpush1.msra.mxu0 %v31
  %2231 = vmatprep.subr.mxu0 0.0
  %2232 = vmatpush1.msra.mxu0 %v30
  %2233 = vmatprep.subr.mxu0 0.0
  %2234 = vmatpush2.msra.mxu0 0.0
  %2235 = vmatprep.subr.mxu0 0.0
  %2236 = vmatpush2.msra.mxu0 0.0
  %2237 = vmatprep.subr.mxu0 0.0
  %2238 = vmatpush2.msra.mxu0 0.0
  %2239 = vmatprep.subr.mxu0 0.0
  %2240 = vmatpush2.msra.mxu0 0.0
  %2241 = vmatprep.subr.mxu0 0.0
  %2242 = vmatpush2.msra.mxu0 0.0
  %2243 = vmatprep.subr.mxu0 0.0
  %2244 = vmatpush2.msra.mxu0 0.0
  %2245 = vmatprep.subr.mxu0 0.0
  %2246 = vmatpush2.msra.mxu0 0.0
  %2247 = vmatprep.subr.mxu0 0.0
  %2248 = vmatpush2.msra.mxu0 0.0
  %2249 = vmatprep.subr.mxu0 0.0
  %2250 = vmatpush2.msra.mxu0 0.0
  %2251 = vmatprep.subr.mxu0 0.0
  %2252 = vmatpush2.msra.mxu0 0.0
  %2253 = vmatprep.subr.mxu0 0.0
  %2254 = vmatpush2.msra.mxu0 0.0
  %2255 = vmatprep.subr.mxu0 0.0
  %2256 = vmatpush2.msra.mxu0 0.0
  %2257 = vmatprep.subr.mxu0 0.0
  %2258 = vmatpush2.msra.mxu0 0.0
  %2259 = vmatprep.subr.mxu0 0.0
  %2260 = vmatpush2.msra.mxu0 0.0
  %2261 = vmatprep.subr.mxu0 0.0
  %2262 = vmatpush2.msra.mxu0 0.0
  %2263 = vmatprep.subr.mxu0 0.0
  %2264 = vmatpush2.msra.mxu0 0.0
  %2265 = vmatprep.mubr.f32.mxu0 0.0
  %2266 = vmatmul.mubr.f32.gmra.mxu0 %v2199
  %v2267 = vpop.f32.mrf.mxu0
  %v2268 = vadd.f32 0.0, %v2267
  %v2269 = vpop.f32.mrf.mxu0
  %2270 = vdwg.mxu0
  %2272 = vrot.lane.b32.xlu0 %v2195, 96
  %v2273 = vpop.permute.xlu0 %2272
  %v2274 = vsel %vm695, %v2273, 0
  %2276 = vmatprep.subr.mxu0 0.0
  %2277 = vmatpush1.msra.mxu0 0.0
  %2278 = vmatprep.subr.mxu0 0.0
  %2279 = vmatpush1.msra.mxu0 0.0
  %2280 = vmatprep.subr.mxu0 0.0
  %2281 = vmatpush1.msra.mxu0 0.0
  %2282 = vmatprep.subr.mxu0 0.0
  %2283 = vmatpush1.msra.mxu0 0.0
  %2284 = vmatprep.subr.mxu0 0.0
  %2285 = vmatpush1.msra.mxu0 0.0
  %2286 = vmatprep.subr.mxu0 0.0
  %2287 = vmatpush1.msra.mxu0 0.0
  %2288 = vmatprep.subr.mxu0 0.0
  %2289 = vmatpush1.msra.mxu0 0.0
  %2290 = vmatprep.subr.mxu0 0.0
  %2291 = vmatpush1.msra.mxu0 0.0
  %2292 = vmatprep.subr.mxu0 0.0
  %2293 = vmatpush1.msra.mxu0 0.0
  %2294 = vmatprep.subr.mxu0 0.0
  %2295 = vmatpush1.msra.mxu0 0.0
  %2296 = vmatprep.subr.mxu0 0.0
  %2297 = vmatpush1.msra.mxu0 0.0
  %2298 = vmatprep.subr.mxu0 0.0
  %2299 = vmatpush1.msra.mxu0 0.0
  %2300 = vmatprep.subr.mxu0 0.0
  %2301 = vmatpush1.msra.mxu0 %v28
  %2302 = vmatprep.subr.mxu0 0.0
  %2303 = vmatpush1.msra.mxu0 %v27
  %2304 = vmatprep.subr.mxu0 0.0
  %2305 = vmatpush1.msra.mxu0 %v26
  %2306 = vmatprep.subr.mxu0 0.0
  %2307 = vmatpush1.msra.mxu0 %v25
  %2308 = vmatprep.subr.mxu0 0.0
  %2309 = vmatpush2.msra.mxu0 0.0
  %2310 = vmatprep.subr.mxu0 0.0
  %2311 = vmatpush2.msra.mxu0 0.0
  %2312 = vmatprep.subr.mxu0 0.0
  %2313 = vmatpush2.msra.mxu0 0.0
  %2314 = vmatprep.subr.mxu0 0.0
  %2315 = vmatpush2.msra.mxu0 0.0
  %2316 = vmatprep.subr.mxu0 0.0
  %2317 = vmatpush2.msra.mxu0 0.0
  %2318 = vmatprep.subr.mxu0 0.0
  %2319 = vmatpush2.msra.mxu0 0.0
  %2320 = vmatprep.subr.mxu0 0.0
  %2321 = vmatpush2.msra.mxu0 0.0
  %2322 = vmatprep.subr.mxu0 0.0
  %2323 = vmatpush2.msra.mxu0 0.0
  %2324 = vmatprep.subr.mxu0 0.0
  %2325 = vmatpush2.msra.mxu0 0.0
  %2326 = vmatprep.subr.mxu0 0.0
  %2327 = vmatpush2.msra.mxu0 0.0
  %2328 = vmatprep.subr.mxu0 0.0
  %2329 = vmatpush2.msra.mxu0 0.0
  %2330 = vmatprep.subr.mxu0 0.0
  %2331 = vmatpush2.msra.mxu0 0.0
  %2332 = vmatprep.subr.mxu0 0.0
  %2333 = vmatpush2.msra.mxu0 0.0
  %2334 = vmatprep.subr.mxu0 0.0
  %2335 = vmatpush2.msra.mxu0 0.0
  %2336 = vmatprep.subr.mxu0 0.0
  %2337 = vmatpush2.msra.mxu0 0.0
  %2338 = vmatprep.subr.mxu0 0.0
  %2339 = vmatpush2.msra.mxu0 0.0
  %2340 = vmatprep.mubr.f32.mxu0 0.0
  %2341 = vmatmul.mubr.f32.gmra.mxu0 %v2274
  %v2342 = vpop.f32.mrf.mxu0
  %v2343 = vadd.f32 %v2268, %v2342
  %v2344 = vpop.f32.mrf.mxu0
  %2345 = vdwg.mxu0
  %v2346 = vadd.f32 %v2343, %v53
  %v2347 = vxor.u32 %v2346, 2147483648
  %v2348 = vmul.f32 %v2347, 1.442695
  %v2349 = vpow.pop %v2348
  %v2350 = vadd.f32 %v2349, 1.0
  %v2351 = vrcp.pop %v2350
  %v2352 = vmul.f32 1.0, %v2351
  %2354 = vrot.lane.b32.xlu0 %v2346, 32
  %v2355 = vpop.permute.xlu0 %2354
  %v2357 = vmul.f32 %v2352, %v2355
  %2359 = vrot.lane.b32.xlu0 %v2357, 64
  %v2360 = vpop.permute.xlu0 %2359
  %v2362 = vadd.f32 %v2346, %v2360
  %v2363 = vtanh.pop %v2362
  %v2364 = vsub.f32 1.0, %v2352
  %2366 = vrot.lane.b32.xlu0 %v2363, 96
  %v2367 = vpop.permute.xlu0 %2366
  %v2369 = vmul.f32 %v2364, %v2367
  %v2370 = vmul.f32 %v2352, %v2093
  %v2371 = vadd.f32 %v2369, %v2370
  %2373 = vrot.lane.b32.xlu0 %v2094, 96
  %v2374 = vpop.permute.xlu0 %2373
  %v2375 = vsel %vm695, %v2374, 0
  %2377 = vmatprep.subr.mxu0 0.0
  %2378 = vmatpush1.msra.mxu0 0.0
  %2379 = vmatprep.subr.mxu0 0.0
  %2380 = vmatpush1.msra.mxu0 0.0
  %2381 = vmatprep.subr.mxu0 0.0
  %2382 = vmatpush1.msra.mxu0 0.0
  %2383 = vmatprep.subr.mxu0 0.0
  %2384 = vmatpush1.msra.mxu0 0.0
  %2385 = vmatprep.subr.mxu0 0.0
  %2386 = vmatpush1.msra.mxu0 0.0
  %2387 = vmatprep.subr.mxu0 0.0
  %2388 = vmatpush1.msra.mxu0 0.0
  %2389 = vmatprep.subr.mxu0 0.0
  %2390 = vmatpush1.msra.mxu0 0.0
  %2391 = vmatprep.subr.mxu0 0.0
  %2392 = vmatpush1.msra.mxu0 0.0
  %2393 = vmatprep.subr.mxu0 0.0
  %2394 = vmatpush1.msra.mxu0 0.0
  %2395 = vmatprep.subr.mxu0 0.0
  %2396 = vmatpush1.msra.mxu0 0.0
  %2397 = vmatprep.subr.mxu0 0.0
  %2398 = vmatpush1.msra.mxu0 0.0
  %2399 = vmatprep.subr.mxu0 0.0
  %2400 = vmatpush1.msra.mxu0 0.0
  %2401 = vmatprep.subr.mxu0 0.0
  %2402 = vmatpush1.msra.mxu0 %v43
  %2403 = vmatprep.subr.mxu0 0.0
  %2404 = vmatpush1.msra.mxu0 %v42
  %2405 = vmatprep.subr.mxu0 0.0
  %2406 = vmatpush1.msra.mxu0 %v41
  %2407 = vmatprep.subr.mxu0 0.0
  %2408 = vmatpush1.msra.mxu0 %v40
  %2409 = vmatprep.subr.mxu0 0.0
  %2410 = vmatpush2.msra.mxu0 0.0
  %2411 = vmatprep.subr.mxu0 0.0
  %2412 = vmatpush2.msra.mxu0 0.0
  %2413 = vmatprep.subr.mxu0 0.0
  %2414 = vmatpush2.msra.mxu0 0.0
  %2415 = vmatprep.subr.mxu0 0.0
  %2416 = vmatpush2.msra.mxu0 0.0
  %2417 = vmatprep.subr.mxu0 0.0
  %2418 = vmatpush2.msra.mxu0 0.0
  %2419 = vmatprep.subr.mxu0 0.0
  %2420 = vmatpush2.msra.mxu0 0.0
  %2421 = vmatprep.subr.mxu0 0.0
  %2422 = vmatpush2.msra.mxu0 0.0
  %2423 = vmatprep.subr.mxu0 0.0
  %2424 = vmatpush2.msra.mxu0 0.0
  %2425 = vmatprep.subr.mxu0 0.0
  %2426 = vmatpush2.msra.mxu0 0.0
  %2427 = vmatprep.subr.mxu0 0.0
  %2428 = vmatpush2.msra.mxu0 0.0
  %2429 = vmatprep.subr.mxu0 0.0
  %2430 = vmatpush2.msra.mxu0 0.0
  %2431 = vmatprep.subr.mxu0 0.0
  %2432 = vmatpush2.msra.mxu0 0.0
  %2433 = vmatprep.subr.mxu0 0.0
  %2434 = vmatpush2.msra.mxu0 0.0
  %2435 = vmatprep.subr.mxu0 0.0
  %2436 = vmatpush2.msra.mxu0 0.0
  %2437 = vmatprep.subr.mxu0 0.0
  %2438 = vmatpush2.msra.mxu0 0.0
  %2439 = vmatprep.subr.mxu0 0.0
  %2440 = vmatpush2.msra.mxu0 0.0
  %2441 = vmatprep.mubr.f32.mxu0 0.0
  %2442 = vmatmul.mubr.f32.gmra.mxu0 %v2375
  %v2443 = vpop.f32.mrf.mxu0
  %v2444 = vadd.f32 0.0, %v2443
  %v2445 = vpop.f32.mrf.mxu0
  %2446 = vdwg.mxu0
  %2448 = vrot.lane.b32.xlu0 %v2371, 96
  %v2449 = vpop.permute.xlu0 %2448
  %v2450 = vsel %vm695, %v2449, 0
  %2452 = vmatprep.subr.mxu0 0.0
  %2453 = vmatpush1.msra.mxu0 0.0
  %2454 = vmatprep.subr.mxu0 0.0
  %2455 = vmatpush1.msra.mxu0 0.0
  %2456 = vmatprep.subr.mxu0 0.0
  %2457 = vmatpush1.msra.mxu0 0.0
  %2458 = vmatprep.subr.mxu0 0.0
  %2459 = vmatpush1.msra.mxu0 0.0
  %2460 = vmatprep.subr.mxu0 0.0
  %2461 = vmatpush1.msra.mxu0 0.0
  %2462 = vmatprep.subr.mxu0 0.0
  %2463 = vmatpush1.msra.mxu0 0.0
  %2464 = vmatprep.subr.mxu0 0.0
  %2465 = vmatpush1.msra.mxu0 0.0
  %2466 = vmatprep.subr.mxu0 0.0
  %2467 = vmatpush1.msra.mxu0 0.0
  %2468 = vmatprep.subr.mxu0 0.0
  %2469 = vmatpush1.msra.mxu0 0.0
  %2470 = vmatprep.subr.mxu0 0.0
  %2471 = vmatpush1.msra.mxu0 0.0
  %2472 = vmatprep.subr.mxu0 0.0
  %2473 = vmatpush1.msra.mxu0 0.0
  %2474 = vmatprep.subr.mxu0 0.0
  %2475 = vmatpush1.msra.mxu0 0.0
  %2476 = vmatprep.subr.mxu0 0.0
  %2477 = vmatpush1.msra.mxu0 %v38
  %2478 = vmatprep.subr.mxu0 0.0
  %2479 = vmatpush1.msra.mxu0 %v37
  %2480 = vmatprep.subr.mxu0 0.0
  %2481 = vmatpush1.msra.mxu0 %v36
  %2482 = vmatprep.subr.mxu0 0.0
  %2483 = vmatpush1.msra.mxu0 %v35
  %2484 = vmatprep.subr.mxu0 0.0
  %2485 = vmatpush2.msra.mxu0 0.0
  %2486 = vmatprep.subr.mxu0 0.0
  %2487 = vmatpush2.msra.mxu0 0.0
  %2488 = vmatprep.subr.mxu0 0.0
  %2489 = vmatpush2.msra.mxu0 0.0
  %2490 = vmatprep.subr.mxu0 0.0
  %2491 = vmatpush2.msra.mxu0 0.0
  %2492 = vmatprep.subr.mxu0 0.0
  %2493 = vmatpush2.msra.mxu0 0.0
  %2494 = vmatprep.subr.mxu0 0.0
  %2495 = vmatpush2.msra.mxu0 0.0
  %2496 = vmatprep.subr.mxu0 0.0
  %2497 = vmatpush2.msra.mxu0 0.0
  %2498 = vmatprep.subr.mxu0 0.0
  %2499 = vmatpush2.msra.mxu0 0.0
  %2500 = vmatprep.subr.mxu0 0.0
  %2501 = vmatpush2.msra.mxu0 0.0
  %2502 = vmatprep.subr.mxu0 0.0
  %2503 = vmatpush2.msra.mxu0 0.0
  %2504 = vmatprep.subr.mxu0 0.0
  %2505 = vmatpush2.msra.mxu0 0.0
  %2506 = vmatprep.subr.mxu0 0.0
  %2507 = vmatpush2.msra.mxu0 0.0
  %2508 = vmatprep.subr.mxu0 0.0
  %2509 = vmatpush2.msra.mxu0 0.0
  %2510 = vmatprep.subr.mxu0 0.0
  %2511 = vmatpush2.msra.mxu0 0.0
  %2512 = vmatprep.subr.mxu0 0.0
  %2513 = vmatpush2.msra.mxu0 0.0
  %2514 = vmatprep.subr.mxu0 0.0
  %2515 = vmatpush2.msra.mxu0 0.0
  %2516 = vmatprep.mubr.f32.mxu0 0.0
  %2517 = vmatmul.mubr.f32.gmra.mxu0 %v2450
  %v2518 = vpop.f32.mrf.mxu0
  %v2519 = vadd.f32 %v2444, %v2518
  %v2520 = vpop.f32.mrf.mxu0
  %2521 = vdwg.mxu0
  %v2522 = vadd.f32 %v2519, %v55
  %v2523 = vxor.u32 %v2522, 2147483648
  %v2524 = vmul.f32 %v2523, 1.442695
  %v2525 = vpow.pop %v2524
  %v2526 = vadd.f32 %v2525, 1.0
  %v2527 = vrcp.pop %v2526
  %v2528 = vmul.f32 1.0, %v2527
  %2530 = vrot.lane.b32.xlu0 %v2522, 32
  %v2531 = vpop.permute.xlu0 %2530
  %v2533 = vmul.f32 %v2528, %v2531
  %2535 = vrot.lane.b32.xlu0 %v2533, 64
  %v2536 = vpop.permute.xlu0 %2535
  %v2538 = vadd.f32 %v2522, %v2536
  %v2539 = vtanh.pop %v2538
  %v2540 = vsub.f32 1.0, %v2528
  %2542 = vrot.lane.b32.xlu0 %v2539, 96
  %v2543 = vpop.permute.xlu0 %2542
  %v2545 = vmul.f32 %v2540, %v2543
  %v2546 = vmul.f32 %v2528, %v2094
  %v2547 = vadd.f32 %v2545, %v2546
  %2549 = vrot.lane.b32.xlu0 %v2547, 96
  %v2550 = vpop.permute.xlu0 %2549
  %2552 = vst.msk [vmem:[#allocation2 + $0x6] sm:$0x3] %vm1156, %v2550
  %2554 = vrot.lane.b32.xlu0 %v457, 28
  %v2555 = vpop.permute.xlu0 %2554
  %v2557 = vmul.f32 %v2195, %v2555
  %v2558 = vmul.f32 %v2371, %v2555
  %v2559 = vmul.f32 %v2547, %v2555
  %2561 = vrot.lane.b32.xlu0 %v2557, 96
  %v2562 = vpop.permute.xlu0 %2561
  %v2563 = vsel %vm695, %v2562, 0
  %2565 = vmatprep.subr.mxu0 0.0
  %2566 = vmatpush1.msra.mxu0 0.0
  %2567 = vmatprep.subr.mxu0 0.0
  %2568 = vmatpush1.msra.mxu0 0.0
  %2569 = vmatprep.subr.mxu0 0.0
  %2570 = vmatpush1.msra.mxu0 0.0
  %2571 = vmatprep.subr.mxu0 0.0
  %2572 = vmatpush1.msra.mxu0 0.0
  %2573 = vmatprep.subr.mxu0 0.0
  %2574 = vmatpush1.msra.mxu0 0.0
  %2575 = vmatprep.subr.mxu0 0.0
  %2576 = vmatpush1.msra.mxu0 0.0
  %2577 = vmatprep.subr.mxu0 0.0
  %2578 = vmatpush1.msra.mxu0 0.0
  %2579 = vmatprep.subr.mxu0 0.0
  %2580 = vmatpush1.msra.mxu0 0.0
  %2581 = vmatprep.subr.mxu0 0.0
  %2582 = vmatpush1.msra.mxu0 0.0
  %2583 = vmatprep.subr.mxu0 0.0
  %2584 = vmatpush1.msra.mxu0 0.0
  %2585 = vmatprep.subr.mxu0 0.0
  %2586 = vmatpush1.msra.mxu0 0.0
  %2587 = vmatprep.subr.mxu0 0.0
  %2588 = vmatpush1.msra.mxu0 0.0
  %2589 = vmatprep.subr.mxu0 0.0
  %2590 = vmatpush1.msra.mxu0 %v24
  %2591 = vmatprep.subr.mxu0 0.0
  %2592 = vmatpush1.msra.mxu0 %v23
  %2593 = vmatprep.subr.mxu0 0.0
  %2594 = vmatpush1.msra.mxu0 %v22
  %2595 = vmatprep.subr.mxu0 0.0
  %2596 = vmatpush1.msra.mxu0 %v21
  %2597 = vmatprep.subr.mxu0 0.0
  %2598 = vmatpush2.msra.mxu0 0.0
  %2599 = vmatprep.subr.mxu0 0.0
  %2600 = vmatpush2.msra.mxu0 0.0
  %2601 = vmatprep.subr.mxu0 0.0
  %2602 = vmatpush2.msra.mxu0 0.0
  %2603 = vmatprep.subr.mxu0 0.0
  %2604 = vmatpush2.msra.mxu0 0.0
  %2605 = vmatprep.subr.mxu0 0.0
  %2606 = vmatpush2.msra.mxu0 0.0
  %2607 = vmatprep.subr.mxu0 0.0
  %2608 = vmatpush2.msra.mxu0 0.0
  %2609 = vmatprep.subr.mxu0 0.0
  %2610 = vmatpush2.msra.mxu0 0.0
  %2611 = vmatprep.subr.mxu0 0.0
  %2612 = vmatpush2.msra.mxu0 0.0
  %2613 = vmatprep.subr.mxu0 0.0
  %2614 = vmatpush2.msra.mxu0 0.0
  %2615 = vmatprep.subr.mxu0 0.0
  %2616 = vmatpush2.msra.mxu0 0.0
  %2617 = vmatprep.subr.mxu0 0.0
  %2618 = vmatpush2.msra.mxu0 0.0
  %2619 = vmatprep.subr.mxu0 0.0
  %2620 = vmatpush2.msra.mxu0 0.0
  %2621 = vmatprep.subr.mxu0 0.0
  %2622 = vmatpush2.msra.mxu0 0.0
  %2623 = vmatprep.subr.mxu0 0.0
  %2624 = vmatpush2.msra.mxu0 0.0
  %2625 = vmatprep.subr.mxu0 0.0
  %2626 = vmatpush2.msra.mxu0 0.0
  %2627 = vmatprep.subr.mxu0 0.0
  %2628 = vmatpush2.msra.mxu0 0.0
  %2629 = vmatprep.mubr.f32.mxu0 0.0
  %2630 = vmatmul.mubr.f32.gmra.mxu0 %v2563
  %v2631 = vpop.f32.mrf.mxu0
  %v2632 = vadd.f32 %v51, %v2631
  %v2633 = vpop.f32.mrf.mxu0
  %2634 = vdwg.mxu0
  %v2635 = vadd.f32 %v451, %v2632
  %v2636 = vxor.u32 %v2635, 2147483648
  %v2637 = vmul.f32 %v2636, 1.442695
  %v2638 = vpow.pop %v2637
  %v2639 = vadd.f32 %v2638, 1.0
  %v2640 = vrcp.pop %v2639
  %v2641 = vmul.f32 1.0, %v2640
  %2643 = vrot.lane.b32.xlu0 %v2632, 64
  %v2644 = vpop.permute.xlu0 %2643
  %v2646 = vmul.f32 %v2641, %v2644
  %2648 = vrot.lane.b32.xlu0 %v2646, 64
  %v2649 = vpop.permute.xlu0 %2648
  %v2651 = vadd.f32 %v451, %v2649
  %v2652 = vtanh.pop %v2651
  %v2653 = vsub.f32 1.0, %v2641
  %2655 = vrot.lane.b32.xlu0 %v2652, 96
  %v2656 = vpop.permute.xlu0 %2655
  %v2658 = vmul.f32 %v2653, %v2656
  %v2659 = vmul.f32 %v2641, %v2557
  %v2660 = vadd.f32 %v2658, %v2659
  %2662 = vrot.lane.b32.xlu0 %v2558, 96
  %v2663 = vpop.permute.xlu0 %2662
  %v2664 = vsel %vm695, %v2663, 0
  %2666 = vmatprep.subr.mxu0 0.0
  %2667 = vmatpush1.msra.mxu0 0.0
  %2668 = vmatprep.subr.mxu0 0.0
  %2669 = vmatpush1.msra.mxu0 0.0
  %2670 = vmatprep.subr.mxu0 0.0
  %2671 = vmatpush1.msra.mxu0 0.0
  %2672 = vmatprep.subr.mxu0 0.0
  %2673 = vmatpush1.msra.mxu0 0.0
  %2674 = vmatprep.subr.mxu0 0.0
  %2675 = vmatpush1.msra.mxu0 0.0
  %2676 = vmatprep.subr.mxu0 0.0
  %2677 = vmatpush1.msra.mxu0 0.0
  %2678 = vmatprep.subr.mxu0 0.0
  %2679 = vmatpush1.msra.mxu0 0.0
  %2680 = vmatprep.subr.mxu0 0.0
  %2681 = vmatpush1.msra.mxu0 0.0
  %2682 = vmatprep.subr.mxu0 0.0
  %2683 = vmatpush1.msra.mxu0 0.0
  %2684 = vmatprep.subr.mxu0 0.0
  %2685 = vmatpush1.msra.mxu0 0.0
  %2686 = vmatprep.subr.mxu0 0.0
  %2687 = vmatpush1.msra.mxu0 0.0
  %2688 = vmatprep.subr.mxu0 0.0
  %2689 = vmatpush1.msra.mxu0 0.0
  %2690 = vmatprep.subr.mxu0 0.0
  %2691 = vmatpush1.msra.mxu0 %v33
  %2692 = vmatprep.subr.mxu0 0.0
  %2693 = vmatpush1.msra.mxu0 %v32
  %2694 = vmatprep.subr.mxu0 0.0
  %2695 = vmatpush1.msra.mxu0 %v31
  %2696 = vmatprep.subr.mxu0 0.0
  %2697 = vmatpush1.msra.mxu0 %v30
  %2698 = vmatprep.subr.mxu0 0.0
  %2699 = vmatpush2.msra.mxu0 0.0
  %2700 = vmatprep.subr.mxu0 0.0
  %2701 = vmatpush2.msra.mxu0 0.0
  %2702 = vmatprep.subr.mxu0 0.0
  %2703 = vmatpush2.msra.mxu0 0.0
  %2704 = vmatprep.subr.mxu0 0.0
  %2705 = vmatpush2.msra.mxu0 0.0
  %2706 = vmatprep.subr.mxu0 0.0
  %2707 = vmatpush2.msra.mxu0 0.0
  %2708 = vmatprep.subr.mxu0 0.0
  %2709 = vmatpush2.msra.mxu0 0.0
  %2710 = vmatprep.subr.mxu0 0.0
  %2711 = vmatpush2.msra.mxu0 0.0
  %2712 = vmatprep.subr.mxu0 0.0
  %2713 = vmatpush2.msra.mxu0 0.0
  %2714 = vmatprep.subr.mxu0 0.0
  %2715 = vmatpush2.msra.mxu0 0.0
  %2716 = vmatprep.subr.mxu0 0.0
  %2717 = vmatpush2.msra.mxu0 0.0
  %2718 = vmatprep.subr.mxu0 0.0
  %2719 = vmatpush2.msra.mxu0 0.0
  %2720 = vmatprep.subr.mxu0 0.0
  %2721 = vmatpush2.msra.mxu0 0.0
  %2722 = vmatprep.subr.mxu0 0.0
  %2723 = vmatpush2.msra.mxu0 0.0
  %2724 = vmatprep.subr.mxu0 0.0
  %2725 = vmatpush2.msra.mxu0 0.0
  %2726 = vmatprep.subr.mxu0 0.0
  %2727 = vmatpush2.msra.mxu0 0.0
  %2728 = vmatprep.subr.mxu0 0.0
  %2729 = vmatpush2.msra.mxu0 0.0
  %2730 = vmatprep.mubr.f32.mxu0 0.0
  %2731 = vmatmul.mubr.f32.gmra.mxu0 %v2664
  %v2732 = vpop.f32.mrf.mxu0
  %v2733 = vadd.f32 0.0, %v2732
  %v2734 = vpop.f32.mrf.mxu0
  %2735 = vdwg.mxu0
  %2737 = vrot.lane.b32.xlu0 %v2660, 96
  %v2738 = vpop.permute.xlu0 %2737
  %v2739 = vsel %vm695, %v2738, 0
  %2741 = vmatprep.subr.mxu0 0.0
  %2742 = vmatpush1.msra.mxu0 0.0
  %2743 = vmatprep.subr.mxu0 0.0
  %2744 = vmatpush1.msra.mxu0 0.0
  %2745 = vmatprep.subr.mxu0 0.0
  %2746 = vmatpush1.msra.mxu0 0.0
  %2747 = vmatprep.subr.mxu0 0.0
  %2748 = vmatpush1.msra.mxu0 0.0
  %2749 = vmatprep.subr.mxu0 0.0
  %2750 = vmatpush1.msra.mxu0 0.0
  %2751 = vmatprep.subr.mxu0 0.0
  %2752 = vmatpush1.msra.mxu0 0.0
  %2753 = vmatprep.subr.mxu0 0.0
  %2754 = vmatpush1.msra.mxu0 0.0
  %2755 = vmatprep.subr.mxu0 0.0
  %2756 = vmatpush1.msra.mxu0 0.0
  %2757 = vmatprep.subr.mxu0 0.0
  %2758 = vmatpush1.msra.mxu0 0.0
  %2759 = vmatprep.subr.mxu0 0.0
  %2760 = vmatpush1.msra.mxu0 0.0
  %2761 = vmatprep.subr.mxu0 0.0
  %2762 = vmatpush1.msra.mxu0 0.0
  %2763 = vmatprep.subr.mxu0 0.0
  %2764 = vmatpush1.msra.mxu0 0.0
  %2765 = vmatprep.subr.mxu0 0.0
  %2766 = vmatpush1.msra.mxu0 %v28
  %2767 = vmatprep.subr.mxu0 0.0
  %2768 = vmatpush1.msra.mxu0 %v27
  %2769 = vmatprep.subr.mxu0 0.0
  %2770 = vmatpush1.msra.mxu0 %v26
  %2771 = vmatprep.subr.mxu0 0.0
  %2772 = vmatpush1.msra.mxu0 %v25
  %2773 = vmatprep.subr.mxu0 0.0
  %2774 = vmatpush2.msra.mxu0 0.0
  %2775 = vmatprep.subr.mxu0 0.0
  %2776 = vmatpush2.msra.mxu0 0.0
  %2777 = vmatprep.subr.mxu0 0.0
  %2778 = vmatpush2.msra.mxu0 0.0
  %2779 = vmatprep.subr.mxu0 0.0
  %2780 = vmatpush2.msra.mxu0 0.0
  %2781 = vmatprep.subr.mxu0 0.0
  %2782 = vmatpush2.msra.mxu0 0.0
  %2783 = vmatprep.subr.mxu0 0.0
  %2784 = vmatpush2.msra.mxu0 0.0
  %2785 = vmatprep.subr.mxu0 0.0
  %2786 = vmatpush2.msra.mxu0 0.0
  %2787 = vmatprep.subr.mxu0 0.0
  %2788 = vmatpush2.msra.mxu0 0.0
  %2789 = vmatprep.subr.mxu0 0.0
  %2790 = vmatpush2.msra.mxu0 0.0
  %2791 = vmatprep.subr.mxu0 0.0
  %2792 = vmatpush2.msra.mxu0 0.0
  %2793 = vmatprep.subr.mxu0 0.0
  %2794 = vmatpush2.msra.mxu0 0.0
  %2795 = vmatprep.subr.mxu0 0.0
  %2796 = vmatpush2.msra.mxu0 0.0
  %2797 = vmatprep.subr.mxu0 0.0
  %2798 = vmatpush2.msra.mxu0 0.0
  %2799 = vmatprep.subr.mxu0 0.0
  %2800 = vmatpush2.msra.mxu0 0.0
  %2801 = vmatprep.subr.mxu0 0.0
  %2802 = vmatpush2.msra.mxu0 0.0
  %2803 = vmatprep.subr.mxu0 0.0
  %2804 = vmatpush2.msra.mxu0 0.0
  %2805 = vmatprep.mubr.f32.mxu0 0.0
  %2806 = vmatmul.mubr.f32.gmra.mxu0 %v2739
  %v2807 = vpop.f32.mrf.mxu0
  %v2808 = vadd.f32 %v2733, %v2807
  %v2809 = vpop.f32.mrf.mxu0
  %2810 = vdwg.mxu0
  %v2811 = vadd.f32 %v2808, %v53
  %v2812 = vxor.u32 %v2811, 2147483648
  %v2813 = vmul.f32 %v2812, 1.442695
  %v2814 = vpow.pop %v2813
  %v2815 = vadd.f32 %v2814, 1.0
  %v2816 = vrcp.pop %v2815
  %v2817 = vmul.f32 1.0, %v2816
  %2819 = vrot.lane.b32.xlu0 %v2811, 32
  %v2820 = vpop.permute.xlu0 %2819
  %v2822 = vmul.f32 %v2817, %v2820
  %2824 = vrot.lane.b32.xlu0 %v2822, 64
  %v2825 = vpop.permute.xlu0 %2824
  %v2827 = vadd.f32 %v2811, %v2825
  %v2828 = vtanh.pop %v2827
  %v2829 = vsub.f32 1.0, %v2817
  %2831 = vrot.lane.b32.xlu0 %v2828, 96
  %v2832 = vpop.permute.xlu0 %2831
  %v2834 = vmul.f32 %v2829, %v2832
  %v2835 = vmul.f32 %v2817, %v2558
  %v2836 = vadd.f32 %v2834, %v2835
  %2838 = vrot.lane.b32.xlu0 %v2559, 96
  %v2839 = vpop.permute.xlu0 %2838
  %v2840 = vsel %vm695, %v2839, 0
  %2842 = vmatprep.subr.mxu0 0.0
  %2843 = vmatpush1.msra.mxu0 0.0
  %2844 = vmatprep.subr.mxu0 0.0
  %2845 = vmatpush1.msra.mxu0 0.0
  %2846 = vmatprep.subr.mxu0 0.0
  %2847 = vmatpush1.msra.mxu0 0.0
  %2848 = vmatprep.subr.mxu0 0.0
  %2849 = vmatpush1.msra.mxu0 0.0
  %2850 = vmatprep.subr.mxu0 0.0
  %2851 = vmatpush1.msra.mxu0 0.0
  %2852 = vmatprep.subr.mxu0 0.0
  %2853 = vmatpush1.msra.mxu0 0.0
  %2854 = vmatprep.subr.mxu0 0.0
  %2855 = vmatpush1.msra.mxu0 0.0
  %2856 = vmatprep.subr.mxu0 0.0
  %2857 = vmatpush1.msra.mxu0 0.0
  %2858 = vmatprep.subr.mxu0 0.0
  %2859 = vmatpush1.msra.mxu0 0.0
  %2860 = vmatprep.subr.mxu0 0.0
  %2861 = vmatpush1.msra.mxu0 0.0
  %2862 = vmatprep.subr.mxu0 0.0
  %2863 = vmatpush1.msra.mxu0 0.0
  %2864 = vmatprep.subr.mxu0 0.0
  %2865 = vmatpush1.msra.mxu0 0.0
  %2866 = vmatprep.subr.mxu0 0.0
  %2867 = vmatpush1.msra.mxu0 %v43
  %2868 = vmatprep.subr.mxu0 0.0
  %2869 = vmatpush1.msra.mxu0 %v42
  %2870 = vmatprep.subr.mxu0 0.0
  %2871 = vmatpush1.msra.mxu0 %v41
  %2872 = vmatprep.subr.mxu0 0.0
  %2873 = vmatpush1.msra.mxu0 %v40
  %2874 = vmatprep.subr.mxu0 0.0
  %2875 = vmatpush2.msra.mxu0 0.0
  %2876 = vmatprep.subr.mxu0 0.0
  %2877 = vmatpush2.msra.mxu0 0.0
  %2878 = vmatprep.subr.mxu0 0.0
  %2879 = vmatpush2.msra.mxu0 0.0
  %2880 = vmatprep.subr.mxu0 0.0
  %2881 = vmatpush2.msra.mxu0 0.0
  %2882 = vmatprep.subr.mxu0 0.0
  %2883 = vmatpush2.msra.mxu0 0.0
  %2884 = vmatprep.subr.mxu0 0.0
  %2885 = vmatpush2.msra.mxu0 0.0
  %2886 = vmatprep.subr.mxu0 0.0
  %2887 = vmatpush2.msra.mxu0 0.0
  %2888 = vmatprep.subr.mxu0 0.0
  %2889 = vmatpush2.msra.mxu0 0.0
  %2890 = vmatprep.subr.mxu0 0.0
  %2891 = vmatpush2.msra.mxu0 0.0
  %2892 = vmatprep.subr.mxu0 0.0
  %2893 = vmatpush2.msra.mxu0 0.0
  %2894 = vmatprep.subr.mxu0 0.0
  %2895 = vmatpush2.msra.mxu0 0.0
  %2896 = vmatprep.subr.mxu0 0.0
  %2897 = vmatpush2.msra.mxu0 0.0
  %2898 = vmatprep.subr.mxu0 0.0
  %2899 = vmatpush2.msra.mxu0 0.0
  %2900 = vmatprep.subr.mxu0 0.0
  %2901 = vmatpush2.msra.mxu0 0.0
  %2902 = vmatprep.subr.mxu0 0.0
  %2903 = vmatpush2.msra.mxu0 0.0
  %2904 = vmatprep.subr.mxu0 0.0
  %2905 = vmatpush2.msra.mxu0 0.0
  %2906 = vmatprep.mubr.f32.mxu0 0.0
  %2907 = vmatmul.mubr.f32.gmra.mxu0 %v2840
  %v2908 = vpop.f32.mrf.mxu0
  %v2909 = vadd.f32 0.0, %v2908
  %v2910 = vpop.f32.mrf.mxu0
  %2911 = vdwg.mxu0
  %2913 = vrot.lane.b32.xlu0 %v2836, 96
  %v2914 = vpop.permute.xlu0 %2913
  %v2915 = vsel %vm695, %v2914, 0
  %2917 = vmatprep.subr.mxu0 0.0
  %2918 = vmatpush1.msra.mxu0 0.0
  %2919 = vmatprep.subr.mxu0 0.0
  %2920 = vmatpush1.msra.mxu0 0.0
  %2921 = vmatprep.subr.mxu0 0.0
  %2922 = vmatpush1.msra.mxu0 0.0
  %2923 = vmatprep.subr.mxu0 0.0
  %2924 = vmatpush1.msra.mxu0 0.0
  %2925 = vmatprep.subr.mxu0 0.0
  %2926 = vmatpush1.msra.mxu0 0.0
  %2927 = vmatprep.subr.mxu0 0.0
  %2928 = vmatpush1.msra.mxu0 0.0
  %2929 = vmatprep.subr.mxu0 0.0
  %2930 = vmatpush1.msra.mxu0 0.0
  %2931 = vmatprep.subr.mxu0 0.0
  %2932 = vmatpush1.msra.mxu0 0.0
  %2933 = vmatprep.subr.mxu0 0.0
  %2934 = vmatpush1.msra.mxu0 0.0
  %2935 = vmatprep.subr.mxu0 0.0
  %2936 = vmatpush1.msra.mxu0 0.0
  %2937 = vmatprep.subr.mxu0 0.0
  %2938 = vmatpush1.msra.mxu0 0.0
  %2939 = vmatprep.subr.mxu0 0.0
  %2940 = vmatpush1.msra.mxu0 0.0
  %2941 = vmatprep.subr.mxu0 0.0
  %2942 = vmatpush1.msra.mxu0 %v38
  %2943 = vmatprep.subr.mxu0 0.0
  %2944 = vmatpush1.msra.mxu0 %v37
  %2945 = vmatprep.subr.mxu0 0.0
  %2946 = vmatpush1.msra.mxu0 %v36
  %2947 = vmatprep.subr.mxu0 0.0
  %2948 = vmatpush1.msra.mxu0 %v35
  %2949 = vmatprep.subr.mxu0 0.0
  %2950 = vmatpush2.msra.mxu0 0.0
  %2951 = vmatprep.subr.mxu0 0.0
  %2952 = vmatpush2.msra.mxu0 0.0
  %2953 = vmatprep.subr.mxu0 0.0
  %2954 = vmatpush2.msra.mxu0 0.0
  %2955 = vmatprep.subr.mxu0 0.0
  %2956 = vmatpush2.msra.mxu0 0.0
  %2957 = vmatprep.subr.mxu0 0.0
  %2958 = vmatpush2.msra.mxu0 0.0
  %2959 = vmatprep.subr.mxu0 0.0
  %2960 = vmatpush2.msra.mxu0 0.0
  %2961 = vmatprep.subr.mxu0 0.0
  %2962 = vmatpush2.msra.mxu0 0.0
  %2963 = vmatprep.subr.mxu0 0.0
  %2964 = vmatpush2.msra.mxu0 0.0
  %2965 = vmatprep.subr.mxu0 0.0
  %2966 = vmatpush2.msra.mxu0 0.0
  %2967 = vmatprep.subr.mxu0 0.0
  %2968 = vmatpush2.msra.mxu0 0.0
  %2969 = vmatprep.subr.mxu0 0.0
  %2970 = vmatpush2.msra.mxu0 0.0
  %2971 = vmatprep.subr.mxu0 0.0
  %2972 = vmatpush2.msra.mxu0 0.0
  %2973 = vmatprep.subr.mxu0 0.0
  %2974 = vmatpush2.msra.mxu0 0.0
  %2975 = vmatprep.subr.mxu0 0.0
  %2976 = vmatpush2.msra.mxu0 0.0
  %2977 = vmatprep.subr.mxu0 0.0
  %2978 = vmatpush2.msra.mxu0 0.0
  %2979 = vmatprep.subr.mxu0 0.0
  %2980 = vmatpush2.msra.mxu0 0.0
  %2981 = vmatprep.mubr.f32.mxu0 0.0
  %2982 = vmatmul.mubr.f32.gmra.mxu0 %v2915
  %v2983 = vpop.f32.mrf.mxu0
  %v2984 = vadd.f32 %v2909, %v2983
  %v2985 = vpop.f32.mrf.mxu0
  %2986 = vdwg.mxu0
  %v2987 = vadd.f32 %v2984, %v55
  %v2988 = vxor.u32 %v2987, 2147483648
  %v2989 = vmul.f32 %v2988, 1.442695
  %v2990 = vpow.pop %v2989
  %v2991 = vadd.f32 %v2990, 1.0
  %v2992 = vrcp.pop %v2991
  %v2993 = vmul.f32 1.0, %v2992
  %2995 = vrot.lane.b32.xlu0 %v2987, 32
  %v2996 = vpop.permute.xlu0 %2995
  %v2998 = vmul.f32 %v2993, %v2996
  %3000 = vrot.lane.b32.xlu0 %v2998, 64
  %v3001 = vpop.permute.xlu0 %3000
  %v3003 = vadd.f32 %v2987, %v3001
  %v3004 = vtanh.pop %v3003
  %v3005 = vsub.f32 1.0, %v2993
  %3007 = vrot.lane.b32.xlu0 %v3004, 96
  %v3008 = vpop.permute.xlu0 %3007
  %v3010 = vmul.f32 %v3005, %v3008
  %v3011 = vmul.f32 %v2993, %v2559
  %v3012 = vadd.f32 %v3010, %v3011
  %3014 = vrot.lane.b32.xlu0 %v3012, 96
  %v3015 = vpop.permute.xlu0 %3014
  %3017 = vst.msk [vmem:[#allocation2 + $0x8] sm:$0x3] %vm1156, %v3015
  %3019 = vrot.lane.b32.xlu0 %v536, 28
  %v3020 = vpop.permute.xlu0 %3019
  %v3022 = vmul.f32 %v2660, %v3020
  %v3023 = vmul.f32 %v2836, %v3020
  %v3024 = vmul.f32 %v3012, %v3020
  %3026 = vrot.lane.b32.xlu0 %v3022, 96
  %v3027 = vpop.permute.xlu0 %3026
  %v3028 = vsel %vm695, %v3027, 0
  %3030 = vmatprep.subr.mxu0 0.0
  %3031 = vmatpush1.msra.mxu0 0.0
  %3032 = vmatprep.subr.mxu0 0.0
  %3033 = vmatpush1.msra.mxu0 0.0
  %3034 = vmatprep.subr.mxu0 0.0
  %3035 = vmatpush1.msra.mxu0 0.0
  %3036 = vmatprep.subr.mxu0 0.0
  %3037 = vmatpush1.msra.mxu0 0.0
  %3038 = vmatprep.subr.mxu0 0.0
  %3039 = vmatpush1.msra.mxu0 0.0
  %3040 = vmatprep.subr.mxu0 0.0
  %3041 = vmatpush1.msra.mxu0 0.0
  %3042 = vmatprep.subr.mxu0 0.0
  %3043 = vmatpush1.msra.mxu0 0.0
  %3044 = vmatprep.subr.mxu0 0.0
  %3045 = vmatpush1.msra.mxu0 0.0
  %3046 = vmatprep.subr.mxu0 0.0
  %3047 = vmatpush1.msra.mxu0 0.0
  %3048 = vmatprep.subr.mxu0 0.0
  %3049 = vmatpush1.msra.mxu0 0.0
  %3050 = vmatprep.subr.mxu0 0.0
  %3051 = vmatpush1.msra.mxu0 0.0
  %3052 = vmatprep.subr.mxu0 0.0
  %3053 = vmatpush1.msra.mxu0 0.0
  %3054 = vmatprep.subr.mxu0 0.0
  %3055 = vmatpush1.msra.mxu0 %v24
  %3056 = vmatprep.subr.mxu0 0.0
  %3057 = vmatpush1.msra.mxu0 %v23
  %3058 = vmatprep.subr.mxu0 0.0
  %3059 = vmatpush1.msra.mxu0 %v22
  %3060 = vmatprep.subr.mxu0 0.0
  %3061 = vmatpush1.msra.mxu0 %v21
  %3062 = vmatprep.subr.mxu0 0.0
  %3063 = vmatpush2.msra.mxu0 0.0
  %3064 = vmatprep.subr.mxu0 0.0
  %3065 = vmatpush2.msra.mxu0 0.0
  %3066 = vmatprep.subr.mxu0 0.0
  %3067 = vmatpush2.msra.mxu0 0.0
  %3068 = vmatprep.subr.mxu0 0.0
  %3069 = vmatpush2.msra.mxu0 0.0
  %3070 = vmatprep.subr.mxu0 0.0
  %3071 = vmatpush2.msra.mxu0 0.0
  %3072 = vmatprep.subr.mxu0 0.0
  %3073 = vmatpush2.msra.mxu0 0.0
  %3074 = vmatprep.subr.mxu0 0.0
  %3075 = vmatpush2.msra.mxu0 0.0
  %3076 = vmatprep.subr.mxu0 0.0
  %3077 = vmatpush2.msra.mxu0 0.0
  %3078 = vmatprep.subr.mxu0 0.0
  %3079 = vmatpush2.msra.mxu0 0.0
  %3080 = vmatprep.subr.mxu0 0.0
  %3081 = vmatpush2.msra.mxu0 0.0
  %3082 = vmatprep.subr.mxu0 0.0
  %3083 = vmatpush2.msra.mxu0 0.0
  %3084 = vmatprep.subr.mxu0 0.0
  %3085 = vmatpush2.msra.mxu0 0.0
  %3086 = vmatprep.subr.mxu0 0.0
  %3087 = vmatpush2.msra.mxu0 0.0
  %3088 = vmatprep.subr.mxu0 0.0
  %3089 = vmatpush2.msra.mxu0 0.0
  %3090 = vmatprep.subr.mxu0 0.0
  %3091 = vmatpush2.msra.mxu0 0.0
  %3092 = vmatprep.subr.mxu0 0.0
  %3093 = vmatpush2.msra.mxu0 0.0
  %3094 = vmatprep.mubr.f32.mxu0 0.0
  %3095 = vmatmul.mubr.f32.gmra.mxu0 %v3028
  %v3096 = vpop.f32.mrf.mxu0
  %v3097 = vadd.f32 %v51, %v3096
  %v3098 = vpop.f32.mrf.mxu0
  %3099 = vdwg.mxu0
  %v3100 = vadd.f32 %v530, %v3097
  %v3101 = vxor.u32 %v3100, 2147483648
  %v3102 = vmul.f32 %v3101, 1.442695
  %v3103 = vpow.pop %v3102
  %v3104 = vadd.f32 %v3103, 1.0
  %v3105 = vrcp.pop %v3104
  %v3106 = vmul.f32 1.0, %v3105
  %3108 = vrot.lane.b32.xlu0 %v3097, 64
  %v3109 = vpop.permute.xlu0 %3108
  %v3111 = vmul.f32 %v3106, %v3109
  %3113 = vrot.lane.b32.xlu0 %v3111, 64
  %v3114 = vpop.permute.xlu0 %3113
  %v3116 = vadd.f32 %v530, %v3114
  %v3117 = vtanh.pop %v3116
  %v3118 = vsub.f32 1.0, %v3106
  %3120 = vrot.lane.b32.xlu0 %v3117, 96
  %v3121 = vpop.permute.xlu0 %3120
  %v3123 = vmul.f32 %v3118, %v3121
  %v3124 = vmul.f32 %v3106, %v3022
  %v3125 = vadd.f32 %v3123, %v3124
  %3127 = vrot.lane.b32.xlu0 %v3023, 96
  %v3128 = vpop.permute.xlu0 %3127
  %v3129 = vsel %vm695, %v3128, 0
  %3131 = vmatprep.subr.mxu0 0.0
  %3132 = vmatpush1.msra.mxu0 0.0
  %3133 = vmatprep.subr.mxu0 0.0
  %3134 = vmatpush1.msra.mxu0 0.0
  %3135 = vmatprep.subr.mxu0 0.0
  %3136 = vmatpush1.msra.mxu0 0.0
  %3137 = vmatprep.subr.mxu0 0.0
  %3138 = vmatpush1.msra.mxu0 0.0
  %3139 = vmatprep.subr.mxu0 0.0
  %3140 = vmatpush1.msra.mxu0 0.0
  %3141 = vmatprep.subr.mxu0 0.0
  %3142 = vmatpush1.msra.mxu0 0.0
  %3143 = vmatprep.subr.mxu0 0.0
  %3144 = vmatpush1.msra.mxu0 0.0
  %3145 = vmatprep.subr.mxu0 0.0
  %3146 = vmatpush1.msra.mxu0 0.0
  %3147 = vmatprep.subr.mxu0 0.0
  %3148 = vmatpush1.msra.mxu0 0.0
  %3149 = vmatprep.subr.mxu0 0.0
  %3150 = vmatpush1.msra.mxu0 0.0
  %3151 = vmatprep.subr.mxu0 0.0
  %3152 = vmatpush1.msra.mxu0 0.0
  %3153 = vmatprep.subr.mxu0 0.0
  %3154 = vmatpush1.msra.mxu0 0.0
  %3155 = vmatprep.subr.mxu0 0.0
  %3156 = vmatpush1.msra.mxu0 %v33
  %3157 = vmatprep.subr.mxu0 0.0
  %3158 = vmatpush1.msra.mxu0 %v32
  %3159 = vmatprep.subr.mxu0 0.0
  %3160 = vmatpush1.msra.mxu0 %v31
  %3161 = vmatprep.subr.mxu0 0.0
  %3162 = vmatpush1.msra.mxu0 %v30
  %3163 = vmatprep.subr.mxu0 0.0
  %3164 = vmatpush2.msra.mxu0 0.0
  %3165 = vmatprep.subr.mxu0 0.0
  %3166 = vmatpush2.msra.mxu0 0.0
  %3167 = vmatprep.subr.mxu0 0.0
  %3168 = vmatpush2.msra.mxu0 0.0
  %3169 = vmatprep.subr.mxu0 0.0
  %3170 = vmatpush2.msra.mxu0 0.0
  %3171 = vmatprep.subr.mxu0 0.0
  %3172 = vmatpush2.msra.mxu0 0.0
  %3173 = vmatprep.subr.mxu0 0.0
  %3174 = vmatpush2.msra.mxu0 0.0
  %3175 = vmatprep.subr.mxu0 0.0
  %3176 = vmatpush2.msra.mxu0 0.0
  %3177 = vmatprep.subr.mxu0 0.0
  %3178 = vmatpush2.msra.mxu0 0.0
  %3179 = vmatprep.subr.mxu0 0.0
  %3180 = vmatpush2.msra.mxu0 0.0
  %3181 = vmatprep.subr.mxu0 0.0
  %3182 = vmatpush2.msra.mxu0 0.0
  %3183 = vmatprep.subr.mxu0 0.0
  %3184 = vmatpush2.msra.mxu0 0.0
  %3185 = vmatprep.subr.mxu0 0.0
  %3186 = vmatpush2.msra.mxu0 0.0
  %3187 = vmatprep.subr.mxu0 0.0
  %3188 = vmatpush2.msra.mxu0 0.0
  %3189 = vmatprep.subr.mxu0 0.0
  %3190 = vmatpush2.msra.mxu0 0.0
  %3191 = vmatprep.subr.mxu0 0.0
  %3192 = vmatpush2.msra.mxu0 0.0
  %3193 = vmatprep.subr.mxu0 0.0
  %3194 = vmatpush2.msra.mxu0 0.0
  %3195 = vmatprep.mubr.f32.mxu0 0.0
  %3196 = vmatmul.mubr.f32.gmra.mxu0 %v3129
  %v3197 = vpop.f32.mrf.mxu0
  %v3198 = vadd.f32 0.0, %v3197
  %v3199 = vpop.f32.mrf.mxu0
  %3200 = vdwg.mxu0
  %3202 = vrot.lane.b32.xlu0 %v3125, 96
  %v3203 = vpop.permute.xlu0 %3202
  %v3204 = vsel %vm695, %v3203, 0
  %3206 = vmatprep.subr.mxu0 0.0
  %3207 = vmatpush1.msra.mxu0 0.0
  %3208 = vmatprep.subr.mxu0 0.0
  %3209 = vmatpush1.msra.mxu0 0.0
  %3210 = vmatprep.subr.mxu0 0.0
  %3211 = vmatpush1.msra.mxu0 0.0
  %3212 = vmatprep.subr.mxu0 0.0
  %3213 = vmatpush1.msra.mxu0 0.0
  %3214 = vmatprep.subr.mxu0 0.0
  %3215 = vmatpush1.msra.mxu0 0.0
  %3216 = vmatprep.subr.mxu0 0.0
  %3217 = vmatpush1.msra.mxu0 0.0
  %3218 = vmatprep.subr.mxu0 0.0
  %3219 = vmatpush1.msra.mxu0 0.0
  %3220 = vmatprep.subr.mxu0 0.0
  %3221 = vmatpush1.msra.mxu0 0.0
  %3222 = vmatprep.subr.mxu0 0.0
  %3223 = vmatpush1.msra.mxu0 0.0
  %3224 = vmatprep.subr.mxu0 0.0
  %3225 = vmatpush1.msra.mxu0 0.0
  %3226 = vmatprep.subr.mxu0 0.0
  %3227 = vmatpush1.msra.mxu0 0.0
  %3228 = vmatprep.subr.mxu0 0.0
  %3229 = vmatpush1.msra.mxu0 0.0
  %3230 = vmatprep.subr.mxu0 0.0
  %3231 = vmatpush1.msra.mxu0 %v28
  %3232 = vmatprep.subr.mxu0 0.0
  %3233 = vmatpush1.msra.mxu0 %v27
  %3234 = vmatprep.subr.mxu0 0.0
  %3235 = vmatpush1.msra.mxu0 %v26
  %3236 = vmatprep.subr.mxu0 0.0
  %3237 = vmatpush1.msra.mxu0 %v25
  %3238 = vmatprep.subr.mxu0 0.0
  %3239 = vmatpush2.msra.mxu0 0.0
  %3240 = vmatprep.subr.mxu0 0.0
  %3241 = vmatpush2.msra.mxu0 0.0
  %3242 = vmatprep.subr.mxu0 0.0
  %3243 = vmatpush2.msra.mxu0 0.0
  %3244 = vmatprep.subr.mxu0 0.0
  %3245 = vmatpush2.msra.mxu0 0.0
  %3246 = vmatprep.subr.mxu0 0.0
  %3247 = vmatpush2.msra.mxu0 0.0
  %3248 = vmatprep.subr.mxu0 0.0
  %3249 = vmatpush2.msra.mxu0 0.0
  %3250 = vmatprep.subr.mxu0 0.0
  %3251 = vmatpush2.msra.mxu0 0.0
  %3252 = vmatprep.subr.mxu0 0.0
  %3253 = vmatpush2.msra.mxu0 0.0
  %3254 = vmatprep.subr.mxu0 0.0
  %3255 = vmatpush2.msra.mxu0 0.0
  %3256 = vmatprep.subr.mxu0 0.0
  %3257 = vmatpush2.msra.mxu0 0.0
  %3258 = vmatprep.subr.mxu0 0.0
  %3259 = vmatpush2.msra.mxu0 0.0
  %3260 = vmatprep.subr.mxu0 0.0
  %3261 = vmatpush2.msra.mxu0 0.0
  %3262 = vmatprep.subr.mxu0 0.0
  %3263 = vmatpush2.msra.mxu0 0.0
  %3264 = vmatprep.subr.mxu0 0.0
  %3265 = vmatpush2.msra.mxu0 0.0
  %3266 = vmatprep.subr.mxu0 0.0
  %3267 = vmatpush2.msra.mxu0 0.0
  %3268 = vmatprep.subr.mxu0 0.0
  %3269 = vmatpush2.msra.mxu0 0.0
  %3270 = vmatprep.mubr.f32.mxu0 0.0
  %3271 = vmatmul.mubr.f32.gmra.mxu0 %v3204
  %v3272 = vpop.f32.mrf.mxu0
  %v3273 = vadd.f32 %v3198, %v3272
  %v3274 = vpop.f32.mrf.mxu0
  %3275 = vdwg.mxu0
  %v3276 = vadd.f32 %v3273, %v53
  %v3277 = vxor.u32 %v3276, 2147483648
  %v3278 = vmul.f32 %v3277, 1.442695
  %v3279 = vpow.pop %v3278
  %v3280 = vadd.f32 %v3279, 1.0
  %v3281 = vrcp.pop %v3280
  %v3282 = vmul.f32 1.0, %v3281
  %3284 = vrot.lane.b32.xlu0 %v3276, 32
  %v3285 = vpop.permute.xlu0 %3284
  %v3287 = vmul.f32 %v3282, %v3285
  %3289 = vrot.lane.b32.xlu0 %v3287, 64
  %v3290 = vpop.permute.xlu0 %3289
  %v3292 = vadd.f32 %v3276, %v3290
  %v3293 = vtanh.pop %v3292
  %v3294 = vsub.f32 1.0, %v3282
  %3296 = vrot.lane.b32.xlu0 %v3293, 96
  %v3297 = vpop.permute.xlu0 %3296
  %v3299 = vmul.f32 %v3294, %v3297
  %v3300 = vmul.f32 %v3282, %v3023
  %v3301 = vadd.f32 %v3299, %v3300
  %3303 = vrot.lane.b32.xlu0 %v3024, 96
  %v3304 = vpop.permute.xlu0 %3303
  %v3305 = vsel %vm695, %v3304, 0
  %3307 = vmatprep.subr.mxu0 0.0
  %3308 = vmatpush1.msra.mxu0 0.0
  %3309 = vmatprep.subr.mxu0 0.0
  %3310 = vmatpush1.msra.mxu0 0.0
  %3311 = vmatprep.subr.mxu0 0.0
  %3312 = vmatpush1.msra.mxu0 0.0
  %3313 = vmatprep.subr.mxu0 0.0
  %3314 = vmatpush1.msra.mxu0 0.0
  %3315 = vmatprep.subr.mxu0 0.0
  %3316 = vmatpush1.msra.mxu0 0.0
  %3317 = vmatprep.subr.mxu0 0.0
  %3318 = vmatpush1.msra.mxu0 0.0
  %3319 = vmatprep.subr.mxu0 0.0
  %3320 = vmatpush1.msra.mxu0 0.0
  %3321 = vmatprep.subr.mxu0 0.0
  %3322 = vmatpush1.msra.mxu0 0.0
  %3323 = vmatprep.subr.mxu0 0.0
  %3324 = vmatpush1.msra.mxu0 0.0
  %3325 = vmatprep.subr.mxu0 0.0
  %3326 = vmatpush1.msra.mxu0 0.0
  %3327 = vmatprep.subr.mxu0 0.0
  %3328 = vmatpush1.msra.mxu0 0.0
  %3329 = vmatprep.subr.mxu0 0.0
  %3330 = vmatpush1.msra.mxu0 0.0
  %3331 = vmatprep.subr.mxu0 0.0
  %3332 = vmatpush1.msra.mxu0 %v43
  %3333 = vmatprep.subr.mxu0 0.0
  %3334 = vmatpush1.msra.mxu0 %v42
  %3335 = vmatprep.subr.mxu0 0.0
  %3336 = vmatpush1.msra.mxu0 %v41
  %3337 = vmatprep.subr.mxu0 0.0
  %3338 = vmatpush1.msra.mxu0 %v40
  %3339 = vmatprep.subr.mxu0 0.0
  %3340 = vmatpush2.msra.mxu0 0.0
  %3341 = vmatprep.subr.mxu0 0.0
  %3342 = vmatpush2.msra.mxu0 0.0
  %3343 = vmatprep.subr.mxu0 0.0
  %3344 = vmatpush2.msra.mxu0 0.0
  %3345 = vmatprep.subr.mxu0 0.0
  %3346 = vmatpush2.msra.mxu0 0.0
  %3347 = vmatprep.subr.mxu0 0.0
  %3348 = vmatpush2.msra.mxu0 0.0
  %3349 = vmatprep.subr.mxu0 0.0
  %3350 = vmatpush2.msra.mxu0 0.0
  %3351 = vmatprep.subr.mxu0 0.0
  %3352 = vmatpush2.msra.mxu0 0.0
  %3353 = vmatprep.subr.mxu0 0.0
  %3354 = vmatpush2.msra.mxu0 0.0
  %3355 = vmatprep.subr.mxu0 0.0
  %3356 = vmatpush2.msra.mxu0 0.0
  %3357 = vmatprep.subr.mxu0 0.0
  %3358 = vmatpush2.msra.mxu0 0.0
  %3359 = vmatprep.subr.mxu0 0.0
  %3360 = vmatpush2.msra.mxu0 0.0
  %3361 = vmatprep.subr.mxu0 0.0
  %3362 = vmatpush2.msra.mxu0 0.0
  %3363 = vmatprep.subr.mxu0 0.0
  %3364 = vmatpush2.msra.mxu0 0.0
  %3365 = vmatprep.subr.mxu0 0.0
  %3366 = vmatpush2.msra.mxu0 0.0
  %3367 = vmatprep.subr.mxu0 0.0
  %3368 = vmatpush2.msra.mxu0 0.0
  %3369 = vmatprep.subr.mxu0 0.0
  %3370 = vmatpush2.msra.mxu0 0.0
  %3371 = vmatprep.mubr.f32.mxu0 0.0
  %3372 = vmatmul.mubr.f32.gmra.mxu0 %v3305
  %v3373 = vpop.f32.mrf.mxu0
  %v3374 = vadd.f32 0.0, %v3373
  %v3375 = vpop.f32.mrf.mxu0
  %3376 = vdwg.mxu0
  %3378 = vrot.lane.b32.xlu0 %v3301, 96
  %v3379 = vpop.permute.xlu0 %3378
  %v3380 = vsel %vm695, %v3379, 0
  %3382 = vmatprep.subr.mxu0 0.0
  %3383 = vmatpush1.msra.mxu0 0.0
  %3384 = vmatprep.subr.mxu0 0.0
  %3385 = vmatpush1.msra.mxu0 0.0
  %3386 = vmatprep.subr.mxu0 0.0
  %3387 = vmatpush1.msra.mxu0 0.0
  %3388 = vmatprep.subr.mxu0 0.0
  %3389 = vmatpush1.msra.mxu0 0.0
  %3390 = vmatprep.subr.mxu0 0.0
  %3391 = vmatpush1.msra.mxu0 0.0
  %3392 = vmatprep.subr.mxu0 0.0
  %3393 = vmatpush1.msra.mxu0 0.0
  %3394 = vmatprep.subr.mxu0 0.0
  %3395 = vmatpush1.msra.mxu0 0.0
  %3396 = vmatprep.subr.mxu0 0.0
  %3397 = vmatpush1.msra.mxu0 0.0
  %3398 = vmatprep.subr.mxu0 0.0
  %3399 = vmatpush1.msra.mxu0 0.0
  %3400 = vmatprep.subr.mxu0 0.0
  %3401 = vmatpush1.msra.mxu0 0.0
  %3402 = vmatprep.subr.mxu0 0.0
  %3403 = vmatpush1.msra.mxu0 0.0
  %3404 = vmatprep.subr.mxu0 0.0
  %3405 = vmatpush1.msra.mxu0 0.0
  %3406 = vmatprep.subr.mxu0 0.0
  %3407 = vmatpush1.msra.mxu0 %v38
  %3408 = vmatprep.subr.mxu0 0.0
  %3409 = vmatpush1.msra.mxu0 %v37
  %3410 = vmatprep.subr.mxu0 0.0
  %3411 = vmatpush1.msra.mxu0 %v36
  %3412 = vmatprep.subr.mxu0 0.0
  %3413 = vmatpush1.msra.mxu0 %v35
  %3414 = vmatprep.subr.mxu0 0.0
  %3415 = vmatpush2.msra.mxu0 0.0
  %3416 = vmatprep.subr.mxu0 0.0
  %3417 = vmatpush2.msra.mxu0 0.0
  %3418 = vmatprep.subr.mxu0 0.0
  %3419 = vmatpush2.msra.mxu0 0.0
  %3420 = vmatprep.subr.mxu0 0.0
  %3421 = vmatpush2.msra.mxu0 0.0
  %3422 = vmatprep.subr.mxu0 0.0
  %3423 = vmatpush2.msra.mxu0 0.0
  %3424 = vmatprep.subr.mxu0 0.0
  %3425 = vmatpush2.msra.mxu0 0.0
  %3426 = vmatprep.subr.mxu0 0.0
  %3427 = vmatpush2.msra.mxu0 0.0
  %3428 = vmatprep.subr.mxu0 0.0
  %3429 = vmatpush2.msra.mxu0 0.0
  %3430 = vmatprep.subr.mxu0 0.0
  %3431 = vmatpush2.msra.mxu0 0.0
  %3432 = vmatprep.subr.mxu0 0.0
  %3433 = vmatpush2.msra.mxu0 0.0
  %3434 = vmatprep.subr.mxu0 0.0
  %3435 = vmatpush2.msra.mxu0 0.0
  %3436 = vmatprep.subr.mxu0 0.0
  %3437 = vmatpush2.msra.mxu0 0.0
  %3438 = vmatprep.subr.mxu0 0.0
  %3439 = vmatpush2.msra.mxu0 0.0
  %3440 = vmatprep.subr.mxu0 0.0
  %3441 = vmatpush2.msra.mxu0 0.0
  %3442 = vmatprep.subr.mxu0 0.0
  %3443 = vmatpush2.msra.mxu0 0.0
  %3444 = vmatprep.subr.mxu0 0.0
  %3445 = vmatpush2.msra.mxu0 0.0
  %3446 = vmatprep.mubr.f32.mxu0 0.0
  %3447 = vmatmul.mubr.f32.gmra.mxu0 %v3380
  %v3448 = vpop.f32.mrf.mxu0
  %v3449 = vadd.f32 %v3374, %v3448
  %v3450 = vpop.f32.mrf.mxu0
  %3451 = vdwg.mxu0
  %v3452 = vadd.f32 %v3449, %v55
  %v3453 = vxor.u32 %v3452, 2147483648
  %v3454 = vmul.f32 %v3453, 1.442695
  %v3455 = vpow.pop %v3454
  %v3456 = vadd.f32 %v3455, 1.0
  %v3457 = vrcp.pop %v3456
  %v3458 = vmul.f32 1.0, %v3457
  %3460 = vrot.lane.b32.xlu0 %v3452, 32
  %v3461 = vpop.permute.xlu0 %3460
  %v3463 = vmul.f32 %v3458, %v3461
  %3465 = vrot.lane.b32.xlu0 %v3463, 64
  %v3466 = vpop.permute.xlu0 %3465
  %v3468 = vadd.f32 %v3452, %v3466
  %v3469 = vtanh.pop %v3468
  %v3470 = vsub.f32 1.0, %v3458
  %3472 = vrot.lane.b32.xlu0 %v3469, 96
  %v3473 = vpop.permute.xlu0 %3472
  %v3475 = vmul.f32 %v3470, %v3473
  %v3476 = vmul.f32 %v3458, %v3024
  %v3477 = vadd.f32 %v3475, %v3476
  %3479 = vrot.lane.b32.xlu0 %v3477, 96
  %v3480 = vpop.permute.xlu0 %3479
  %3482 = vst.msk [vmem:[#allocation2 + $0xa] sm:$0x3] %vm1156, %v3480
  %3484 = vrot.lane.b32.xlu0 %v615, 28
  %v3485 = vpop.permute.xlu0 %3484
  %v3487 = vmul.f32 %v3125, %v3485
  %v3488 = vmul.f32 %v3301, %v3485
  %v3489 = vmul.f32 %v3477, %v3485
  %3491 = vrot.lane.b32.xlu0 %v3487, 96
  %v3492 = vpop.permute.xlu0 %3491
  %v3493 = vsel %vm695, %v3492, 0
  %3495 = vmatprep.subr.mxu0 0.0
  %3496 = vmatpush1.msra.mxu0 0.0
  %3497 = vmatprep.subr.mxu0 0.0
  %3498 = vmatpush1.msra.mxu0 0.0
  %3499 = vmatprep.subr.mxu0 0.0
  %3500 = vmatpush1.msra.mxu0 0.0
  %3501 = vmatprep.subr.mxu0 0.0
  %3502 = vmatpush1.msra.mxu0 0.0
  %3503 = vmatprep.subr.mxu0 0.0
  %3504 = vmatpush1.msra.mxu0 0.0
  %3505 = vmatprep.subr.mxu0 0.0
  %3506 = vmatpush1.msra.mxu0 0.0
  %3507 = vmatprep.subr.mxu0 0.0
  %3508 = vmatpush1.msra.mxu0 0.0
  %3509 = vmatprep.subr.mxu0 0.0
  %3510 = vmatpush1.msra.mxu0 0.0
  %3511 = vmatprep.subr.mxu0 0.0
  %3512 = vmatpush1.msra.mxu0 0.0
  %3513 = vmatprep.subr.mxu0 0.0
  %3514 = vmatpush1.msra.mxu0 0.0
  %3515 = vmatprep.subr.mxu0 0.0
  %3516 = vmatpush1.msra.mxu0 0.0
  %3517 = vmatprep.subr.mxu0 0.0
  %3518 = vmatpush1.msra.mxu0 0.0
  %3519 = vmatprep.subr.mxu0 0.0
  %3520 = vmatpush1.msra.mxu0 %v24
  %3521 = vmatprep.subr.mxu0 0.0
  %3522 = vmatpush1.msra.mxu0 %v23
  %3523 = vmatprep.subr.mxu0 0.0
  %3524 = vmatpush1.msra.mxu0 %v22
  %3525 = vmatprep.subr.mxu0 0.0
  %3526 = vmatpush1.msra.mxu0 %v21
  %3527 = vmatprep.subr.mxu0 0.0
  %3528 = vmatpush2.msra.mxu0 0.0
  %3529 = vmatprep.subr.mxu0 0.0
  %3530 = vmatpush2.msra.mxu0 0.0
  %3531 = vmatprep.subr.mxu0 0.0
  %3532 = vmatpush2.msra.mxu0 0.0
  %3533 = vmatprep.subr.mxu0 0.0
  %3534 = vmatpush2.msra.mxu0 0.0
  %3535 = vmatprep.subr.mxu0 0.0
  %3536 = vmatpush2.msra.mxu0 0.0
  %3537 = vmatprep.subr.mxu0 0.0
  %3538 = vmatpush2.msra.mxu0 0.0
  %3539 = vmatprep.subr.mxu0 0.0
  %3540 = vmatpush2.msra.mxu0 0.0
  %3541 = vmatprep.subr.mxu0 0.0
  %3542 = vmatpush2.msra.mxu0 0.0
  %3543 = vmatprep.subr.mxu0 0.0
  %3544 = vmatpush2.msra.mxu0 0.0
  %3545 = vmatprep.subr.mxu0 0.0
  %3546 = vmatpush2.msra.mxu0 0.0
  %3547 = vmatprep.subr.mxu0 0.0
  %3548 = vmatpush2.msra.mxu0 0.0
  %3549 = vmatprep.subr.mxu0 0.0
  %3550 = vmatpush2.msra.mxu0 0.0
  %3551 = vmatprep.subr.mxu0 0.0
  %3552 = vmatpush2.msra.mxu0 0.0
  %3553 = vmatprep.subr.mxu0 0.0
  %3554 = vmatpush2.msra.mxu0 0.0
  %3555 = vmatprep.subr.mxu0 0.0
  %3556 = vmatpush2.msra.mxu0 0.0
  %3557 = vmatprep.subr.mxu0 0.0
  %3558 = vmatpush2.msra.mxu0 0.0
  %3559 = vmatprep.mubr.f32.mxu0 0.0
  %3560 = vmatmul.mubr.f32.gmra.mxu0 %v3493
  %v3561 = vpop.f32.mrf.mxu0
  %v3562 = vadd.f32 %v51, %v3561
  %v3563 = vpop.f32.mrf.mxu0
  %3564 = vdwg.mxu0
  %v3565 = vadd.f32 %v609, %v3562
  %v3566 = vxor.u32 %v3565, 2147483648
  %v3567 = vmul.f32 %v3566, 1.442695
  %v3568 = vpow.pop %v3567
  %v3569 = vadd.f32 %v3568, 1.0
  %v3570 = vrcp.pop %v3569
  %v3571 = vmul.f32 1.0, %v3570
  %3573 = vrot.lane.b32.xlu0 %v3562, 64
  %v3574 = vpop.permute.xlu0 %3573
  %v3576 = vmul.f32 %v3571, %v3574
  %3578 = vrot.lane.b32.xlu0 %v3576, 64
  %v3579 = vpop.permute.xlu0 %3578
  %v3581 = vadd.f32 %v609, %v3579
  %v3582 = vtanh.pop %v3581
  %v3583 = vsub.f32 1.0, %v3571
  %3585 = vrot.lane.b32.xlu0 %v3582, 96
  %v3586 = vpop.permute.xlu0 %3585
  %v3588 = vmul.f32 %v3583, %v3586
  %v3589 = vmul.f32 %v3571, %v3487
  %v3590 = vadd.f32 %v3588, %v3589
  %3592 = vrot.lane.b32.xlu0 %v3488, 96
  %v3593 = vpop.permute.xlu0 %3592
  %v3594 = vsel %vm695, %v3593, 0
  %3596 = vmatprep.subr.mxu0 0.0
  %3597 = vmatpush1.msra.mxu0 0.0
  %3598 = vmatprep.subr.mxu0 0.0
  %3599 = vmatpush1.msra.mxu0 0.0
  %3600 = vmatprep.subr.mxu0 0.0
  %3601 = vmatpush1.msra.mxu0 0.0
  %3602 = vmatprep.subr.mxu0 0.0
  %3603 = vmatpush1.msra.mxu0 0.0
  %3604 = vmatprep.subr.mxu0 0.0
  %3605 = vmatpush1.msra.mxu0 0.0
  %3606 = vmatprep.subr.mxu0 0.0
  %3607 = vmatpush1.msra.mxu0 0.0
  %3608 = vmatprep.subr.mxu0 0.0
  %3609 = vmatpush1.msra.mxu0 0.0
  %3610 = vmatprep.subr.mxu0 0.0
  %3611 = vmatpush1.msra.mxu0 0.0
  %3612 = vmatprep.subr.mxu0 0.0
  %3613 = vmatpush1.msra.mxu0 0.0
  %3614 = vmatprep.subr.mxu0 0.0
  %3615 = vmatpush1.msra.mxu0 0.0
  %3616 = vmatprep.subr.mxu0 0.0
  %3617 = vmatpush1.msra.mxu0 0.0
  %3618 = vmatprep.subr.mxu0 0.0
  %3619 = vmatpush1.msra.mxu0 0.0
  %3620 = vmatprep.subr.mxu0 0.0
  %3621 = vmatpush1.msra.mxu0 %v33
  %3622 = vmatprep.subr.mxu0 0.0
  %3623 = vmatpush1.msra.mxu0 %v32
  %3624 = vmatprep.subr.mxu0 0.0
  %3625 = vmatpush1.msra.mxu0 %v31
  %3626 = vmatprep.subr.mxu0 0.0
  %3627 = vmatpush1.msra.mxu0 %v30
  %3628 = vmatprep.subr.mxu0 0.0
  %3629 = vmatpush2.msra.mxu0 0.0
  %3630 = vmatprep.subr.mxu0 0.0
  %3631 = vmatpush2.msra.mxu0 0.0
  %3632 = vmatprep.subr.mxu0 0.0
  %3633 = vmatpush2.msra.mxu0 0.0
  %3634 = vmatprep.subr.mxu0 0.0
  %3635 = vmatpush2.msra.mxu0 0.0
  %3636 = vmatprep.subr.mxu0 0.0
  %3637 = vmatpush2.msra.mxu0 0.0
  %3638 = vmatprep.subr.mxu0 0.0
  %3639 = vmatpush2.msra.mxu0 0.0
  %3640 = vmatprep.subr.mxu0 0.0
  %3641 = vmatpush2.msra.mxu0 0.0
  %3642 = vmatprep.subr.mxu0 0.0
  %3643 = vmatpush2.msra.mxu0 0.0
  %3644 = vmatprep.subr.mxu0 0.0
  %3645 = vmatpush2.msra.mxu0 0.0
  %3646 = vmatprep.subr.mxu0 0.0
  %3647 = vmatpush2.msra.mxu0 0.0
  %3648 = vmatprep.subr.mxu0 0.0
  %3649 = vmatpush2.msra.mxu0 0.0
  %3650 = vmatprep.subr.mxu0 0.0
  %3651 = vmatpush2.msra.mxu0 0.0
  %3652 = vmatprep.subr.mxu0 0.0
  %3653 = vmatpush2.msra.mxu0 0.0
  %3654 = vmatprep.subr.mxu0 0.0
  %3655 = vmatpush2.msra.mxu0 0.0
  %3656 = vmatprep.subr.mxu0 0.0
  %3657 = vmatpush2.msra.mxu0 0.0
  %3658 = vmatprep.subr.mxu0 0.0
  %3659 = vmatpush2.msra.mxu0 0.0
  %3660 = vmatprep.mubr.f32.mxu0 0.0
  %3661 = vmatmul.mubr.f32.gmra.mxu0 %v3594
  %v3662 = vpop.f32.mrf.mxu0
  %v3663 = vadd.f32 0.0, %v3662
  %v3664 = vpop.f32.mrf.mxu0
  %3665 = vdwg.mxu0
  %3667 = vrot.lane.b32.xlu0 %v3590, 96
  %v3668 = vpop.permute.xlu0 %3667
  %v3669 = vsel %vm695, %v3668, 0
  %3671 = vmatprep.subr.mxu0 0.0
  %3672 = vmatpush1.msra.mxu0 0.0
  %3673 = vmatprep.subr.mxu0 0.0
  %3674 = vmatpush1.msra.mxu0 0.0
  %3675 = vmatprep.subr.mxu0 0.0
  %3676 = vmatpush1.msra.mxu0 0.0
  %3677 = vmatprep.subr.mxu0 0.0
  %3678 = vmatpush1.msra.mxu0 0.0
  %3679 = vmatprep.subr.mxu0 0.0
  %3680 = vmatpush1.msra.mxu0 0.0
  %3681 = vmatprep.subr.mxu0 0.0
  %3682 = vmatpush1.msra.mxu0 0.0
  %3683 = vmatprep.subr.mxu0 0.0
  %3684 = vmatpush1.msra.mxu0 0.0
  %3685 = vmatprep.subr.mxu0 0.0
  %3686 = vmatpush1.msra.mxu0 0.0
  %3687 = vmatprep.subr.mxu0 0.0
  %3688 = vmatpush1.msra.mxu0 0.0
  %3689 = vmatprep.subr.mxu0 0.0
  %3690 = vmatpush1.msra.mxu0 0.0
  %3691 = vmatprep.subr.mxu0 0.0
  %3692 = vmatpush1.msra.mxu0 0.0
  %3693 = vmatprep.subr.mxu0 0.0
  %3694 = vmatpush1.msra.mxu0 0.0
  %3695 = vmatprep.subr.mxu0 0.0
  %3696 = vmatpush1.msra.mxu0 %v28
  %3697 = vmatprep.subr.mxu0 0.0
  %3698 = vmatpush1.msra.mxu0 %v27
  %3699 = vmatprep.subr.mxu0 0.0
  %3700 = vmatpush1.msra.mxu0 %v26
  %3701 = vmatprep.subr.mxu0 0.0
  %3702 = vmatpush1.msra.mxu0 %v25
  %3703 = vmatprep.subr.mxu0 0.0
  %3704 = vmatpush2.msra.mxu0 0.0
  %3705 = vmatprep.subr.mxu0 0.0
  %3706 = vmatpush2.msra.mxu0 0.0
  %3707 = vmatprep.subr.mxu0 0.0
  %3708 = vmatpush2.msra.mxu0 0.0
  %3709 = vmatprep.subr.mxu0 0.0
  %3710 = vmatpush2.msra.mxu0 0.0
  %3711 = vmatprep.subr.mxu0 0.0
  %3712 = vmatpush2.msra.mxu0 0.0
  %3713 = vmatprep.subr.mxu0 0.0
  %3714 = vmatpush2.msra.mxu0 0.0
  %3715 = vmatprep.subr.mxu0 0.0
  %3716 = vmatpush2.msra.mxu0 0.0
  %3717 = vmatprep.subr.mxu0 0.0
  %3718 = vmatpush2.msra.mxu0 0.0
  %3719 = vmatprep.subr.mxu0 0.0
  %3720 = vmatpush2.msra.mxu0 0.0
  %3721 = vmatprep.subr.mxu0 0.0
  %3722 = vmatpush2.msra.mxu0 0.0
  %3723 = vmatprep.subr.mxu0 0.0
  %3724 = vmatpush2.msra.mxu0 0.0
  %3725 = vmatprep.subr.mxu0 0.0
  %3726 = vmatpush2.msra.mxu0 0.0
  %3727 = vmatprep.subr.mxu0 0.0
  %3728 = vmatpush2.msra.mxu0 0.0
  %3729 = vmatprep.subr.mxu0 0.0
  %3730 = vmatpush2.msra.mxu0 0.0
  %3731 = vmatprep.subr.mxu0 0.0
  %3732 = vmatpush2.msra.mxu0 0.0
  %3733 = vmatprep.subr.mxu0 0.0
  %3734 = vmatpush2.msra.mxu0 0.0
  %3735 = vmatprep.mubr.f32.mxu0 0.0
  %3736 = vmatmul.mubr.f32.gmra.mxu0 %v3669
  %v3737 = vpop.f32.mrf.mxu0
  %v3738 = vadd.f32 %v3663, %v3737
  %v3739 = vpop.f32.mrf.mxu0
  %3740 = vdwg.mxu0
  %v3741 = vadd.f32 %v3738, %v53
  %v3742 = vxor.u32 %v3741, 2147483648
  %v3743 = vmul.f32 %v3742, 1.442695
  %v3744 = vpow.pop %v3743
  %v3745 = vadd.f32 %v3744, 1.0
  %v3746 = vrcp.pop %v3745
  %v3747 = vmul.f32 1.0, %v3746
  %3749 = vrot.lane.b32.xlu0 %v3741, 32
  %v3750 = vpop.permute.xlu0 %3749
  %v3752 = vmul.f32 %v3747, %v3750
  %3754 = vrot.lane.b32.xlu0 %v3752, 64
  %v3755 = vpop.permute.xlu0 %3754
  %v3757 = vadd.f32 %v3741, %v3755
  %v3758 = vtanh.pop %v3757
  %v3759 = vsub.f32 1.0, %v3747
  %3761 = vrot.lane.b32.xlu0 %v3758, 96
  %v3762 = vpop.permute.xlu0 %3761
  %v3764 = vmul.f32 %v3759, %v3762
  %v3765 = vmul.f32 %v3747, %v3488
  %v3766 = vadd.f32 %v3764, %v3765
  %3768 = vrot.lane.b32.xlu0 %v3489, 96
  %v3769 = vpop.permute.xlu0 %3768
  %v3770 = vsel %vm695, %v3769, 0
  %3772 = vmatprep.subr.mxu0 0.0
  %3773 = vmatpush1.msra.mxu0 0.0
  %3774 = vmatprep.subr.mxu0 0.0
  %3775 = vmatpush1.msra.mxu0 0.0
  %3776 = vmatprep.subr.mxu0 0.0
  %3777 = vmatpush1.msra.mxu0 0.0
  %3778 = vmatprep.subr.mxu0 0.0
  %3779 = vmatpush1.msra.mxu0 0.0
  %3780 = vmatprep.subr.mxu0 0.0
  %3781 = vmatpush1.msra.mxu0 0.0
  %3782 = vmatprep.subr.mxu0 0.0
  %3783 = vmatpush1.msra.mxu0 0.0
  %3784 = vmatprep.subr.mxu0 0.0
  %3785 = vmatpush1.msra.mxu0 0.0
  %3786 = vmatprep.subr.mxu0 0.0
  %3787 = vmatpush1.msra.mxu0 0.0
  %3788 = vmatprep.subr.mxu0 0.0
  %3789 = vmatpush1.msra.mxu0 0.0
  %3790 = vmatprep.subr.mxu0 0.0
  %3791 = vmatpush1.msra.mxu0 0.0
  %3792 = vmatprep.subr.mxu0 0.0
  %3793 = vmatpush1.msra.mxu0 0.0
  %3794 = vmatprep.subr.mxu0 0.0
  %3795 = vmatpush1.msra.mxu0 0.0
  %3796 = vmatprep.subr.mxu0 0.0
  %3797 = vmatpush1.msra.mxu0 %v43
  %3798 = vmatprep.subr.mxu0 0.0
  %3799 = vmatpush1.msra.mxu0 %v42
  %3800 = vmatprep.subr.mxu0 0.0
  %3801 = vmatpush1.msra.mxu0 %v41
  %3802 = vmatprep.subr.mxu0 0.0
  %3803 = vmatpush1.msra.mxu0 %v40
  %3804 = vmatprep.subr.mxu0 0.0
  %3805 = vmatpush2.msra.mxu0 0.0
  %3806 = vmatprep.subr.mxu0 0.0
  %3807 = vmatpush2.msra.mxu0 0.0
  %3808 = vmatprep.subr.mxu0 0.0
  %3809 = vmatpush2.msra.mxu0 0.0
  %3810 = vmatprep.subr.mxu0 0.0
  %3811 = vmatpush2.msra.mxu0 0.0
  %3812 = vmatprep.subr.mxu0 0.0
  %3813 = vmatpush2.msra.mxu0 0.0
  %3814 = vmatprep.subr.mxu0 0.0
  %3815 = vmatpush2.msra.mxu0 0.0
  %3816 = vmatprep.subr.mxu0 0.0
  %3817 = vmatpush2.msra.mxu0 0.0
  %3818 = vmatprep.subr.mxu0 0.0
  %3819 = vmatpush2.msra.mxu0 0.0
  %3820 = vmatprep.subr.mxu0 0.0
  %3821 = vmatpush2.msra.mxu0 0.0
  %3822 = vmatprep.subr.mxu0 0.0
  %3823 = vmatpush2.msra.mxu0 0.0
  %3824 = vmatprep.subr.mxu0 0.0
  %3825 = vmatpush2.msra.mxu0 0.0
  %3826 = vmatprep.subr.mxu0 0.0
  %3827 = vmatpush2.msra.mxu0 0.0
  %3828 = vmatprep.subr.mxu0 0.0
  %3829 = vmatpush2.msra.mxu0 0.0
  %3830 = vmatprep.subr.mxu0 0.0
  %3831 = vmatpush2.msra.mxu0 0.0
  %3832 = vmatprep.subr.mxu0 0.0
  %3833 = vmatpush2.msra.mxu0 0.0
  %3834 = vmatprep.subr.mxu0 0.0
  %3835 = vmatpush2.msra.mxu0 0.0
  %3836 = vmatprep.mubr.f32.mxu0 0.0
  %3837 = vmatmul.mubr.f32.gmra.mxu0 %v3770
  %v3838 = vpop.f32.mrf.mxu0
  %v3839 = vadd.f32 0.0, %v3838
  %v3840 = vpop.f32.mrf.mxu0
  %3841 = vdwg.mxu0
  %3843 = vrot.lane.b32.xlu0 %v3766, 96
  %v3844 = vpop.permute.xlu0 %3843
  %v3845 = vsel %vm695, %v3844, 0
  %3847 = vmatprep.subr.mxu0 0.0
  %3848 = vmatpush1.msra.mxu0 0.0
  %3849 = vmatprep.subr.mxu0 0.0
  %3850 = vmatpush1.msra.mxu0 0.0
  %3851 = vmatprep.subr.mxu0 0.0
  %3852 = vmatpush1.msra.mxu0 0.0
  %3853 = vmatprep.subr.mxu0 0.0
  %3854 = vmatpush1.msra.mxu0 0.0
  %3855 = vmatprep.subr.mxu0 0.0
  %3856 = vmatpush1.msra.mxu0 0.0
  %3857 = vmatprep.subr.mxu0 0.0
  %3858 = vmatpush1.msra.mxu0 0.0
  %3859 = vmatprep.subr.mxu0 0.0
  %3860 = vmatpush1.msra.mxu0 0.0
  %3861 = vmatprep.subr.mxu0 0.0
  %3862 = vmatpush1.msra.mxu0 0.0
  %3863 = vmatprep.subr.mxu0 0.0
  %3864 = vmatpush1.msra.mxu0 0.0
  %3865 = vmatprep.subr.mxu0 0.0
  %3866 = vmatpush1.msra.mxu0 0.0
  %3867 = vmatprep.subr.mxu0 0.0
  %3868 = vmatpush1.msra.mxu0 0.0
  %3869 = vmatprep.subr.mxu0 0.0
  %3870 = vmatpush1.msra.mxu0 0.0
  %3871 = vmatprep.subr.mxu0 0.0
  %3872 = vmatpush1.msra.mxu0 %v38
  %3873 = vmatprep.subr.mxu0 0.0
  %3874 = vmatpush1.msra.mxu0 %v37
  %3875 = vmatprep.subr.mxu0 0.0
  %3876 = vmatpush1.msra.mxu0 %v36
  %3877 = vmatprep.subr.mxu0 0.0
  %3878 = vmatpush1.msra.mxu0 %v35
  %3879 = vmatprep.subr.mxu0 0.0
  %3880 = vmatpush2.msra.mxu0 0.0
  %3881 = vmatprep.subr.mxu0 0.0
  %3882 = vmatpush2.msra.mxu0 0.0
  %3883 = vmatprep.subr.mxu0 0.0
  %3884 = vmatpush2.msra.mxu0 0.0
  %3885 = vmatprep.subr.mxu0 0.0
  %3886 = vmatpush2.msra.mxu0 0.0
  %3887 = vmatprep.subr.mxu0 0.0
  %3888 = vmatpush2.msra.mxu0 0.0
  %3889 = vmatprep.subr.mxu0 0.0
  %3890 = vmatpush2.msra.mxu0 0.0
  %3891 = vmatprep.subr.mxu0 0.0
  %3892 = vmatpush2.msra.mxu0 0.0
  %3893 = vmatprep.subr.mxu0 0.0
  %3894 = vmatpush2.msra.mxu0 0.0
  %3895 = vmatprep.subr.mxu0 0.0
  %3896 = vmatpush2.msra.mxu0 0.0
  %3897 = vmatprep.subr.mxu0 0.0
  %3898 = vmatpush2.msra.mxu0 0.0
  %3899 = vmatprep.subr.mxu0 0.0
  %3900 = vmatpush2.msra.mxu0 0.0
  %3901 = vmatprep.subr.mxu0 0.0
  %3902 = vmatpush2.msra.mxu0 0.0
  %3903 = vmatprep.subr.mxu0 0.0
  %3904 = vmatpush2.msra.mxu0 0.0
  %3905 = vmatprep.subr.mxu0 0.0
  %3906 = vmatpush2.msra.mxu0 0.0
  %3907 = vmatprep.subr.mxu0 0.0
  %3908 = vmatpush2.msra.mxu0 0.0
  %3909 = vmatprep.subr.mxu0 0.0
  %3910 = vmatpush2.msra.mxu0 0.0
  %3911 = vmatprep.mubr.f32.mxu0 0.0
  %3912 = vmatmul.mubr.f32.gmra.mxu0 %v3845
  %v3913 = vpop.f32.mrf.mxu0
  %v3914 = vadd.f32 %v3839, %v3913
  %v3915 = vpop.f32.mrf.mxu0
  %3916 = vdwg.mxu0
  %v3917 = vadd.f32 %v3914, %v55
  %v3918 = vxor.u32 %v3917, 2147483648
  %v3919 = vmul.f32 %v3918, 1.442695
  %v3920 = vpow.pop %v3919
  %v3921 = vadd.f32 %v3920, 1.0
  %v3922 = vrcp.pop %v3921
  %v3923 = vmul.f32 1.0, %v3922
  %3925 = vrot.lane.b32.xlu0 %v3917, 32
  %v3926 = vpop.permute.xlu0 %3925
  %v3928 = vmul.f32 %v3923, %v3926
  %3930 = vrot.lane.b32.xlu0 %v3928, 64
  %v3931 = vpop.permute.xlu0 %3930
  %v3933 = vadd.f32 %v3917, %v3931
  %v3934 = vtanh.pop %v3933
  %v3935 = vsub.f32 1.0, %v3923
  %3937 = vrot.lane.b32.xlu0 %v3934, 96
  %v3938 = vpop.permute.xlu0 %3937
  %v3940 = vmul.f32 %v3935, %v3938
  %v3941 = vmul.f32 %v3923, %v3489
  %v3942 = vadd.f32 %v3940, %v3941
  %3944 = vrot.lane.b32.xlu0 %v3942, 96
  %v3945 = vpop.permute.xlu0 %3944
  %3947 = vst.msk [vmem:[#allocation2 + $0xc] sm:$0x3] %vm1156, %v3945
  %3949 = vrot.lane.b32.xlu0 %v694, 28
  %v3950 = vpop.permute.xlu0 %3949
  %v3952 = vmul.f32 %v3590, %v3950
  %v3953 = vmul.f32 %v3766, %v3950
  %v3954 = vmul.f32 %v3942, %v3950
  %3956 = vrot.lane.b32.xlu0 %v3952, 96
  %v3957 = vpop.permute.xlu0 %3956
  %v3958 = vsel %vm695, %v3957, 0
  %3960 = vmatprep.subr.mxu0 0.0
  %3961 = vmatpush1.msra.mxu0 0.0
  %3962 = vmatprep.subr.mxu0 0.0
  %3963 = vmatpush1.msra.mxu0 0.0
  %3964 = vmatprep.subr.mxu0 0.0
  %3965 = vmatpush1.msra.mxu0 0.0
  %3966 = vmatprep.subr.mxu0 0.0
  %3967 = vmatpush1.msra.mxu0 0.0
  %3968 = vmatprep.subr.mxu0 0.0
  %3969 = vmatpush1.msra.mxu0 0.0
  %3970 = vmatprep.subr.mxu0 0.0
  %3971 = vmatpush1.msra.mxu0 0.0
  %3972 = vmatprep.subr.mxu0 0.0
  %3973 = vmatpush1.msra.mxu0 0.0
  %3974 = vmatprep.subr.mxu0 0.0
  %3975 = vmatpush1.msra.mxu0 0.0
  %3976 = vmatprep.subr.mxu0 0.0
  %3977 = vmatpush1.msra.mxu0 0.0
  %3978 = vmatprep.subr.mxu0 0.0
  %3979 = vmatpush1.msra.mxu0 0.0
  %3980 = vmatprep.subr.mxu0 0.0
  %3981 = vmatpush1.msra.mxu0 0.0
  %3982 = vmatprep.subr.mxu0 0.0
  %3983 = vmatpush1.msra.mxu0 0.0
  %3984 = vmatprep.subr.mxu0 0.0
  %3985 = vmatpush1.msra.mxu0 %v24
  %3986 = vmatprep.subr.mxu0 0.0
  %3987 = vmatpush1.msra.mxu0 %v23
  %3988 = vmatprep.subr.mxu0 0.0
  %3989 = vmatpush1.msra.mxu0 %v22
  %3990 = vmatprep.subr.mxu0 0.0
  %3991 = vmatpush1.msra.mxu0 %v21
  %3992 = vmatprep.subr.mxu0 0.0
  %3993 = vmatpush2.msra.mxu0 0.0
  %3994 = vmatprep.subr.mxu0 0.0
  %3995 = vmatpush2.msra.mxu0 0.0
  %3996 = vmatprep.subr.mxu0 0.0
  %3997 = vmatpush2.msra.mxu0 0.0
  %3998 = vmatprep.subr.mxu0 0.0
  %3999 = vmatpush2.msra.mxu0 0.0
  %4000 = vmatprep.subr.mxu0 0.0
  %4001 = vmatpush2.msra.mxu0 0.0
  %4002 = vmatprep.subr.mxu0 0.0
  %4003 = vmatpush2.msra.mxu0 0.0
  %4004 = vmatprep.subr.mxu0 0.0
  %4005 = vmatpush2.msra.mxu0 0.0
  %4006 = vmatprep.subr.mxu0 0.0
  %4007 = vmatpush2.msra.mxu0 0.0
  %4008 = vmatprep.subr.mxu0 0.0
  %4009 = vmatpush2.msra.mxu0 0.0
  %4010 = vmatprep.subr.mxu0 0.0
  %4011 = vmatpush2.msra.mxu0 0.0
  %4012 = vmatprep.subr.mxu0 0.0
  %4013 = vmatpush2.msra.mxu0 0.0
  %4014 = vmatprep.subr.mxu0 0.0
  %4015 = vmatpush2.msra.mxu0 0.0
  %4016 = vmatprep.subr.mxu0 0.0
  %4017 = vmatpush2.msra.mxu0 0.0
  %4018 = vmatprep.subr.mxu0 0.0
  %4019 = vmatpush2.msra.mxu0 0.0
  %4020 = vmatprep.subr.mxu0 0.0
  %4021 = vmatpush2.msra.mxu0 0.0
  %4022 = vmatprep.subr.mxu0 0.0
  %4023 = vmatpush2.msra.mxu0 0.0
  %4024 = vmatprep.mubr.f32.mxu0 0.0
  %4025 = vmatmul.mubr.f32.gmra.mxu0 %v3958
  %v4026 = vpop.f32.mrf.mxu0
  %v4027 = vadd.f32 %v51, %v4026
  %v4028 = vpop.f32.mrf.mxu0
  %4029 = vdwg.mxu0
  %v4030 = vadd.f32 %v688, %v4027
  %v4031 = vxor.u32 %v4030, 2147483648
  %v4032 = vmul.f32 %v4031, 1.442695
  %v4033 = vpow.pop %v4032
  %v4034 = vadd.f32 %v4033, 1.0
  %v4035 = vrcp.pop %v4034
  %v4036 = vmul.f32 1.0, %v4035
  %4038 = vrot.lane.b32.xlu0 %v4027, 64
  %v4039 = vpop.permute.xlu0 %4038
  %v4041 = vmul.f32 %v4036, %v4039
  %4043 = vrot.lane.b32.xlu0 %v4041, 64
  %v4044 = vpop.permute.xlu0 %4043
  %v4046 = vadd.f32 %v688, %v4044
  %v4047 = vtanh.pop %v4046
  %v4048 = vsub.f32 1.0, %v4036
  %4050 = vrot.lane.b32.xlu0 %v4047, 96
  %v4051 = vpop.permute.xlu0 %4050
  %v4053 = vmul.f32 %v4048, %v4051
  %v4054 = vmul.f32 %v4036, %v3952
  %v4055 = vadd.f32 %v4053, %v4054
  %4057 = vrot.lane.b32.xlu0 %v3953, 96
  %v4058 = vpop.permute.xlu0 %4057
  %v4059 = vsel %vm695, %v4058, 0
  %4061 = vmatprep.subr.mxu0 0.0
  %4062 = vmatpush1.msra.mxu0 0.0
  %4063 = vmatprep.subr.mxu0 0.0
  %4064 = vmatpush1.msra.mxu0 0.0
  %4065 = vmatprep.subr.mxu0 0.0
  %4066 = vmatpush1.msra.mxu0 0.0
  %4067 = vmatprep.subr.mxu0 0.0
  %4068 = vmatpush1.msra.mxu0 0.0
  %4069 = vmatprep.subr.mxu0 0.0
  %4070 = vmatpush1.msra.mxu0 0.0
  %4071 = vmatprep.subr.mxu0 0.0
  %4072 = vmatpush1.msra.mxu0 0.0
  %4073 = vmatprep.subr.mxu0 0.0
  %4074 = vmatpush1.msra.mxu0 0.0
  %4075 = vmatprep.subr.mxu0 0.0
  %4076 = vmatpush1.msra.mxu0 0.0
  %4077 = vmatprep.subr.mxu0 0.0
  %4078 = vmatpush1.msra.mxu0 0.0
  %4079 = vmatprep.subr.mxu0 0.0
  %4080 = vmatpush1.msra.mxu0 0.0
  %4081 = vmatprep.subr.mxu0 0.0
  %4082 = vmatpush1.msra.mxu0 0.0
  %4083 = vmatprep.subr.mxu0 0.0
  %4084 = vmatpush1.msra.mxu0 0.0
  %4085 = vmatprep.subr.mxu0 0.0
  %4086 = vmatpush1.msra.mxu0 %v33
  %4087 = vmatprep.subr.mxu0 0.0
  %4088 = vmatpush1.msra.mxu0 %v32
  %4089 = vmatprep.subr.mxu0 0.0
  %4090 = vmatpush1.msra.mxu0 %v31
  %4091 = vmatprep.subr.mxu0 0.0
  %4092 = vmatpush1.msra.mxu0 %v30
  %4093 = vmatprep.subr.mxu0 0.0
  %4094 = vmatpush2.msra.mxu0 0.0
  %4095 = vmatprep.subr.mxu0 0.0
  %4096 = vmatpush2.msra.mxu0 0.0
  %4097 = vmatprep.subr.mxu0 0.0
  %4098 = vmatpush2.msra.mxu0 0.0
  %4099 = vmatprep.subr.mxu0 0.0
  %4100 = vmatpush2.msra.mxu0 0.0
  %4101 = vmatprep.subr.mxu0 0.0
  %4102 = vmatpush2.msra.mxu0 0.0
  %4103 = vmatprep.subr.mxu0 0.0
  %4104 = vmatpush2.msra.mxu0 0.0
  %4105 = vmatprep.subr.mxu0 0.0
  %4106 = vmatpush2.msra.mxu0 0.0
  %4107 = vmatprep.subr.mxu0 0.0
  %4108 = vmatpush2.msra.mxu0 0.0
  %4109 = vmatprep.subr.mxu0 0.0
  %4110 = vmatpush2.msra.mxu0 0.0
  %4111 = vmatprep.subr.mxu0 0.0
  %4112 = vmatpush2.msra.mxu0 0.0
  %4113 = vmatprep.subr.mxu0 0.0
  %4114 = vmatpush2.msra.mxu0 0.0
  %4115 = vmatprep.subr.mxu0 0.0
  %4116 = vmatpush2.msra.mxu0 0.0
  %4117 = vmatprep.subr.mxu0 0.0
  %4118 = vmatpush2.msra.mxu0 0.0
  %4119 = vmatprep.subr.mxu0 0.0
  %4120 = vmatpush2.msra.mxu0 0.0
  %4121 = vmatprep.subr.mxu0 0.0
  %4122 = vmatpush2.msra.mxu0 0.0
  %4123 = vmatprep.subr.mxu0 0.0
  %4124 = vmatpush2.msra.mxu0 0.0
  %4125 = vmatprep.mubr.f32.mxu0 0.0
  %4126 = vmatmul.mubr.f32.gmra.mxu0 %v4059
  %v4127 = vpop.f32.mrf.mxu0
  %v4128 = vadd.f32 0.0, %v4127
  %v4129 = vpop.f32.mrf.mxu0
  %4130 = vdwg.mxu0
  %4132 = vrot.lane.b32.xlu0 %v4055, 96
  %v4133 = vpop.permute.xlu0 %4132
  %v4134 = vsel %vm695, %v4133, 0
  %4136 = vmatprep.subr.mxu0 0.0
  %4137 = vmatpush1.msra.mxu0 0.0
  %4138 = vmatprep.subr.mxu0 0.0
  %4139 = vmatpush1.msra.mxu0 0.0
  %4140 = vmatprep.subr.mxu0 0.0
  %4141 = vmatpush1.msra.mxu0 0.0
  %4142 = vmatprep.subr.mxu0 0.0
  %4143 = vmatpush1.msra.mxu0 0.0
  %4144 = vmatprep.subr.mxu0 0.0
  %4145 = vmatpush1.msra.mxu0 0.0
  %4146 = vmatprep.subr.mxu0 0.0
  %4147 = vmatpush1.msra.mxu0 0.0
  %4148 = vmatprep.subr.mxu0 0.0
  %4149 = vmatpush1.msra.mxu0 0.0
  %4150 = vmatprep.subr.mxu0 0.0
  %4151 = vmatpush1.msra.mxu0 0.0
  %4152 = vmatprep.subr.mxu0 0.0
  %4153 = vmatpush1.msra.mxu0 0.0
  %4154 = vmatprep.subr.mxu0 0.0
  %4155 = vmatpush1.msra.mxu0 0.0
  %4156 = vmatprep.subr.mxu0 0.0
  %4157 = vmatpush1.msra.mxu0 0.0
  %4158 = vmatprep.subr.mxu0 0.0
  %4159 = vmatpush1.msra.mxu0 0.0
  %4160 = vmatprep.subr.mxu0 0.0
  %4161 = vmatpush1.msra.mxu0 %v28
  %4162 = vmatprep.subr.mxu0 0.0
  %4163 = vmatpush1.msra.mxu0 %v27
  %4164 = vmatprep.subr.mxu0 0.0
  %4165 = vmatpush1.msra.mxu0 %v26
  %4166 = vmatprep.subr.mxu0 0.0
  %4167 = vmatpush1.msra.mxu0 %v25
  %4168 = vmatprep.subr.mxu0 0.0
  %4169 = vmatpush2.msra.mxu0 0.0
  %4170 = vmatprep.subr.mxu0 0.0
  %4171 = vmatpush2.msra.mxu0 0.0
  %4172 = vmatprep.subr.mxu0 0.0
  %4173 = vmatpush2.msra.mxu0 0.0
  %4174 = vmatprep.subr.mxu0 0.0
  %4175 = vmatpush2.msra.mxu0 0.0
  %4176 = vmatprep.subr.mxu0 0.0
  %4177 = vmatpush2.msra.mxu0 0.0
  %4178 = vmatprep.subr.mxu0 0.0
  %4179 = vmatpush2.msra.mxu0 0.0
  %4180 = vmatprep.subr.mxu0 0.0
  %4181 = vmatpush2.msra.mxu0 0.0
  %4182 = vmatprep.subr.mxu0 0.0
  %4183 = vmatpush2.msra.mxu0 0.0
  %4184 = vmatprep.subr.mxu0 0.0
  %4185 = vmatpush2.msra.mxu0 0.0
  %4186 = vmatprep.subr.mxu0 0.0
  %4187 = vmatpush2.msra.mxu0 0.0
  %4188 = vmatprep.subr.mxu0 0.0
  %4189 = vmatpush2.msra.mxu0 0.0
  %4190 = vmatprep.subr.mxu0 0.0
  %4191 = vmatpush2.msra.mxu0 0.0
  %4192 = vmatprep.subr.mxu0 0.0
  %4193 = vmatpush2.msra.mxu0 0.0
  %4194 = vmatprep.subr.mxu0 0.0
  %4195 = vmatpush2.msra.mxu0 0.0
  %4196 = vmatprep.subr.mxu0 0.0
  %4197 = vmatpush2.msra.mxu0 0.0
  %4198 = vmatprep.subr.mxu0 0.0
  %4199 = vmatpush2.msra.mxu0 0.0
  %4200 = vmatprep.mubr.f32.mxu0 0.0
  %4201 = vmatmul.mubr.f32.gmra.mxu0 %v4134
  %v4202 = vpop.f32.mrf.mxu0
  %v4203 = vadd.f32 %v4128, %v4202
  %v4204 = vpop.f32.mrf.mxu0
  %4205 = vdwg.mxu0
  %v4206 = vadd.f32 %v4203, %v53
  %v4207 = vxor.u32 %v4206, 2147483648
  %v4208 = vmul.f32 %v4207, 1.442695
  %v4209 = vpow.pop %v4208
  %v4210 = vadd.f32 %v4209, 1.0
  %v4211 = vrcp.pop %v4210
  %v4212 = vmul.f32 1.0, %v4211
  %4214 = vrot.lane.b32.xlu0 %v4206, 32
  %v4215 = vpop.permute.xlu0 %4214
  %v4217 = vmul.f32 %v4212, %v4215
  %4219 = vrot.lane.b32.xlu0 %v4217, 64
  %v4220 = vpop.permute.xlu0 %4219
  %v4222 = vadd.f32 %v4206, %v4220
  %v4223 = vtanh.pop %v4222
  %v4224 = vsub.f32 1.0, %v4212
  %4226 = vrot.lane.b32.xlu0 %v4223, 96
  %v4227 = vpop.permute.xlu0 %4226
  %v4229 = vmul.f32 %v4224, %v4227
  %v4230 = vmul.f32 %v4212, %v3953
  %v4231 = vadd.f32 %v4229, %v4230
  %4233 = vrot.lane.b32.xlu0 %v3954, 96
  %v4234 = vpop.permute.xlu0 %4233
  %v4235 = vsel %vm695, %v4234, 0
  %4237 = vmatprep.subr.mxu0 0.0
  %4238 = vmatpush1.msra.mxu0 0.0
  %4239 = vmatprep.subr.mxu0 0.0
  %4240 = vmatpush1.msra.mxu0 0.0
  %4241 = vmatprep.subr.mxu0 0.0
  %4242 = vmatpush1.msra.mxu0 0.0
  %4243 = vmatprep.subr.mxu0 0.0
  %4244 = vmatpush1.msra.mxu0 0.0
  %4245 = vmatprep.subr.mxu0 0.0
  %4246 = vmatpush1.msra.mxu0 0.0
  %4247 = vmatprep.subr.mxu0 0.0
  %4248 = vmatpush1.msra.mxu0 0.0
  %4249 = vmatprep.subr.mxu0 0.0
  %4250 = vmatpush1.msra.mxu0 0.0
  %4251 = vmatprep.subr.mxu0 0.0
  %4252 = vmatpush1.msra.mxu0 0.0
  %4253 = vmatprep.subr.mxu0 0.0
  %4254 = vmatpush1.msra.mxu0 0.0
  %4255 = vmatprep.subr.mxu0 0.0
  %4256 = vmatpush1.msra.mxu0 0.0
  %4257 = vmatprep.subr.mxu0 0.0
  %4258 = vmatpush1.msra.mxu0 0.0
  %4259 = vmatprep.subr.mxu0 0.0
  %4260 = vmatpush1.msra.mxu0 0.0
  %4261 = vmatprep.subr.mxu0 0.0
  %4262 = vmatpush1.msra.mxu0 %v43
  %4263 = vmatprep.subr.mxu0 0.0
  %4264 = vmatpush1.msra.mxu0 %v42
  %4265 = vmatprep.subr.mxu0 0.0
  %4266 = vmatpush1.msra.mxu0 %v41
  %4267 = vmatprep.subr.mxu0 0.0
  %4268 = vmatpush1.msra.mxu0 %v40
  %4269 = vmatprep.subr.mxu0 0.0
  %4270 = vmatpush2.msra.mxu0 0.0
  %4271 = vmatprep.subr.mxu0 0.0
  %4272 = vmatpush2.msra.mxu0 0.0
  %4273 = vmatprep.subr.mxu0 0.0
  %4274 = vmatpush2.msra.mxu0 0.0
  %4275 = vmatprep.subr.mxu0 0.0
  %4276 = vmatpush2.msra.mxu0 0.0
  %4277 = vmatprep.subr.mxu0 0.0
  %4278 = vmatpush2.msra.mxu0 0.0
  %4279 = vmatprep.subr.mxu0 0.0
  %4280 = vmatpush2.msra.mxu0 0.0
  %4281 = vmatprep.subr.mxu0 0.0
  %4282 = vmatpush2.msra.mxu0 0.0
  %4283 = vmatprep.subr.mxu0 0.0
  %4284 = vmatpush2.msra.mxu0 0.0
  %4285 = vmatprep.subr.mxu0 0.0
  %4286 = vmatpush2.msra.mxu0 0.0
  %4287 = vmatprep.subr.mxu0 0.0
  %4288 = vmatpush2.msra.mxu0 0.0
  %4289 = vmatprep.subr.mxu0 0.0
  %4290 = vmatpush2.msra.mxu0 0.0
  %4291 = vmatprep.subr.mxu0 0.0
  %4292 = vmatpush2.msra.mxu0 0.0
  %4293 = vmatprep.subr.mxu0 0.0
  %4294 = vmatpush2.msra.mxu0 0.0
  %4295 = vmatprep.subr.mxu0 0.0
  %4296 = vmatpush2.msra.mxu0 0.0
  %4297 = vmatprep.subr.mxu0 0.0
  %4298 = vmatpush2.msra.mxu0 0.0
  %4299 = vmatprep.subr.mxu0 0.0
  %4300 = vmatpush2.msra.mxu0 0.0
  %4301 = vmatprep.mubr.f32.mxu0 0.0
  %4302 = vmatmul.mubr.f32.gmra.mxu0 %v4235
  %v4303 = vpop.f32.mrf.mxu0
  %v4304 = vadd.f32 0.0, %v4303
  %v4305 = vpop.f32.mrf.mxu0
  %4306 = vdwg.mxu0
  %4308 = vrot.lane.b32.xlu0 %v4231, 96
  %v4309 = vpop.permute.xlu0 %4308
  %v4310 = vsel %vm695, %v4309, 0
  %4312 = vmatprep.subr.mxu0 0.0
  %4313 = vmatpush1.msra.mxu0 0.0
  %4314 = vmatprep.subr.mxu0 0.0
  %4315 = vmatpush1.msra.mxu0 0.0
  %4316 = vmatprep.subr.mxu0 0.0
  %4317 = vmatpush1.msra.mxu0 0.0
  %4318 = vmatprep.subr.mxu0 0.0
  %4319 = vmatpush1.msra.mxu0 0.0
  %4320 = vmatprep.subr.mxu0 0.0
  %4321 = vmatpush1.msra.mxu0 0.0
  %4322 = vmatprep.subr.mxu0 0.0
  %4323 = vmatpush1.msra.mxu0 0.0
  %4324 = vmatprep.subr.mxu0 0.0
  %4325 = vmatpush1.msra.mxu0 0.0
  %4326 = vmatprep.subr.mxu0 0.0
  %4327 = vmatpush1.msra.mxu0 0.0
  %4328 = vmatprep.subr.mxu0 0.0
  %4329 = vmatpush1.msra.mxu0 0.0
  %4330 = vmatprep.subr.mxu0 0.0
  %4331 = vmatpush1.msra.mxu0 0.0
  %4332 = vmatprep.subr.mxu0 0.0
  %4333 = vmatpush1.msra.mxu0 0.0
  %4334 = vmatprep.subr.mxu0 0.0
  %4335 = vmatpush1.msra.mxu0 0.0
  %4336 = vmatprep.subr.mxu0 0.0
  %4337 = vmatpush1.msra.mxu0 %v38
  %4338 = vmatprep.subr.mxu0 0.0
  %4339 = vmatpush1.msra.mxu0 %v37
  %4340 = vmatprep.subr.mxu0 0.0
  %4341 = vmatpush1.msra.mxu0 %v36
  %4342 = vmatprep.subr.mxu0 0.0
  %4343 = vmatpush1.msra.mxu0 %v35
  %4344 = vmatprep.subr.mxu0 0.0
  %4345 = vmatpush2.msra.mxu0 0.0
  %4346 = vmatprep.subr.mxu0 0.0
  %4347 = vmatpush2.msra.mxu0 0.0
  %4348 = vmatprep.subr.mxu0 0.0
  %4349 = vmatpush2.msra.mxu0 0.0
  %4350 = vmatprep.subr.mxu0 0.0
  %4351 = vmatpush2.msra.mxu0 0.0
  %4352 = vmatprep.subr.mxu0 0.0
  %4353 = vmatpush2.msra.mxu0 0.0
  %4354 = vmatprep.subr.mxu0 0.0
  %4355 = vmatpush2.msra.mxu0 0.0
  %4356 = vmatprep.subr.mxu0 0.0
  %4357 = vmatpush2.msra.mxu0 0.0
  %4358 = vmatprep.subr.mxu0 0.0
  %4359 = vmatpush2.msra.mxu0 0.0
  %4360 = vmatprep.subr.mxu0 0.0
  %4361 = vmatpush2.msra.mxu0 0.0
  %4362 = vmatprep.subr.mxu0 0.0
  %4363 = vmatpush2.msra.mxu0 0.0
  %4364 = vmatprep.subr.mxu0 0.0
  %4365 = vmatpush2.msra.mxu0 0.0
  %4366 = vmatprep.subr.mxu0 0.0
  %4367 = vmatpush2.msra.mxu0 0.0
  %4368 = vmatprep.subr.mxu0 0.0
  %4369 = vmatpush2.msra.mxu0 0.0
  %4370 = vmatprep.subr.mxu0 0.0
  %4371 = vmatpush2.msra.mxu0 0.0
  %4372 = vmatprep.subr.mxu0 0.0
  %4373 = vmatpush2.msra.mxu0 0.0
  %4374 = vmatprep.subr.mxu0 0.0
  %4375 = vmatpush2.msra.mxu0 0.0
  %4376 = vmatprep.mubr.f32.mxu0 0.0
  %4377 = vmatmul.mubr.f32.gmra.mxu0 %v4310
  %v4378 = vpop.f32.mrf.mxu0
  %v4379 = vadd.f32 %v4304, %v4378
  %v4380 = vpop.f32.mrf.mxu0
  %4381 = vdwg.mxu0
  %v4382 = vadd.f32 %v4379, %v55
  %v4383 = vxor.u32 %v4382, 2147483648
  %v4384 = vmul.f32 %v4383, 1.442695
  %v4385 = vpow.pop %v4384
  %v4386 = vadd.f32 %v4385, 1.0
  %v4387 = vrcp.pop %v4386
  %v4388 = vmul.f32 1.0, %v4387
  %4390 = vrot.lane.b32.xlu0 %v4382, 32
  %v4391 = vpop.permute.xlu0 %4390
  %v4393 = vmul.f32 %v4388, %v4391
  %4395 = vrot.lane.b32.xlu0 %v4393, 64
  %v4396 = vpop.permute.xlu0 %4395
  %v4398 = vadd.f32 %v4382, %v4396
  %v4399 = vtanh.pop %v4398
  %v4400 = vsub.f32 1.0, %v4388
  %4402 = vrot.lane.b32.xlu0 %v4399, 96
  %v4403 = vpop.permute.xlu0 %4402
  %v4405 = vmul.f32 %v4400, %v4403
  %v4406 = vmul.f32 %v4388, %v3954
  %v4407 = vadd.f32 %v4405, %v4406
  %4409 = vrot.lane.b32.xlu0 %v4407, 96
  %v4410 = vpop.permute.xlu0 %4409
  %4412 = vst.msk [vmem:[#allocation2 + $0xe] sm:$0x3] %vm1156, %v4410
  %v4413 = vld [vmem:[#allocation2] sm:$0xff]
  %v4414 = vld [vmem:[#allocation2 + $0x8] sm:$0xff]
  %v4415 = vlaneseq
  %v4416 = vshrl.u32 %v4415, 7
  %v4417 = vsub.s32 0, %v4416
  %v4418 = vrot.slane %v57, %v4417
  %v4420 = vsel %vm695, %v4413, 0
  %v4423 = vsel %vm695, %v4414, 0
  %4425 = vmatprep.subr.mxu0 0.0
  %4426 = vmatpush1.msra.mxu0 0.0
  %4427 = vmatprep.subr.mxu0 0.0
  %4428 = vmatpush1.msra.mxu0 0.0
  %4429 = vmatprep.subr.mxu0 0.0
  %4430 = vmatpush1.msra.mxu0 0.0
  %4431 = vmatprep.subr.mxu0 0.0
  %4432 = vmatpush1.msra.mxu0 0.0
  %4433 = vmatprep.subr.mxu0 0.0
  %4434 = vmatpush1.msra.mxu0 0.0
  %4435 = vmatprep.subr.mxu0 0.0
  %4436 = vmatpush1.msra.mxu0 0.0
  %4437 = vmatprep.subr.mxu0 0.0
  %4438 = vmatpush1.msra.mxu0 0.0
  %4439 = vmatprep.subr.mxu0 0.0
  %4440 = vmatpush1.msra.mxu0 0.0
  %4441 = vmatprep.subr.mxu0 0.0
  %4442 = vmatpush1.msra.mxu0 0.0
  %4443 = vmatprep.subr.mxu0 0.0
  %4444 = vmatpush1.msra.mxu0 0.0
  %4445 = vmatprep.subr.mxu0 0.0
  %4446 = vmatpush1.msra.mxu0 0.0
  %4447 = vmatprep.subr.mxu0 0.0
  %4448 = vmatpush1.msra.mxu0 0.0
  %4449 = vmatprep.subr.mxu0 0.0
  %4450 = vmatpush1.msra.mxu0 %v48
  %4451 = vmatprep.subr.mxu0 0.0
  %4452 = vmatpush1.msra.mxu0 %v47
  %4453 = vmatprep.subr.mxu0 0.0
  %4454 = vmatpush1.msra.mxu0 %v46
  %4455 = vmatprep.subr.mxu0 0.0
  %4456 = vmatpush1.msra.mxu0 %v45
  %4457 = vmatprep.subr.mxu0 0.0
  %4458 = vmatpush2.msra.mxu0 0.0
  %4459 = vmatprep.subr.mxu0 0.0
  %4460 = vmatpush2.msra.mxu0 0.0
  %4461 = vmatprep.subr.mxu0 0.0
  %4462 = vmatpush2.msra.mxu0 0.0
  %4463 = vmatprep.subr.mxu0 0.0
  %4464 = vmatpush2.msra.mxu0 0.0
  %4465 = vmatprep.subr.mxu0 0.0
  %4466 = vmatpush2.msra.mxu0 0.0
  %4467 = vmatprep.subr.mxu0 0.0
  %4468 = vmatpush2.msra.mxu0 0.0
  %4469 = vmatprep.subr.mxu0 0.0
  %4470 = vmatpush2.msra.mxu0 0.0
  %4471 = vmatprep.subr.mxu0 0.0
  %4472 = vmatpush2.msra.mxu0 0.0
  %4473 = vmatprep.subr.mxu0 0.0
  %4474 = vmatpush2.msra.mxu0 0.0
  %4475 = vmatprep.subr.mxu0 0.0
  %4476 = vmatpush2.msra.mxu0 0.0
  %4477 = vmatprep.subr.mxu0 0.0
  %4478 = vmatpush2.msra.mxu0 0.0
  %4479 = vmatprep.subr.mxu0 0.0
  %4480 = vmatpush2.msra.mxu0 0.0
  %4481 = vmatprep.subr.mxu0 0.0
  %4482 = vmatpush2.msra.mxu0 0.0
  %4483 = vmatprep.subr.mxu0 0.0
  %4484 = vmatpush2.msra.mxu0 0.0
  %4485 = vmatprep.subr.mxu0 0.0
  %4486 = vmatpush2.msra.mxu0 0.0
  %4487 = vmatprep.subr.mxu0 0.0
  %4488 = vmatpush2.msra.mxu0 0.0
  %4489 = vmatprep.mubr.f32.mxu0 0.0
  %4490 = vmatmul.mubr.f32.gmra.mxu0 %v4420
  %v4491 = vpop.f32.mrf.mxu0
  %v4492 = vadd.f32 %v4418, %v4491
  %v4493 = vpop.f32.mrf.mxu0
  %4494 = vmatprep.mubr.f32.mxu0 0.0
  %4495 = vmatmul.mubr.f32.gmra.mxu0 %v4423
  %v4496 = vpop.f32.mrf.mxu0
  %v4497 = vadd.f32 %v4418, %v4496
  %v4498 = vpop.f32.mrf.mxu0
  %4499 = vdwg.mxu0
  %v4500 = vsel %vm64, %v4492, -inf
  %4501 = vmax.xlane.f32.xlu0 %v4500
  %v4502 = vpop.xlane.xlu0 %4501
  %v4503 = vsel %vm64, %v4497, -inf
  %4504 = vmax.xlane.f32.xlu0 %v4503
  %v4505 = vpop.xlane.xlu0 %4504
  %v4506 = vsub.f32 %v4492, %v4502
  %v4507 = vsub.f32 %v4497, %v4505
  %v4508 = vmul.f32 %v4506, 1.442695
  %v4509 = vpow.pop %v4508
  %v4510 = vmul.f32 %v4507, 1.442695
  %v4511 = vpow.pop %v4510
  %v4512 = vsel %vm64, %v4509, 0.0
  %4513 = vadd.xlane.f32.xlu0 %v4512
  %v4514 = vpop.xlane.xlu0 %4513
  %v4515 = vsel %vm64, %v4511, 0.0
  %4516 = vadd.xlane.f32.xlu0 %v4515
  %v4517 = vpop.xlane.xlu0 %4516
  %v4518 = vrcp.pop %v4514
  %v4519 = vrcp.pop %v4517
  %v4520 = vmul.f32 %v4514, %v4518
  %v4521 = vmul.f32 %v4517, %v4519
  %v4522 = vsub.f32 2.0, %v4520
  %v4523 = vsub.f32 2.0, %v4521
  %v4524 = vmul.f32 %v4518, %v4522
  %v4525 = vmul.f32 %v4519, %v4523
  %v4526 = vmul.f32 %v4509, %v4524
  %v4527 = vmul.f32 %v4511, %v4525
  %4528 = vst.msk [vmem:[%s5] sm:$0xff] %vm64, %v4526
  %4529 = vst.msk [vmem:[%s5 + $0x8] sm:$0xff] %vm64, %v4527
  // Predicated region
  $region22: #{model0_forward.1} parent=0 // pred_check
    _
  $region23: #{model0_forward.1} parent=0 // pred_check_branch
    %4531 = sbr.rel (0) target = $region25
  $region24: #{model0_forward.1} parent=0 // pred_region
    _
  $region25: #{model0_forward.1} parent=0 // pred_fallthru
    _
  // Predicated region
  $region26: #{model0_forward.1} parent=0 // pred_check
    _
  $region27: #{model0_forward.1} parent=0 // pred_check_branch
    %4533 = sbr.rel (0) target = $region29
  $region28: #{model0_forward.1} parent=0 // pred_region
    _
  $region29: #{model0_forward.1} parent=0 // pred_fallthru
    _

</llo_original>
